<compile_context>
chip_gen: v6e
topology: v6e:2x2x1
jax: 0.10.0
libtpu: 0.0.40
codegen_flags: <defaults>
</compile_context>

<pallas_src>
import jax
import jax.numpy as jnp
from jax import lax
from jax.experimental import pallas as pl
from jax.experimental.pallas import tpu as pltpu

K = 7                       # self.k (group size == pooled size)
SPATIAL_SCALE = 1.0 / 16.0  # PSRoIPool spatial_scale


def _round_up(x, m):
    return (x + m - 1) // m * m


# --------------------------------------------------------------------------
# Fused 1x1 conv (cls + bbox nets) == one channel matmul on the MXU.
# Output channel order is position-sensitive bin-major:
#     col = (ph*K + pw) * D_pad + d ,   d in [0, n_classes + loc_dim)
# with D_pad a multiple of 128, so downstream bin slices are lane-aligned.
# --------------------------------------------------------------------------
def _conv1x1_kernel(x_ref, w_ref, b_ref, o_ref):
    acc = jnp.dot(x_ref[...], w_ref[...], preferred_element_type=jnp.float32)
    o_ref[...] = (acc + b_ref[...]).astype(o_ref.dtype)


def fused_conv1x1(x2d_bf16, w_packed_bf16, b_packed_f32, *, tm=256):
    rows, cin = x2d_bf16.shape
    cout = w_packed_bf16.shape[1]          # = K*K * D_pad  (D_pad % 128 == 0)
    tn = min(cout, 7 * 128)                # always divides K*K*D_pad evenly
    tm = min(tm, rows)
    # columns outer / rows inner: the weight tile is re-used across row tiles.
    grid = (pl.cdiv(cout, tn), pl.cdiv(rows, tm))
    return pl.pallas_call(
        _conv1x1_kernel,
        out_shape=jax.ShapeDtypeStruct((rows, cout), jnp.bfloat16),
        grid=grid,
        in_specs=[
            pl.BlockSpec((tm, cin), lambda c, r: (r, 0)),
            pl.BlockSpec((cin, tn), lambda c, r: (0, c)),
            pl.BlockSpec((1, tn), lambda c, r: (0, c)),
        ],
        out_specs=pl.BlockSpec((tm, tn), lambda c, r: (r, c)),
        compiler_params=pltpu.CompilerParams(
            dimension_semantics=("parallel", "parallel")),
    )(x2d_bf16, w_packed_bf16, b_packed_f32)


# --------------------------------------------------------------------------
# Fused PSRoIPool (cls + bbox) + AvgPool2d((7,7)) + class softmax.
# Grid = (image_group, K*K bins).  Per step the kernel sees only one bin's
# (H*W, D_pad) channel slice; all R ROIs of the group are pooled with a single
# masked matmul and accumulated into a resident (R, D_pad) output tile.
# --------------------------------------------------------------------------
def _make_psroi_kernel(n_classes, rois_per_group, H, W, d_pad):
    HW = H * W
    R = rois_per_group

    def kernel(rois_ref, feat_ref, out_ref):
        # rois_ref: SMEM int32 (G*R, 5)  [batch_idx, x1, y1, x2, y2] (pre-rounded)
        # feat_ref: VMEM (1, HW, d_pad) bf16  -- this bin's channel slice
        # out_ref : VMEM (1, R, d_pad) f32    -- accumulator across the bin axis
        g = pl.program_id(0)
        b = pl.program_id(1)
        ph = b // K
        pw = b % K

        @pl.when(b == 0)
        def _init():
            out_ref[...] = jnp.zeros_like(out_ref)

        # spatial coordinates of the flattened H*W axis (hoisted out of ROI loop)
        hw = lax.broadcasted_iota(jnp.int32, (1, HW), 1)
        h_pos = hw // W
        w_pos = hw % W

        mask_rows = []
        scales = []
        # TODO(synk): for very large R per image, split R over an extra grid axis
        # instead of unrolling this Python loop in the trace.
        for r in range(R):
            row = g * R + r
            x1 = rois_ref[row, 1].astype(jnp.float32) * SPATIAL_SCALE
            y1 = rois_ref[row, 2].astype(jnp.float32) * SPATIAL_SCALE
            x2 = (rois_ref[row, 3].astype(jnp.float32) + 1.0) * SPATIAL_SCALE
            y2 = (rois_ref[row, 4].astype(jnp.float32) + 1.0) * SPATIAL_SCALE
            roi_w = jnp.maximum(x2 - x1, 0.1)
            roi_h = jnp.maximum(y2 - y1, 0.1)
            bin_h = roi_h / K
            bin_w = roi_w / K
            hs = jnp.clip(jnp.floor(ph * bin_h + y1), 0.0, float(H)).astype(jnp.int32)
            he = jnp.clip(jnp.ceil((ph + 1) * bin_h + y1), 0.0, float(H)).astype(jnp.int32)
            ws = jnp.clip(jnp.floor(pw * bin_w + x1), 0.0, float(W)).astype(jnp.int32)
            we = jnp.clip(jnp.ceil((pw + 1) * bin_w + x1), 0.0, float(W)).astype(jnp.int32)
            inside = (h_pos >= hs) & (h_pos < he) & (w_pos >= ws) & (w_pos < we)
            mask_rows.append(jnp.where(inside, 1.0, 0.0))          # (1, HW) exact 0/1
            cnt = ((he - hs) * (we - ws)).astype(jnp.float32)
            scale = jnp.where(cnt > 0.0,
                              1.0 / (jnp.maximum(cnt, 1.0) * float(K * K)), 0.0)
            scales.append(scale.reshape(1, 1))

        m = jnp.concatenate(mask_rows, axis=0).astype(feat_ref.dtype)   # (R, HW)
        scale_col = jnp.concatenate(scales, axis=0)                     # (R, 1) f32
        feat = feat_ref[0]                                              # (HW, d_pad)
        # masked bin sums for all ROIs at once -> MXU matmul, f32 accumulation
        s = jnp.dot(m, feat, preferred_element_type=jnp.float32)        # (R, d_pad)
        out_ref[0] = out_ref[0] + s * scale_col

        @pl.when(b == K * K - 1)
        def _finalize():
            ave = out_ref[0]                                   # already /(cnt*49)
            lane = lax.broadcasted_iota(jnp.int32, (R, d_pad), 1)
            is_cls = lane < n_classes
            mmax = jnp.max(jnp.where(is_cls, ave, -jnp.inf), axis=1, keepdims=True)
            e = jnp.where(is_cls, jnp.exp(ave - mmax), 0.0)
            denom = jnp.sum(e, axis=1, keepdims=True)
            out_ref[0] = jnp.where(is_cls, e / denom, ave)     # softmax only on cls lanes

    return kernel


def psroi_pool_fused(feat_ps, rois_i32, *, n_classes, H, W, d_pad, rois_per_group):
    """feat_ps: (N, HW, K*K*d_pad) bf16; rois_i32: (G*R, 5) int32 -> (G, R, d_pad) f32.

    ROIs are assumed grouped per image (standard RPN output ordering); the roi's
    own batch-index column selects the feature slice for each group.
    """
    n_groups = rois_i32.shape[0] // rois_per_group
    kernel = _make_psroi_kernel(n_classes, rois_per_group, H, W, d_pad)
    grid_spec = pltpu.PrefetchScalarGridSpec(
        num_scalar_prefetch=1,
        grid=(n_groups, K * K),
        in_specs=[
            pl.BlockSpec(
                (1, H * W, d_pad),
                lambda g, b, rois: (rois[g * rois_per_group, 0], 0, b)),
        ],
        out_specs=pl.BlockSpec(
            (1, rois_per_group, d_pad), lambda g, b, rois: (g, 0, 0)),
    )
    out = pl.pallas_call(
        kernel,
        out_shape=jax.ShapeDtypeStruct((n_groups, rois_per_group, d_pad), jnp.float32),
        grid_spec=grid_spec,
        compiler_params=pltpu.CompilerParams(
            dimension_semantics=("parallel", "arbitrary")),
    )(rois_i32, feat_ps)
    return out


# --------------------------------------------------------------------------
# Parameter handling
# --------------------------------------------------------------------------
def init_params(key, n_classes, class_agnostic=False, c_in=512):
    k1, k2 = jax.random.split(key)
    cls_out = n_classes * K * K
    loc_out = (4 if class_agnostic else 4 * n_classes) * K * K
    # normal_init(m, 0, 0.01): N(0, 0.01) weights, zero bias
    return {
        "w_cls": 0.01 * jax.random.normal(k1, (c_in, cls_out), jnp.float32),
        "b_cls": jnp.zeros((cls_out,), jnp.float32),
        "w_bbox": 0.01 * jax.random.normal(k2, (c_in, loc_out), jnp.float32),
        "b_bbox": jnp.zeros((loc_out,), jnp.float32),
    }


def _pack_ps_weights(w_cls, b_cls, w_bbox, b_bbox, n_classes, loc_dim, d_pad):
    """Permute conv columns to bin-major PS order and pad to d_pad lanes per bin.

    PyTorch PSRoIPool channel index: c = ctop*K*K + ph*K + pw.  Packed column
    index: (ph*K + pw) * d_pad + d  with d = ctop (cls) or n_classes + j (bbox).
    """
    c_in = w_cls.shape[0]
    d_total = n_classes + loc_dim
    wc = w_cls.reshape(c_in, n_classes, K * K).transpose(0, 2, 1)   # (Cin, 49, nc)
    wb = w_bbox.reshape(c_in, loc_dim, K * K).transpose(0, 2, 1)    # (Cin, 49, loc)
    w = jnp.concatenate([wc, wb], axis=2)                           # (Cin, 49, D)
    w = jnp.pad(w, ((0, 0), (0, 0), (0, d_pad - d_total)))
    w = w.reshape(c_in, K * K * d_pad).astype(jnp.bfloat16)
    bc = b_cls.reshape(n_classes, K * K).T                          # (49, nc)
    bb = b_bbox.reshape(loc_dim, K * K).T                           # (49, loc)
    b = jnp.concatenate([bc, bb], axis=1)
    b = jnp.pad(b, ((0, 0), (0, d_pad - d_total)))
    b = b.reshape(1, K * K * d_pad).astype(jnp.float32)
    return w, b


# --------------------------------------------------------------------------
# Full eval-mode forward of `_rfcn` starting from base_feat and rois
# --------------------------------------------------------------------------
def rfcn_forward(base_feat_nchw, rois, params, n_classes, class_agnostic=False):
    N, c_in, H, W = base_feat_nchw.shape
    batch_size = N
    num_rois = rois.shape[1]
    loc_dim = 4 if class_agnostic else 4 * n_classes
    d_total = n_classes + loc_dim
    d_pad = _round_up(d_total, 128)

    # Pack the two 1x1-conv weights into one bin-major lane-padded matrix: one
    # fused MXU matmul emits both PS score maps already in PS layout.
    w_packed, b_packed = _pack_ps_weights(
        params["w_cls"], params["b_cls"], params["w_bbox"], params["b_bbox"],
        n_classes, loc_dim, d_pad)

    x2d = (jnp.transpose(base_feat_nchw, (0, 2, 3, 1))       # NCHW -> NHWC
           .reshape(N * H * W, c_in).astype(jnp.bfloat16))
    score = fused_conv1x1(x2d, w_packed, b_packed)           # (NHW, 49*d_pad) bf16
    feat_ps = score.reshape(N, H * W, K * K * d_pad)

    # rois.view(-1, 5); PSRoIPool uses C round() (half away from zero)
    rois_flat = rois.reshape(-1, 5)
    coords = rois_flat[:, 1:]
    coords_r = jnp.sign(coords) * jnp.floor(jnp.abs(coords) + 0.5)
    rois_i32 = jnp.concatenate([rois_flat[:, :1], coords_r], axis=1).astype(jnp.int32)

    # Fused PSRoIPool + AvgPool2d((7,7)) + softmax (cls lanes only)
    pooled = psroi_pool_fused(feat_ps, rois_i32, n_classes=n_classes,
                              H=H, W=W, d_pad=d_pad,
                              rois_per_group=num_rois)        # (N, R, d_pad) f32

    cls_prob = pooled[:, :, :n_classes].reshape(batch_size, num_rois, -1)
    bbox_pred = pooled[:, :, n_classes:n_classes + loc_dim].reshape(
        batch_size, num_rois, -1)

    # eval-mode scalars / placeholders (training-only losses not computed)
    rpn_loss_cls = jnp.float32(0.0)
    rpn_loss_bbox = jnp.float32(0.0)
    rcnn_loss_cls = jnp.float32(0.0)
    rcnn_loss_bbox = jnp.float32(0.0)
    rois_label = None
    return (rois, cls_prob, bbox_pred, rpn_loss_cls, rpn_loss_bbox,
            rcnn_loss_cls, rcnn_loss_bbox, rois_label)


if __name__ == "__main__":
    key = jax.random.PRNGKey(0)
    k_feat, k_params = jax.random.split(key)

    N, C_IN, H, W = 2, 512, 16, 16          # base feature map (image ~ 256x256)
    n_classes = 3                            # e.g. ('__background__', 'cat', 'dog')
    num_rois = 4                             # rois per image (RPN stub)

    base_feat = jax.random.normal(k_feat, (N, C_IN, H, W), jnp.float32)
    rois = jnp.array(
        [
            [[0, 0, 0, 224, 224],
             [0, 32, 32, 160, 192],
             [0, 16, 48, 200, 120],
             [0, 64, 64, 255, 255]],
            [[1, 8, 8, 248, 248],
             [1, 0, 128, 127, 255],
             [1, 100, 40, 220, 180],
             [1, 48, 96, 144, 240]],
        ],
        dtype=jnp.float32,
    )

    params = init_params(k_params, n_classes, class_agnostic=False)
    outs = rfcn_forward(base_feat, rois, params, n_classes, class_agnostic=False)
    rois_out, cls_prob, bbox_pred = outs[0], outs[1], outs[2]
    jax.block_until_ready((rois_out, cls_prob, bbox_pred))

    assert cls_prob.shape == (N, num_rois, n_classes)
    assert bbox_pred.shape == (N, num_rois, 4 * n_classes)
    assert jnp.allclose(jnp.sum(cls_prob, axis=-1), 1.0, atol=1e-4)
    print("KERNEL_OK")
</pallas_src>

<mosaic_0001>
module attributes {stable_mosaic.version = 11 : i64} {
  func.func @_conv1x1_kernel(%arg0: i32, %arg1: i32, %arg2: memref<256x512xbf16, #tpu.memory_space<vmem>>, %arg3: memref<512x896xbf16, #tpu.memory_space<vmem>>, %arg4: memref<1x896xf32, #tpu.memory_space<vmem>>, %arg5: memref<256x896xbf16, #tpu.memory_space<vmem>>) attributes {dimension_semantics = [#tpu.dimension_semantics<parallel>, #tpu.dimension_semantics<parallel>], iteration_bounds = array<i64: 7, 2>, scalar_prefetch = 0 : i64, scratch_operands = 0 : i64, tpu.core_type = #tpu.core_type<tc>, window_params = [{transform_indices = @transform_0, window_bounds = array<i64: 256, 512>}, {transform_indices = @transform_1, window_bounds = array<i64: 512, 896>}, {transform_indices = @transform_2, window_bounds = array<i64: 1, 896>}, {transform_indices = @transform_3, window_bounds = array<i64: 256, 896>}]} {
    %c0 = arith.constant 0 : index
    %c0_0 = arith.constant 0 : index
    %0 = vector.load %arg2[%c0, %c0_0] : memref<256x512xbf16, #tpu.memory_space<vmem>>, vector<256x512xbf16>
    %c0_1 = arith.constant 0 : index
    %c0_2 = arith.constant 0 : index
    %1 = vector.load %arg3[%c0_1, %c0_2] : memref<512x896xbf16, #tpu.memory_space<vmem>>, vector<512x896xbf16>
    %cst = arith.constant dense<0.000000e+00> : vector<256x896xf32>
    %2 = tpu.matmul %0, %1, %cst {dimension_numbers = #tpu.dot_dimension_numbers<[1], [0], [0], [1], [0, 0, 1, 1], [], []>} : vector<256x512xbf16>, vector<512x896xbf16>, vector<256x896xf32> -> vector<256x896xf32>
    %c0_3 = arith.constant 0 : index
    %c0_4 = arith.constant 0 : index
    %3 = vector.load %arg4[%c0_3, %c0_4] : memref<1x896xf32, #tpu.memory_space<vmem>>, vector<1x896xf32>
    %4 = vector.broadcast %3 : vector<1x896xf32> to vector<256x896xf32>
    %5 = arith.addf %2, %4 : vector<256x896xf32>
    %6 = arith.truncf %5 : vector<256x896xf32> to vector<256x896xbf16>
    %c0_5 = arith.constant 0 : index
    %c0_6 = arith.constant 0 : index
    %7 = vector.load %arg5[%c0_5, %c0_6] : memref<256x896xbf16, #tpu.memory_space<vmem>>, vector<256x896xbf16>
    tpu.vector_store %arg5[%c0_5, %c0_6], %6 {strides = array<i32>} : memref<256x896xbf16, #tpu.memory_space<vmem>>, vector<256x896xbf16>,
    return
  }
  func.func @transform_0(%arg0: i32, %arg1: i32) -> (i32, i32) {
    %c0_i32 = arith.constant 0 : i32
    %c0_i32_0 = arith.constant 0 : i32
    return %arg1, %c0_i32 : i32, i32
  }
  func.func @transform_1(%arg0: i32, %arg1: i32) -> (i32, i32) {
    %c0_i32 = arith.constant 0 : i32
    %c0_i32_0 = arith.constant 0 : i32
    return %c0_i32, %arg0 : i32, i32
  }
  func.func @transform_2(%arg0: i32, %arg1: i32) -> (i32, i32) {
    %c0_i32 = arith.constant 0 : i32
    %c0_i32_0 = arith.constant 0 : i32
    return %c0_i32, %arg0 : i32, i32
  }
  func.func @transform_3(%arg0: i32, %arg1: i32) -> (i32, i32) {
    %c0_i32 = arith.constant 0 : i32
    return %arg1, %arg0 : i32, i32
  }
}

</mosaic_0001>

<llo_original>
// kernel: tpu_custom_call.1
$region0: #{tpu_custom_call.1}
  #allocation0 [shape = 'u32[]', space=smem, size = 0x4, offset = 0x4, fixed_abs, tag = 'smem constant byte address 0x4 - core index']
  #allocation1 [shape = 'u32[144,128]{1,0:T(1,128)}', space=vmem, size = 0x12000, scoped, tag = 'internal scratch']
  %s0 = inlined_call_operand.hbm [shape: bf16[512,512], index: 0, kind: input, shape index: {}]
  %s1 = inlined_call_operand.hbm [shape: bf16[512,6272], index: 1, kind: input, shape index: {}]
  %s2 = inlined_call_operand.hbm [shape: f32[1,6272], index: 2, kind: input, shape index: {}]
  %s3 = inlined_call_operand.hbm [shape: bf16[512,6272], index: 3, kind: output, shape index: {}]
  %s4 = sld [smem:[#allocation0]]
  $region57: #{tpu_custom_call.1} parent=0
    _
  %s6 = ssub.s32 1, %s4
  %s7 = scalar_select 0, %s6, %s4
  $region1: #{tpu_custom_call.1} parent=0
    #allocation2 [shape = 'u8[524288]{0}', space=vmem, size = 0x80000, scoped, tag = 'input window, operand 0']
    #allocation3 [shape = 's32[2]{0}', space=sflag, size = 0x8, scoped, tag = 'scoped memory for tpu_custom_call.1']
    #allocation4 [shape = 's32[2]{0}', space=sflag, size = 0x8, scoped, tag = 'scoped memory for tpu_custom_call.1']
    #allocation5 [shape = 'u8[1835008]{0}', space=vmem, size = 0x1c0000, scoped, tag = 'input window, operand 1']
    #allocation6 [shape = 's32[2]{0}', space=sflag, size = 0x8, scoped, tag = 'scoped memory for tpu_custom_call.1']
    #allocation7 [shape = 'u8[7168]{0}', space=vmem, size = 0x1c00, scoped, tag = 'input window, operand 2']
    #allocation8 [shape = 'u8[917504]{0}', space=vmem, size = 0xe0000, scoped, tag = 'output window, operand 0']
    %8 = vsyncpa [#allocation3], 0
    %s9 = scalar_lea.sflag [#allocation3], 1
    %10 = vsyncpa %s9, 0
    %11 = vsyncpa [#allocation6], 0
    %s12 = scalar_lea.sflag [#allocation6], 1
    %13 = vsyncpa %s12, 0
    %14 = vsyncpa [#allocation4], 0
    %s15 = scalar_lea.sflag [#allocation4], 1
    %16 = vsyncpa %s15, 0
    loop: start=0, step=1, limit=16
    $region2: #{tpu_custom_call.1} parent=1 // loop_pre_header
      _
    $region3: #{tpu_custom_call.1} parent=1 // loop_header
      %s18 = sphi 0, %s22
      %p19 = scmp.ge.s32.totalorder %s18, 16
      %s25 = sphi 0, %s37
      %s26 = sphi 0, %s33
      %s27 = sphi 0, %s25
      %s28 = sphi 0, %s26
      %s29 = sphi 0, %s27
      %s30 = sphi 0, %s28
      %s40 = sphi 0, %s42
      %s43 = sphi 0, %s40
      %s44 = sphi 0, %s43
      %s60 = sphi 0, %s44
      %s66 = sphi 0, %s68
      %s69 = sphi 0, %s66
      %s70 = sphi 0, %s69
      %s86 = sphi 0, %s70
      %s92 = sphi 0, %s94
      %s95 = sphi 0, %s92
      %s96 = sphi 0, %s95
      %s112 = sphi 0, %s96
      %s120 = sphi 0, %s122
      %s123 = sphi 0, %s120
      %s124 = sphi 0, %s123
      %s140 = sphi 0, %s124
    $region4: #{tpu_custom_call.1} parent=1 // loop_header_branch
      %21 = sbr.rel (%p19) target = $region8
    $region5: #{tpu_custom_call.1} parent=1 // loop_body
      %s23 = ssub.s32 %s18, 1
      %s24 = ssub.s32 %s18, 2
      %s31 = sadd.s32 1, %s26
      %p32 = scmp.ge.s32.totalorder %s31, 2
      %s33 = scalar_select %p32, 0, %s31
      %s34 = sadd.s32 1, %s25
      %s35 = scalar_select %p32, %s34, %s25
      %p36 = scmp.ge.s32.totalorder %s35, 7
      %s37 = scalar_select %p36, 0, %s35
      %s38 = ssub.s32 %s26, %s33
      %p39 = scmp.eq.s32.totalorder %s38, 0
      %s41 = sadd.s32 %s40, 1
      %s42 = scalar_select %p39, %s40, %s41
      %p45 = pneg %p39
      %p46 = scmp.eq.s32.totalorder %s18, 13
      %p47 = por %p45, %p46
      %p48 = scmp.ne.s32.totalorder %s40, %s43
      %p49 = scmp.eq.s32.totalorder %s18, 0
      %p50 = por %p48, %p49
      %p51 = scmp.ne.s32.totalorder %s40, %s43
      %p52 = scmp.eq.s32.totalorder %s23, 13
      %p53 = por %p51, %p52
      %p54 = scmp.ne.s32.totalorder %s43, %s44
      %p55 = scmp.eq.s32.totalorder %s23, 0
      %p56 = por %p54, %p55
      %p57 = scmp.ne.s32.totalorder %s43, %s44
      %p58 = scmp.eq.s32.totalorder %s24, 13
      %p59 = por %p57, %p58
      %p61 = scmp.ne.s32.totalorder %s44, %s60
      %p62 = scmp.eq.s32.totalorder %s24, 0
      %p63 = por %p61, %p62
      %s64 = ssub.s32 %s25, %s37
      %p65 = scmp.eq.s32.totalorder %s64, 0
      %s67 = sadd.s32 %s66, 1
      %s68 = scalar_select %p65, %s66, %s67
      %p71 = pneg %p65
      %p72 = scmp.eq.s32.totalorder %s18, 13
      %p73 = por %p71, %p72
      %p74 = scmp.ne.s32.totalorder %s66, %s69
      %p75 = scmp.eq.s32.totalorder %s18, 0
      %p76 = por %p74, %p75
      %p77 = scmp.ne.s32.totalorder %s66, %s69
      %p78 = scmp.eq.s32.totalorder %s23, 13
      %p79 = por %p77, %p78
      %p80 = scmp.ne.s32.totalorder %s69, %s70
      %p81 = scmp.eq.s32.totalorder %s23, 0
      %p82 = por %p80, %p81
      %p83 = scmp.ne.s32.totalorder %s69, %s70
      %p84 = scmp.eq.s32.totalorder %s24, 13
      %p85 = por %p83, %p84
      %p87 = scmp.ne.s32.totalorder %s70, %s86
      %p88 = scmp.eq.s32.totalorder %s24, 0
      %p89 = por %p87, %p88
      %s90 = ssub.s32 %s25, %s37
      %p91 = scmp.eq.s32.totalorder %s90, 0
      %s93 = sadd.s32 %s92, 1
      %s94 = scalar_select %p91, %s92, %s93
      %p97 = pneg %p91
      %p98 = scmp.eq.s32.totalorder %s18, 13
      %p99 = por %p97, %p98
      %p100 = scmp.ne.s32.totalorder %s92, %s95
      %p101 = scmp.eq.s32.totalorder %s18, 0
      %p102 = por %p100, %p101
      %p103 = scmp.ne.s32.totalorder %s92, %s95
      %p104 = scmp.eq.s32.totalorder %s23, 13
      %p105 = por %p103, %p104
      %p106 = scmp.ne.s32.totalorder %s95, %s96
      %p107 = scmp.eq.s32.totalorder %s23, 0
      %p108 = por %p106, %p107
      %p109 = scmp.ne.s32.totalorder %s95, %s96
      %p110 = scmp.eq.s32.totalorder %s24, 13
      %p111 = por %p109, %p110
      %p113 = scmp.ne.s32.totalorder %s96, %s112
      %p114 = scmp.eq.s32.totalorder %s24, 0
      %p115 = por %p113, %p114
      %s116 = ssub.s32 %s26, %s33
      %s117 = ssub.s32 %s25, %s37
      %s118 = sor.u32 %s116, %s117
      %p119 = scmp.eq.s32.totalorder %s118, 0
      %s121 = sadd.s32 %s120, 1
      %s122 = scalar_select %p119, %s120, %s121
      %p125 = pneg %p119
      %p126 = scmp.eq.s32.totalorder %s18, 13
      %p127 = por %p125, %p126
      %p128 = scmp.ne.s32.totalorder %s120, %s123
      %p129 = scmp.eq.s32.totalorder %s18, 0
      %p130 = por %p128, %p129
      %p131 = scmp.ne.s32.totalorder %s120, %s123
      %p132 = scmp.eq.s32.totalorder %s23, 13
      %p133 = por %p131, %p132
      %p134 = scmp.ne.s32.totalorder %s123, %s124
      %p135 = scmp.eq.s32.totalorder %s23, 0
      %p136 = por %p134, %p135
      %p137 = scmp.ne.s32.totalorder %s123, %s124
      %p138 = scmp.eq.s32.totalorder %s24, 13
      %p139 = por %p137, %p138
      %p141 = scmp.ne.s32.totalorder %s124, %s140
      %p142 = scmp.eq.s32.totalorder %s24, 0
      %p143 = por %p141, %p142
      %p144 = scmp.le.s32.totalorder 1, %s18
      %p145 = scmp.lt.s32.totalorder %s18, 15
      %p146 = pnand %p144, %p145
      %p147 = pneg %p146
      // Predicated region
      $region9: #{tpu_custom_call.1} parent=5 // pred_check
        _
      $region10: #{tpu_custom_call.1} parent=5 // pred_check_branch
        %149 = sbr.rel (%p146) target = $region12
      $region11: #{tpu_custom_call.1} parent=5 // pred_region
        %s150 = ssub.s32 %s18, 1
      $region12: #{tpu_custom_call.1} parent=5 // pred_fallthru
        _
      %p151 = scmp.lt.s32.totalorder %s18, 14
      // Predicated region
      $region13: #{tpu_custom_call.1} parent=5 // pred_check
        %p152 = pneg %p151
      $region14: #{tpu_custom_call.1} parent=5 // pred_check_branch
        %154 = sbr.rel (%p152) target = $region16
      $region15: #{tpu_custom_call.1} parent=5 // pred_region
        // Predicated region
        $region17: #{tpu_custom_call.1} parent=15 // pred_check
          %p155 = pneg %p50
        $region18: #{tpu_custom_call.1} parent=15 // pred_check_branch
          %157 = sbr.rel (%p155) target = $region20
        $region19: #{tpu_custom_call.1} parent=15 // pred_region
          %s158 = sand.u32 %s40, 1
          %s159 = scalar_lea.sflag [#allocation3], %s158
          %s160 = sand.u32 %s40, 1
          %s161 = smul.addr %s160, 512
          %s162 = scalar_lea.vmem [#allocation2], %s161
          %s163 = smul.u32 32, %s26
          %s165 = ssub.s32 8192, 8192
          %166 = vsyncadd %s159, %s165
          %s167 = smul.addr %s163, 4
          %s168 = smul.addr %s167, 64
          %s169 = scalar_lea.hbm %s0, %s168
          %s170 = sshll.u32 %s162, 4
          %s171 = int_to_ptr.vmem [resolvable:$true] %s170
          %176 = dma.hbm_to_vmem [thread:$0]  %s169, 8192, %s171, %s159, 256, 256, 16
        $region20: #{tpu_custom_call.1} parent=15 // pred_fallthru
          _
        // Predicated region
        $region21: #{tpu_custom_call.1} parent=15 // pred_check
          %p177 = pneg %p76
        $region22: #{tpu_custom_call.1} parent=15 // pred_check_branch
          %179 = sbr.rel (%p177) target = $region24
        $region23: #{tpu_custom_call.1} parent=15 // pred_region
          %s180 = sand.u32 %s18, 1
          %s181 = scalar_lea.sflag [#allocation6], %s180
          %s182 = sand.u32 %s66, 1
          %s183 = smul.addr %s182, 1792
          %s184 = scalar_lea.vmem [#allocation5], %s183
          %s185 = smul.u32 7, %s25
          %s187 = ssub.s32 28672, 28672
          %188 = vsyncadd %s181, %s187
          %s189 = smul.addr %s185, 64
          %s190 = scalar_lea.hbm %s1, %s189
          %s191 = sshll.u32 %s184, 4
          %s192 = int_to_ptr.vmem [resolvable:$true] %s191
          %197 = dma.hbm_to_vmem [thread:$0]  %s190, 28672, %s192, %s181, 3136, 448, 28
        $region24: #{tpu_custom_call.1} parent=15 // pred_fallthru
          _
        // Predicated region
        $region25: #{tpu_custom_call.1} parent=15 // pred_check
          %p198 = pneg %p102
        $region26: #{tpu_custom_call.1} parent=15 // pred_check_branch
          %200 = sbr.rel (%p198) target = $region28
        $region27: #{tpu_custom_call.1} parent=15 // pred_region
          %s201 = sand.u32 %s18, 1
          %s202 = scalar_lea.sflag [#allocation6], %s201
          %s203 = sand.u32 %s92, 1
          %s204 = smul.addr %s203, 7
          %s205 = scalar_lea.vmem [#allocation7], %s204
          %s206 = smul.u32 7, %s25
          %s208 = ssub.s32 112, 112
          %209 = vsyncadd %s202, %s208
          %s210 = smul.addr %s206, 16
          %s211 = scalar_lea.hbm %s2, %s210
          %s213 = sshll.u32 %s205, 4
          %s214 = int_to_ptr.vmem [resolvable:$true] %s213
          %216 = dma.hbm_to_vmem [thread:$0]  %s211, 112, %s214, %s202
        $region28: #{tpu_custom_call.1} parent=15 // pred_fallthru
          _
      $region16: #{tpu_custom_call.1} parent=5 // pred_fallthru
        _
      %p217 = scmp.le.s32.totalorder 1, %s18
      %p218 = scmp.lt.s32.totalorder %s18, 15
      %p219 = pnand %p217, %p218
      %p220 = pneg %p219
      // Predicated region
      $region29: #{tpu_custom_call.1} parent=5 // pred_check
        _
      $region30: #{tpu_custom_call.1} parent=5 // pred_check_branch
        %222 = sbr.rel (%p219) target = $region32
      $region31: #{tpu_custom_call.1} parent=5 // pred_region
        %s223 = ssub.s32 %s18, 1
        %s224 = sand.u32 %s43, 1
        %s225 = scalar_lea.sflag [#allocation3], %s224
        %s226 = sand.u32 %s43, 1
        %s227 = smul.addr %s226, 512
        %s228 = scalar_lea.vmem [#allocation2], %s227
        // Predicated region
        $region33: #{tpu_custom_call.1} parent=31 // pred_check
          %p229 = pneg %p56
        $region34: #{tpu_custom_call.1} parent=31 // pred_check_branch
          %231 = sbr.rel (%p229) target = $region36
        $region35: #{tpu_custom_call.1} parent=31 // pred_region
          %232 = dma.done %s225, 8192
        $region36: #{tpu_custom_call.1} parent=31 // pred_fallthru
          _
        %s233 = sand.u32 %s23, 1
        %s234 = scalar_lea.sflag [#allocation6], %s233
        %s235 = sand.u32 %s69, 1
        %s236 = smul.addr %s235, 1792
        %s237 = scalar_lea.vmem [#allocation5], %s236
        // Predicated region
        $region37: #{tpu_custom_call.1} parent=31 // pred_check
          %p238 = pneg %p82
        $region38: #{tpu_custom_call.1} parent=31 // pred_check_branch
          %240 = sbr.rel (%p238) target = $region40
        $region39: #{tpu_custom_call.1} parent=31 // pred_region
          %241 = dma.done %s234, 28672
        $region40: #{tpu_custom_call.1} parent=31 // pred_fallthru
          _
        %s242 = sand.u32 %s23, 1
        %s243 = scalar_lea.sflag [#allocation6], %s242
        %s244 = sand.u32 %s95, 1
        %s245 = smul.addr %s244, 7
        %s246 = scalar_lea.vmem [#allocation7], %s245
        // Predicated region
        $region41: #{tpu_custom_call.1} parent=31 // pred_check
          %p247 = pneg %p108
        $region42: #{tpu_custom_call.1} parent=31 // pred_check_branch
          %249 = sbr.rel (%p247) target = $region44
        $region43: #{tpu_custom_call.1} parent=31 // pred_region
          %250 = dma.done %s243, 112
        $region44: #{tpu_custom_call.1} parent=31 // pred_fallthru
          _
        %s251 = sand.u32 %s43, 1
        %s252 = scalar_lea.sflag [#allocation3], %s251
        %s253 = sand.u32 %s43, 1
        %s254 = smul.addr %s253, 512
        %s255 = scalar_lea.vmem [#allocation2], %s254
        %p256 = pneg %p56
        %p257 = pneg %p53
        %s258 = sand.u32 %s23, 1
        %s259 = scalar_lea.sflag [#allocation6], %s258
        %s260 = sand.u32 %s69, 1
        %s261 = smul.addr %s260, 1792
        %s262 = scalar_lea.vmem [#allocation5], %s261
        %p263 = pneg %p82
        %p264 = pneg %p79
        %s265 = sand.u32 %s23, 1
        %s266 = scalar_lea.sflag [#allocation6], %s265
        %s267 = sand.u32 %s95, 1
        %s268 = smul.addr %s267, 7
        %s269 = scalar_lea.vmem [#allocation7], %s268
        %p270 = pneg %p108
        %p271 = pneg %p105
        %p272 = pneg %p136
        %p273 = pneg %p133
        %s274 = sand.u32 %s123, 1
        %s275 = scalar_lea.sflag [#allocation4], %s274
        %s276 = sand.u32 %s123, 1
        %s277 = smul.addr %s276, 896
        %s278 = scalar_lea.vmem [#allocation8], %s277
        %s279 = smul.u32 32, %s28
        %s280 = smul.u32 7, %s27
        %s281 = smul.u32 7, %s27
        %s282 = smul.u32 32, %s28
        %s283 = smul.u32 7, %s27
        %v285 = vld [vmem:[%s228] sm:$0xff]
        %v286 = vld [vmem:[%s228 + $0x8] sm:$0xff]
        %v287 = vld [vmem:[%s228 + $0x10] sm:$0xff]
        %v288 = vld [vmem:[%s228 + $0x18] sm:$0xff]
        %v289 = vld [vmem:[%s228 + $0x20] sm:$0xff]
        %v290 = vld [vmem:[%s228 + $0x28] sm:$0xff]
        %v291 = vld [vmem:[%s228 + $0x30] sm:$0xff]
        %v292 = vld [vmem:[%s228 + $0x38] sm:$0xff]
        %v293 = vld [vmem:[%s228 + $0x40] sm:$0xff]
        %v294 = vld [vmem:[%s228 + $0x48] sm:$0xff]
        %v295 = vld [vmem:[%s228 + $0x50] sm:$0xff]
        %v296 = vld [vmem:[%s228 + $0x58] sm:$0xff]
        %v297 = vld [vmem:[%s228 + $0x60] sm:$0xff]
        %v298 = vld [vmem:[%s228 + $0x68] sm:$0xff]
        %v299 = vld [vmem:[%s228 + $0x70] sm:$0xff]
        %v300 = vld [vmem:[%s228 + $0x78] sm:$0xff]
        %v301 = vld [vmem:[%s228 + $0x80] sm:$0xff]
        %v302 = vld [vmem:[%s228 + $0x88] sm:$0xff]
        %v303 = vld [vmem:[%s228 + $0x90] sm:$0xff]
        %v304 = vld [vmem:[%s228 + $0x98] sm:$0xff]
        %v305 = vld [vmem:[%s228 + $0xa0] sm:$0xff]
        %v306 = vld [vmem:[%s228 + $0xa8] sm:$0xff]
        %v307 = vld [vmem:[%s228 + $0xb0] sm:$0xff]
        %v308 = vld [vmem:[%s228 + $0xb8] sm:$0xff]
        %v309 = vld [vmem:[%s228 + $0xc0] sm:$0xff]
        %v310 = vld [vmem:[%s228 + $0xc8] sm:$0xff]
        %v311 = vld [vmem:[%s228 + $0xd0] sm:$0xff]
        %v312 = vld [vmem:[%s228 + $0xd8] sm:$0xff]
        %v313 = vld [vmem:[%s228 + $0xe0] sm:$0xff]
        %v314 = vld [vmem:[%s228 + $0xe8] sm:$0xff]
        %v315 = vld [vmem:[%s228 + $0xf0] sm:$0xff]
        %v316 = vld [vmem:[%s228 + $0xf8] sm:$0xff]
        %v317 = vld [vmem:[%s228 + $0x100] sm:$0xff]
        %v318 = vld [vmem:[%s228 + $0x108] sm:$0xff]
        %v319 = vld [vmem:[%s228 + $0x110] sm:$0xff]
        %v320 = vld [vmem:[%s228 + $0x118] sm:$0xff]
        %v321 = vld [vmem:[%s228 + $0x120] sm:$0xff]
        %v322 = vld [vmem:[%s228 + $0x128] sm:$0xff]
        %v323 = vld [vmem:[%s228 + $0x130] sm:$0xff]
        %v324 = vld [vmem:[%s228 + $0x138] sm:$0xff]
        %v325 = vld [vmem:[%s228 + $0x140] sm:$0xff]
        %v326 = vld [vmem:[%s228 + $0x148] sm:$0xff]
        %v327 = vld [vmem:[%s228 + $0x150] sm:$0xff]
        %v328 = vld [vmem:[%s228 + $0x158] sm:$0xff]
        %v329 = vld [vmem:[%s228 + $0x160] sm:$0xff]
        %v330 = vld [vmem:[%s228 + $0x168] sm:$0xff]
        %v331 = vld [vmem:[%s228 + $0x170] sm:$0xff]
        %v332 = vld [vmem:[%s228 + $0x178] sm:$0xff]
        %v333 = vld [vmem:[%s228 + $0x180] sm:$0xff]
        %v334 = vld [vmem:[%s228 + $0x188] sm:$0xff]
        %v335 = vld [vmem:[%s228 + $0x190] sm:$0xff]
        %v336 = vld [vmem:[%s228 + $0x198] sm:$0xff]
        %v337 = vld [vmem:[%s228 + $0x1a0] sm:$0xff]
        %v338 = vld [vmem:[%s228 + $0x1a8] sm:$0xff]
        %v339 = vld [vmem:[%s228 + $0x1b0] sm:$0xff]
        %v340 = vld [vmem:[%s228 + $0x1b8] sm:$0xff]
        %v341 = vld [vmem:[%s228 + $0x1c0] sm:$0xff]
        %v342 = vld [vmem:[%s228 + $0x1c8] sm:$0xff]
        %v343 = vld [vmem:[%s228 + $0x1d0] sm:$0xff]
        %v344 = vld [vmem:[%s228 + $0x1d8] sm:$0xff]
        %v345 = vld [vmem:[%s228 + $0x1e0] sm:$0xff]
        %v346 = vld [vmem:[%s228 + $0x1e8] sm:$0xff]
        %v347 = vld [vmem:[%s228 + $0x1f0] sm:$0xff]
        %v348 = vld [vmem:[%s228 + $0x1f8] sm:$0xff]
        %v349 = vld [vmem:[%s237] sm:$0xff]
        %v350 = vld [vmem:[%s237 + $0x8] sm:$0xff]
        %v351 = vld [vmem:[%s237 + $0x10] sm:$0xff]
        %v352 = vld [vmem:[%s237 + $0x18] sm:$0xf]
        %v353 = vld [vmem:[%s237 + $0x1c] sm:$0xff]
        %v354 = vld [vmem:[%s237 + $0x24] sm:$0xff]
        %v355 = vld [vmem:[%s237 + $0x2c] sm:$0xff]
        %v356 = vld [vmem:[%s237 + $0x34] sm:$0xf]
        %v357 = vld [vmem:[%s237 + $0x38] sm:$0xff]
        %v358 = vld [vmem:[%s237 + $0x40] sm:$0xff]
        %v359 = vld [vmem:[%s237 + $0x48] sm:$0xff]
        %v360 = vld [vmem:[%s237 + $0x50] sm:$0xf]
        %v361 = vld [vmem:[%s237 + $0x54] sm:$0xff]
        %v362 = vld [vmem:[%s237 + $0x5c] sm:$0xff]
        %v363 = vld [vmem:[%s237 + $0x64] sm:$0xff]
        %v364 = vld [vmem:[%s237 + $0x6c] sm:$0xf]
        %v365 = vld [vmem:[%s237 + $0x70] sm:$0xff]
        %v366 = vld [vmem:[%s237 + $0x78] sm:$0xff]
        %v367 = vld [vmem:[%s237 + $0x80] sm:$0xff]
        %v368 = vld [vmem:[%s237 + $0x88] sm:$0xf]
        %v369 = vld [vmem:[%s237 + $0x8c] sm:$0xff]
        %v370 = vld [vmem:[%s237 + $0x94] sm:$0xff]
        %v371 = vld [vmem:[%s237 + $0x9c] sm:$0xff]
        %v372 = vld [vmem:[%s237 + $0xa4] sm:$0xf]
        %v373 = vld [vmem:[%s237 + $0xa8] sm:$0xff]
        %v374 = vld [vmem:[%s237 + $0xb0] sm:$0xff]
        %v375 = vld [vmem:[%s237 + $0xb8] sm:$0xff]
        %v376 = vld [vmem:[%s237 + $0xc0] sm:$0xf]
        %v377 = vld [vmem:[%s237 + $0xc4] sm:$0xff]
        %v378 = vld [vmem:[%s237 + $0xcc] sm:$0xff]
        %v379 = vld [vmem:[%s237 + $0xd4] sm:$0xff]
        %v380 = vld [vmem:[%s237 + $0xdc] sm:$0xf]
        %v381 = vld [vmem:[%s237 + $0xe0] sm:$0xff]
        %v382 = vld [vmem:[%s237 + $0xe8] sm:$0xff]
        %v383 = vld [vmem:[%s237 + $0xf0] sm:$0xff]
        %v384 = vld [vmem:[%s237 + $0xf8] sm:$0xf]
        %v385 = vld [vmem:[%s237 + $0xfc] sm:$0xff]
        %v386 = vld [vmem:[%s237 + $0x104] sm:$0xff]
        %v387 = vld [vmem:[%s237 + $0x10c] sm:$0xff]
        %v388 = vld [vmem:[%s237 + $0x114] sm:$0xf]
        %v389 = vld [vmem:[%s237 + $0x118] sm:$0xff]
        %v390 = vld [vmem:[%s237 + $0x120] sm:$0xff]
        %v391 = vld [vmem:[%s237 + $0x128] sm:$0xff]
        %v392 = vld [vmem:[%s237 + $0x130] sm:$0xf]
        %v393 = vld [vmem:[%s237 + $0x134] sm:$0xff]
        %v394 = vld [vmem:[%s237 + $0x13c] sm:$0xff]
        %v395 = vld [vmem:[%s237 + $0x144] sm:$0xff]
        %v396 = vld [vmem:[%s237 + $0x14c] sm:$0xf]
        %v397 = vld [vmem:[%s237 + $0x150] sm:$0xff]
        %v398 = vld [vmem:[%s237 + $0x158] sm:$0xff]
        %v399 = vld [vmem:[%s237 + $0x160] sm:$0xff]
        %v400 = vld [vmem:[%s237 + $0x168] sm:$0xf]
        %v401 = vld [vmem:[%s237 + $0x16c] sm:$0xff]
        %v402 = vld [vmem:[%s237 + $0x174] sm:$0xff]
        %v403 = vld [vmem:[%s237 + $0x17c] sm:$0xff]
        %v404 = vld [vmem:[%s237 + $0x184] sm:$0xf]
        %v405 = vld [vmem:[%s237 + $0x188] sm:$0xff]
        %v406 = vld [vmem:[%s237 + $0x190] sm:$0xff]
        %v407 = vld [vmem:[%s237 + $0x198] sm:$0xff]
        %v408 = vld [vmem:[%s237 + $0x1a0] sm:$0xf]
        %v409 = vld [vmem:[%s237 + $0x1a4] sm:$0xff]
        %v410 = vld [vmem:[%s237 + $0x1ac] sm:$0xff]
        %v411 = vld [vmem:[%s237 + $0x1b4] sm:$0xff]
        %v412 = vld [vmem:[%s237 + $0x1bc] sm:$0xf]
        %v413 = vld [vmem:[%s237 + $0x1c0] sm:$0xff]
        %v414 = vld [vmem:[%s237 + $0x1c8] sm:$0xff]
        %v415 = vld [vmem:[%s237 + $0x1d0] sm:$0xff]
        %v416 = vld [vmem:[%s237 + $0x1d8] sm:$0xf]
        %v417 = vld [vmem:[%s237 + $0x1dc] sm:$0xff]
        %v418 = vld [vmem:[%s237 + $0x1e4] sm:$0xff]
        %v419 = vld [vmem:[%s237 + $0x1ec] sm:$0xff]
        %v420 = vld [vmem:[%s237 + $0x1f4] sm:$0xf]
        %v421 = vld [vmem:[%s237 + $0x1f8] sm:$0xff]
        %v422 = vld [vmem:[%s237 + $0x200] sm:$0xff]
        %v423 = vld [vmem:[%s237 + $0x208] sm:$0xff]
        %v424 = vld [vmem:[%s237 + $0x210] sm:$0xf]
        %v425 = vld [vmem:[%s237 + $0x214] sm:$0xff]
        %v426 = vld [vmem:[%s237 + $0x21c] sm:$0xff]
        %v427 = vld [vmem:[%s237 + $0x224] sm:$0xff]
        %v428 = vld [vmem:[%s237 + $0x22c] sm:$0xf]
        %v429 = vld [vmem:[%s237 + $0x230] sm:$0xff]
        %v430 = vld [vmem:[%s237 + $0x238] sm:$0xff]
        %v431 = vld [vmem:[%s237 + $0x240] sm:$0xff]
        %v432 = vld [vmem:[%s237 + $0x248] sm:$0xf]
        %v433 = vld [vmem:[%s237 + $0x24c] sm:$0xff]
        %v434 = vld [vmem:[%s237 + $0x254] sm:$0xff]
        %v435 = vld [vmem:[%s237 + $0x25c] sm:$0xff]
        %v436 = vld [vmem:[%s237 + $0x264] sm:$0xf]
        %v437 = vld [vmem:[%s237 + $0x268] sm:$0xff]
        %v438 = vld [vmem:[%s237 + $0x270] sm:$0xff]
        %v439 = vld [vmem:[%s237 + $0x278] sm:$0xff]
        %v440 = vld [vmem:[%s237 + $0x280] sm:$0xf]
        %v441 = vld [vmem:[%s237 + $0x284] sm:$0xff]
        %v442 = vld [vmem:[%s237 + $0x28c] sm:$0xff]
        %v443 = vld [vmem:[%s237 + $0x294] sm:$0xff]
        %v444 = vld [vmem:[%s237 + $0x29c] sm:$0xf]
        %v445 = vld [vmem:[%s237 + $0x2a0] sm:$0xff]
        %v446 = vld [vmem:[%s237 + $0x2a8] sm:$0xff]
        %v447 = vld [vmem:[%s237 + $0x2b0] sm:$0xff]
        %v448 = vld [vmem:[%s237 + $0x2b8] sm:$0xf]
        %v449 = vld [vmem:[%s237 + $0x2bc] sm:$0xff]
        %v450 = vld [vmem:[%s237 + $0x2c4] sm:$0xff]
        %v451 = vld [vmem:[%s237 + $0x2cc] sm:$0xff]
        %v452 = vld [vmem:[%s237 + $0x2d4] sm:$0xf]
        %v453 = vld [vmem:[%s237 + $0x2d8] sm:$0xff]
        %v454 = vld [vmem:[%s237 + $0x2e0] sm:$0xff]
        %v455 = vld [vmem:[%s237 + $0x2e8] sm:$0xff]
        %v456 = vld [vmem:[%s237 + $0x2f0] sm:$0xf]
        %v457 = vld [vmem:[%s237 + $0x2f4] sm:$0xff]
        %v458 = vld [vmem:[%s237 + $0x2fc] sm:$0xff]
        %v459 = vld [vmem:[%s237 + $0x304] sm:$0xff]
        %v460 = vld [vmem:[%s237 + $0x30c] sm:$0xf]
        %v461 = vld [vmem:[%s237 + $0x310] sm:$0xff]
        %v462 = vld [vmem:[%s237 + $0x318] sm:$0xff]
        %v463 = vld [vmem:[%s237 + $0x320] sm:$0xff]
        %v464 = vld [vmem:[%s237 + $0x328] sm:$0xf]
        %v465 = vld [vmem:[%s237 + $0x32c] sm:$0xff]
        %v466 = vld [vmem:[%s237 + $0x334] sm:$0xff]
        %v467 = vld [vmem:[%s237 + $0x33c] sm:$0xff]
        %v468 = vld [vmem:[%s237 + $0x344] sm:$0xf]
        %v469 = vld [vmem:[%s237 + $0x348] sm:$0xff]
        %v470 = vld [vmem:[%s237 + $0x350] sm:$0xff]
        %v471 = vld [vmem:[%s237 + $0x358] sm:$0xff]
        %v472 = vld [vmem:[%s237 + $0x360] sm:$0xf]
        %v473 = vld [vmem:[%s237 + $0x364] sm:$0xff]
        %v474 = vld [vmem:[%s237 + $0x36c] sm:$0xff]
        %v475 = vld [vmem:[%s237 + $0x374] sm:$0xff]
        %v476 = vld [vmem:[%s237 + $0x37c] sm:$0xf]
        %v477 = vld [vmem:[%s237 + $0x380] sm:$0xff]
        %v478 = vld [vmem:[%s237 + $0x388] sm:$0xff]
        %v479 = vld [vmem:[%s237 + $0x390] sm:$0xff]
        %v480 = vld [vmem:[%s237 + $0x398] sm:$0xf]
        %v481 = vld [vmem:[%s237 + $0x39c] sm:$0xff]
        %v482 = vld [vmem:[%s237 + $0x3a4] sm:$0xff]
        %v483 = vld [vmem:[%s237 + $0x3ac] sm:$0xff]
        %v484 = vld [vmem:[%s237 + $0x3b4] sm:$0xf]
        %v485 = vld [vmem:[%s237 + $0x3b8] sm:$0xff]
        %v486 = vld [vmem:[%s237 + $0x3c0] sm:$0xff]
        %v487 = vld [vmem:[%s237 + $0x3c8] sm:$0xff]
        %v488 = vld [vmem:[%s237 + $0x3d0] sm:$0xf]
        %v489 = vld [vmem:[%s237 + $0x3d4] sm:$0xff]
        %v490 = vld [vmem:[%s237 + $0x3dc] sm:$0xff]
        %v491 = vld [vmem:[%s237 + $0x3e4] sm:$0xff]
        %v492 = vld [vmem:[%s237 + $0x3ec] sm:$0xf]
        %v493 = vld [vmem:[%s237 + $0x3f0] sm:$0xff]
        %v494 = vld [vmem:[%s237 + $0x3f8] sm:$0xff]
        %v495 = vld [vmem:[%s237 + $0x400] sm:$0xff]
        %v496 = vld [vmem:[%s237 + $0x408] sm:$0xf]
        %v497 = vld [vmem:[%s237 + $0x40c] sm:$0xff]
        %v498 = vld [vmem:[%s237 + $0x414] sm:$0xff]
        %v499 = vld [vmem:[%s237 + $0x41c] sm:$0xff]
        %v500 = vld [vmem:[%s237 + $0x424] sm:$0xf]
        %v501 = vld [vmem:[%s237 + $0x428] sm:$0xff]
        %v502 = vld [vmem:[%s237 + $0x430] sm:$0xff]
        %v503 = vld [vmem:[%s237 + $0x438] sm:$0xff]
        %v504 = vld [vmem:[%s237 + $0x440] sm:$0xf]
        %v505 = vld [vmem:[%s237 + $0x444] sm:$0xff]
        %v506 = vld [vmem:[%s237 + $0x44c] sm:$0xff]
        %v507 = vld [vmem:[%s237 + $0x454] sm:$0xff]
        %v508 = vld [vmem:[%s237 + $0x45c] sm:$0xf]
        %v509 = vld [vmem:[%s237 + $0x460] sm:$0xff]
        %v510 = vld [vmem:[%s237 + $0x468] sm:$0xff]
        %v511 = vld [vmem:[%s237 + $0x470] sm:$0xff]
        %v512 = vld [vmem:[%s237 + $0x478] sm:$0xf]
        %v513 = vld [vmem:[%s237 + $0x47c] sm:$0xff]
        %v514 = vld [vmem:[%s237 + $0x484] sm:$0xff]
        %v515 = vld [vmem:[%s237 + $0x48c] sm:$0xff]
        %v516 = vld [vmem:[%s237 + $0x494] sm:$0xf]
        %v517 = vld [vmem:[%s237 + $0x498] sm:$0xff]
        %v518 = vld [vmem:[%s237 + $0x4a0] sm:$0xff]
        %v519 = vld [vmem:[%s237 + $0x4a8] sm:$0xff]
        %v520 = vld [vmem:[%s237 + $0x4b0] sm:$0xf]
        %v521 = vld [vmem:[%s237 + $0x4b4] sm:$0xff]
        %v522 = vld [vmem:[%s237 + $0x4bc] sm:$0xff]
        %v523 = vld [vmem:[%s237 + $0x4c4] sm:$0xff]
        %v524 = vld [vmem:[%s237 + $0x4cc] sm:$0xf]
        %v525 = vld [vmem:[%s237 + $0x4d0] sm:$0xff]
        %v526 = vld [vmem:[%s237 + $0x4d8] sm:$0xff]
        %v527 = vld [vmem:[%s237 + $0x4e0] sm:$0xff]
        %v528 = vld [vmem:[%s237 + $0x4e8] sm:$0xf]
        %v529 = vld [vmem:[%s237 + $0x4ec] sm:$0xff]
        %v530 = vld [vmem:[%s237 + $0x4f4] sm:$0xff]
        %v531 = vld [vmem:[%s237 + $0x4fc] sm:$0xff]
        %v532 = vld [vmem:[%s237 + $0x504] sm:$0xf]
        %v533 = vld [vmem:[%s237 + $0x508] sm:$0xff]
        %v534 = vld [vmem:[%s237 + $0x510] sm:$0xff]
        %v535 = vld [vmem:[%s237 + $0x518] sm:$0xff]
        %v536 = vld [vmem:[%s237 + $0x520] sm:$0xf]
        %v537 = vld [vmem:[%s237 + $0x524] sm:$0xff]
        %v538 = vld [vmem:[%s237 + $0x52c] sm:$0xff]
        %v539 = vld [vmem:[%s237 + $0x534] sm:$0xff]
        %v540 = vld [vmem:[%s237 + $0x53c] sm:$0xf]
        %v541 = vld [vmem:[%s237 + $0x540] sm:$0xff]
        %v542 = vld [vmem:[%s237 + $0x548] sm:$0xff]
        %v543 = vld [vmem:[%s237 + $0x550] sm:$0xff]
        %v544 = vld [vmem:[%s237 + $0x558] sm:$0xf]
        %v545 = vld [vmem:[%s237 + $0x55c] sm:$0xff]
        %v546 = vld [vmem:[%s237 + $0x564] sm:$0xff]
        %v547 = vld [vmem:[%s237 + $0x56c] sm:$0xff]
        %v548 = vld [vmem:[%s237 + $0x574] sm:$0xf]
        %v549 = vld [vmem:[%s237 + $0x578] sm:$0xff]
        %v550 = vld [vmem:[%s237 + $0x580] sm:$0xff]
        %v551 = vld [vmem:[%s237 + $0x588] sm:$0xff]
        %v552 = vld [vmem:[%s237 + $0x590] sm:$0xf]
        %v553 = vld [vmem:[%s237 + $0x594] sm:$0xff]
        %v554 = vld [vmem:[%s237 + $0x59c] sm:$0xff]
        %v555 = vld [vmem:[%s237 + $0x5a4] sm:$0xff]
        %v556 = vld [vmem:[%s237 + $0x5ac] sm:$0xf]
        %v557 = vld [vmem:[%s237 + $0x5b0] sm:$0xff]
        %v558 = vld [vmem:[%s237 + $0x5b8] sm:$0xff]
        %v559 = vld [vmem:[%s237 + $0x5c0] sm:$0xff]
        %v560 = vld [vmem:[%s237 + $0x5c8] sm:$0xf]
        %v561 = vld [vmem:[%s237 + $0x5cc] sm:$0xff]
        %v562 = vld [vmem:[%s237 + $0x5d4] sm:$0xff]
        %v563 = vld [vmem:[%s237 + $0x5dc] sm:$0xff]
        %v564 = vld [vmem:[%s237 + $0x5e4] sm:$0xf]
        %v565 = vld [vmem:[%s237 + $0x5e8] sm:$0xff]
        %v566 = vld [vmem:[%s237 + $0x5f0] sm:$0xff]
        %v567 = vld [vmem:[%s237 + $0x5f8] sm:$0xff]
        %v568 = vld [vmem:[%s237 + $0x600] sm:$0xf]
        %v569 = vld [vmem:[%s237 + $0x604] sm:$0xff]
        %v570 = vld [vmem:[%s237 + $0x60c] sm:$0xff]
        %v571 = vld [vmem:[%s237 + $0x614] sm:$0xff]
        %v572 = vld [vmem:[%s237 + $0x61c] sm:$0xf]
        %v573 = vld [vmem:[%s237 + $0x620] sm:$0xff]
        %v574 = vld [vmem:[%s237 + $0x628] sm:$0xff]
        %v575 = vld [vmem:[%s237 + $0x630] sm:$0xff]
        %v576 = vld [vmem:[%s237 + $0x638] sm:$0xf]
        %v577 = vld [vmem:[%s237 + $0x63c] sm:$0xff]
        %v578 = vld [vmem:[%s237 + $0x644] sm:$0xff]
        %v579 = vld [vmem:[%s237 + $0x64c] sm:$0xff]
        %v580 = vld [vmem:[%s237 + $0x654] sm:$0xf]
        %v581 = vld [vmem:[%s237 + $0x658] sm:$0xff]
        %v582 = vld [vmem:[%s237 + $0x660] sm:$0xff]
        %v583 = vld [vmem:[%s237 + $0x668] sm:$0xff]
        %v584 = vld [vmem:[%s237 + $0x670] sm:$0xf]
        %v585 = vld [vmem:[%s237 + $0x674] sm:$0xff]
        %v586 = vld [vmem:[%s237 + $0x67c] sm:$0xff]
        %v587 = vld [vmem:[%s237 + $0x684] sm:$0xff]
        %v588 = vld [vmem:[%s237 + $0x68c] sm:$0xf]
        %v589 = vld [vmem:[%s237 + $0x690] sm:$0xff]
        %v590 = vld [vmem:[%s237 + $0x698] sm:$0xff]
        %v591 = vld [vmem:[%s237 + $0x6a0] sm:$0xff]
        %v592 = vld [vmem:[%s237 + $0x6a8] sm:$0xf]
        %v593 = vld [vmem:[%s237 + $0x6ac] sm:$0xff]
        %v594 = vld [vmem:[%s237 + $0x6b4] sm:$0xff]
        %v595 = vld [vmem:[%s237 + $0x6bc] sm:$0xff]
        %v596 = vld [vmem:[%s237 + $0x6c4] sm:$0xf]
        %v597 = vld [vmem:[%s237 + $0x6c8] sm:$0xff]
        %v598 = vld [vmem:[%s237 + $0x6d0] sm:$0xff]
        %v599 = vld [vmem:[%s237 + $0x6d8] sm:$0xff]
        %v600 = vld [vmem:[%s237 + $0x6e0] sm:$0xf]
        %v601 = vld [vmem:[%s237 + $0x6e4] sm:$0xff]
        %v602 = vld [vmem:[%s237 + $0x6ec] sm:$0xff]
        %v603 = vld [vmem:[%s237 + $0x6f4] sm:$0xff]
        %v604 = vld [vmem:[%s237 + $0x6fc] sm:$0xf]
        %v605 = vld [vmem:[%s246] sm:$0xff]
        %v607 = vlaneseq
        %v608 = vshrl.u32 %v607, 7
        %v609 = vsub.s32 0, %v608
        %v610 = vrot.slane %v605, %v609
        %v611 = vlaneseq
        %v612 = vshrl.u32 %v611, 7
        %v613 = vsub.s32 1, %v612
        %v614 = vrot.slane %v605, %v613
        %v615 = vlaneseq
        %v616 = vshrl.u32 %v615, 7
        %v617 = vsub.s32 2, %v616
        %v618 = vrot.slane %v605, %v617
        %v619 = vlaneseq
        %v620 = vshrl.u32 %v619, 7
        %v621 = vsub.s32 3, %v620
        %v622 = vrot.slane %v605, %v621
        %v623 = vlaneseq
        %v624 = vshrl.u32 %v623, 7
        %v625 = vsub.s32 4, %v624
        %v626 = vrot.slane %v605, %v625
        %v627 = vlaneseq
        %v628 = vshrl.u32 %v627, 7
        %v629 = vsub.s32 5, %v628
        %v630 = vrot.slane %v605, %v629
        %v631 = vlaneseq
        %v632 = vshrl.u32 %v631, 7
        %v633 = vsub.s32 6, %v632
        %v634 = vrot.slane %v605, %v633
        %v706 = vunpack.c.l.b16 %v285
        %v707 = vunpack.c.h.b16 %v285
        %v708 = vunpack.c.l.b16 %v286
        %v709 = vunpack.c.h.b16 %v286
        %v710 = vunpack.c.l.b16 %v287
        %v711 = vunpack.c.h.b16 %v287
        %v712 = vunpack.c.l.b16 %v288
        %v713 = vunpack.c.h.b16 %v288
        %v714 = vunpack.c.l.b16 %v289
        %v715 = vunpack.c.h.b16 %v289
        %v716 = vunpack.c.l.b16 %v290
        %v717 = vunpack.c.h.b16 %v290
        %v718 = vunpack.c.l.b16 %v291
        %v719 = vunpack.c.h.b16 %v291
        %v720 = vunpack.c.l.b16 %v292
        %v721 = vunpack.c.h.b16 %v292
        %v722 = vunpack.c.l.b16 %v293
        %v723 = vunpack.c.h.b16 %v293
        %v724 = vunpack.c.l.b16 %v294
        %v725 = vunpack.c.h.b16 %v294
        %v726 = vunpack.c.l.b16 %v295
        %v727 = vunpack.c.h.b16 %v295
        %v728 = vunpack.c.l.b16 %v296
        %v729 = vunpack.c.h.b16 %v296
        %v730 = vunpack.c.l.b16 %v297
        %v731 = vunpack.c.h.b16 %v297
        %v732 = vunpack.c.l.b16 %v298
        %v733 = vunpack.c.h.b16 %v298
        %v734 = vunpack.c.l.b16 %v299
        %v735 = vunpack.c.h.b16 %v299
        %v736 = vunpack.c.l.b16 %v300
        %v737 = vunpack.c.h.b16 %v300
        %v738 = vunpack.c.l.b16 %v301
        %v739 = vunpack.c.h.b16 %v301
        %v740 = vunpack.c.l.b16 %v302
        %v741 = vunpack.c.h.b16 %v302
        %v742 = vunpack.c.l.b16 %v303
        %v743 = vunpack.c.h.b16 %v303
        %v744 = vunpack.c.l.b16 %v304
        %v745 = vunpack.c.h.b16 %v304
        %v746 = vunpack.c.l.b16 %v305
        %v747 = vunpack.c.h.b16 %v305
        %v748 = vunpack.c.l.b16 %v306
        %v749 = vunpack.c.h.b16 %v306
        %v750 = vunpack.c.l.b16 %v307
        %v751 = vunpack.c.h.b16 %v307
        %v752 = vunpack.c.l.b16 %v308
        %v753 = vunpack.c.h.b16 %v308
        %v754 = vunpack.c.l.b16 %v309
        %v755 = vunpack.c.h.b16 %v309
        %v756 = vunpack.c.l.b16 %v310
        %v757 = vunpack.c.h.b16 %v310
        %v758 = vunpack.c.l.b16 %v311
        %v759 = vunpack.c.h.b16 %v311
        %v760 = vunpack.c.l.b16 %v312
        %v761 = vunpack.c.h.b16 %v312
        %v762 = vunpack.c.l.b16 %v313
        %v763 = vunpack.c.h.b16 %v313
        %v764 = vunpack.c.l.b16 %v314
        %v765 = vunpack.c.h.b16 %v314
        %v766 = vunpack.c.l.b16 %v315
        %v767 = vunpack.c.h.b16 %v315
        %v768 = vunpack.c.l.b16 %v316
        %v769 = vunpack.c.h.b16 %v316
        %v770 = vunpack.c.l.b16 %v317
        %v771 = vunpack.c.h.b16 %v317
        %v772 = vunpack.c.l.b16 %v318
        %v773 = vunpack.c.h.b16 %v318
        %v774 = vunpack.c.l.b16 %v319
        %v775 = vunpack.c.h.b16 %v319
        %v776 = vunpack.c.l.b16 %v320
        %v777 = vunpack.c.h.b16 %v320
        %v778 = vunpack.c.l.b16 %v321
        %v779 = vunpack.c.h.b16 %v321
        %v780 = vunpack.c.l.b16 %v322
        %v781 = vunpack.c.h.b16 %v322
        %v782 = vunpack.c.l.b16 %v323
        %v783 = vunpack.c.h.b16 %v323
        %v784 = vunpack.c.l.b16 %v324
        %v785 = vunpack.c.h.b16 %v324
        %v786 = vunpack.c.l.b16 %v325
        %v787 = vunpack.c.h.b16 %v325
        %v788 = vunpack.c.l.b16 %v326
        %v789 = vunpack.c.h.b16 %v326
        %v790 = vunpack.c.l.b16 %v327
        %v791 = vunpack.c.h.b16 %v327
        %v792 = vunpack.c.l.b16 %v328
        %v793 = vunpack.c.h.b16 %v328
        %v794 = vunpack.c.l.b16 %v329
        %v795 = vunpack.c.h.b16 %v329
        %v796 = vunpack.c.l.b16 %v330
        %v797 = vunpack.c.h.b16 %v330
        %v798 = vunpack.c.l.b16 %v331
        %v799 = vunpack.c.h.b16 %v331
        %v800 = vunpack.c.l.b16 %v332
        %v801 = vunpack.c.h.b16 %v332
        %v802 = vunpack.c.l.b16 %v333
        %v803 = vunpack.c.h.b16 %v333
        %v804 = vunpack.c.l.b16 %v334
        %v805 = vunpack.c.h.b16 %v334
        %v806 = vunpack.c.l.b16 %v335
        %v807 = vunpack.c.h.b16 %v335
        %v808 = vunpack.c.l.b16 %v336
        %v809 = vunpack.c.h.b16 %v336
        %v810 = vunpack.c.l.b16 %v337
        %v811 = vunpack.c.h.b16 %v337
        %v812 = vunpack.c.l.b16 %v338
        %v813 = vunpack.c.h.b16 %v338
        %v814 = vunpack.c.l.b16 %v339
        %v815 = vunpack.c.h.b16 %v339
        %v816 = vunpack.c.l.b16 %v340
        %v817 = vunpack.c.h.b16 %v340
        %v818 = vunpack.c.l.b16 %v341
        %v819 = vunpack.c.h.b16 %v341
        %v820 = vunpack.c.l.b16 %v342
        %v821 = vunpack.c.h.b16 %v342
        %v822 = vunpack.c.l.b16 %v343
        %v823 = vunpack.c.h.b16 %v343
        %v824 = vunpack.c.l.b16 %v344
        %v825 = vunpack.c.h.b16 %v344
        %v826 = vunpack.c.l.b16 %v345
        %v827 = vunpack.c.h.b16 %v345
        %v828 = vunpack.c.l.b16 %v346
        %v829 = vunpack.c.h.b16 %v346
        %v830 = vunpack.c.l.b16 %v347
        %v831 = vunpack.c.h.b16 %v347
        %v832 = vunpack.c.l.b16 %v348
        %v833 = vunpack.c.h.b16 %v348
        %v834 = vpack.c.b16 %v710, %v706
        %v835 = vpack.c.b16 %v711, %v707
        %v836 = vpack.c.b16 %v712, %v708
        %v837 = vpack.c.b16 %v713, %v709
        %v838 = vpack.c.b16 %v718, %v714
        %v839 = vpack.c.b16 %v719, %v715
        %v840 = vpack.c.b16 %v720, %v716
        %v841 = vpack.c.b16 %v721, %v717
        %v842 = vpack.c.b16 %v726, %v722
        %v843 = vpack.c.b16 %v727, %v723
        %v844 = vpack.c.b16 %v728, %v724
        %v845 = vpack.c.b16 %v729, %v725
        %v846 = vpack.c.b16 %v734, %v730
        %v847 = vpack.c.b16 %v735, %v731
        %v848 = vpack.c.b16 %v736, %v732
        %v849 = vpack.c.b16 %v737, %v733
        %v850 = vpack.c.b16 %v742, %v738
        %v851 = vpack.c.b16 %v743, %v739
        %v852 = vpack.c.b16 %v744, %v740
        %v853 = vpack.c.b16 %v745, %v741
        %v854 = vpack.c.b16 %v750, %v746
        %v855 = vpack.c.b16 %v751, %v747
        %v856 = vpack.c.b16 %v752, %v748
        %v857 = vpack.c.b16 %v753, %v749
        %v858 = vpack.c.b16 %v758, %v754
        %v859 = vpack.c.b16 %v759, %v755
        %v860 = vpack.c.b16 %v760, %v756
        %v861 = vpack.c.b16 %v761, %v757
        %v862 = vpack.c.b16 %v766, %v762
        %v863 = vpack.c.b16 %v767, %v763
        %v864 = vpack.c.b16 %v768, %v764
        %v865 = vpack.c.b16 %v769, %v765
        %v866 = vpack.c.b16 %v774, %v770
        %v867 = vpack.c.b16 %v775, %v771
        %v868 = vpack.c.b16 %v776, %v772
        %v869 = vpack.c.b16 %v777, %v773
        %v870 = vpack.c.b16 %v782, %v778
        %v871 = vpack.c.b16 %v783, %v779
        %v872 = vpack.c.b16 %v784, %v780
        %v873 = vpack.c.b16 %v785, %v781
        %v874 = vpack.c.b16 %v790, %v786
        %v875 = vpack.c.b16 %v791, %v787
        %v876 = vpack.c.b16 %v792, %v788
        %v877 = vpack.c.b16 %v793, %v789
        %v878 = vpack.c.b16 %v798, %v794
        %v879 = vpack.c.b16 %v799, %v795
        %v880 = vpack.c.b16 %v800, %v796
        %v881 = vpack.c.b16 %v801, %v797
        %v882 = vpack.c.b16 %v806, %v802
        %v883 = vpack.c.b16 %v807, %v803
        %v884 = vpack.c.b16 %v808, %v804
        %v885 = vpack.c.b16 %v809, %v805
        %v886 = vpack.c.b16 %v814, %v810
        %v887 = vpack.c.b16 %v815, %v811
        %v888 = vpack.c.b16 %v816, %v812
        %v889 = vpack.c.b16 %v817, %v813
        %v890 = vpack.c.b16 %v822, %v818
        %v891 = vpack.c.b16 %v823, %v819
        %v892 = vpack.c.b16 %v824, %v820
        %v893 = vpack.c.b16 %v825, %v821
        %v894 = vpack.c.b16 %v830, %v826
        %v895 = vpack.c.b16 %v831, %v827
        %v896 = vpack.c.b16 %v832, %v828
        %v897 = vpack.c.b16 %v833, %v829
        %v1218 = vunpack.c.l.b16 %v349
        %v1219 = vunpack.c.h.b16 %v349
        %v1220 = vunpack.c.l.b16 %v350
        %v1221 = vunpack.c.h.b16 %v350
        %v1222 = vunpack.c.l.b16 %v351
        %v1223 = vunpack.c.h.b16 %v351
        %v1224 = vunpack.c.l.b16 %v352
        %v1225 = vunpack.c.l.b16 %v353
        %v1226 = vunpack.c.h.b16 %v353
        %v1227 = vunpack.c.l.b16 %v354
        %v1228 = vunpack.c.h.b16 %v354
        %v1229 = vunpack.c.l.b16 %v355
        %v1230 = vunpack.c.h.b16 %v355
        %v1231 = vunpack.c.l.b16 %v356
        %v1232 = vunpack.c.l.b16 %v357
        %v1233 = vunpack.c.h.b16 %v357
        %v1234 = vunpack.c.l.b16 %v358
        %v1235 = vunpack.c.h.b16 %v358
        %v1236 = vunpack.c.l.b16 %v359
        %v1237 = vunpack.c.h.b16 %v359
        %v1238 = vunpack.c.l.b16 %v360
        %v1239 = vunpack.c.l.b16 %v361
        %v1240 = vunpack.c.h.b16 %v361
        %v1241 = vunpack.c.l.b16 %v362
        %v1242 = vunpack.c.h.b16 %v362
        %v1243 = vunpack.c.l.b16 %v363
        %v1244 = vunpack.c.h.b16 %v363
        %v1245 = vunpack.c.l.b16 %v364
        %v1246 = vunpack.c.l.b16 %v365
        %v1247 = vunpack.c.h.b16 %v365
        %v1248 = vunpack.c.l.b16 %v366
        %v1249 = vunpack.c.h.b16 %v366
        %v1250 = vunpack.c.l.b16 %v367
        %v1251 = vunpack.c.h.b16 %v367
        %v1252 = vunpack.c.l.b16 %v368
        %v1253 = vunpack.c.l.b16 %v369
        %v1254 = vunpack.c.h.b16 %v369
        %v1255 = vunpack.c.l.b16 %v370
        %v1256 = vunpack.c.h.b16 %v370
        %v1257 = vunpack.c.l.b16 %v371
        %v1258 = vunpack.c.h.b16 %v371
        %v1259 = vunpack.c.l.b16 %v372
        %v1260 = vunpack.c.l.b16 %v373
        %v1261 = vunpack.c.h.b16 %v373
        %v1262 = vunpack.c.l.b16 %v374
        %v1263 = vunpack.c.h.b16 %v374
        %v1264 = vunpack.c.l.b16 %v375
        %v1265 = vunpack.c.h.b16 %v375
        %v1266 = vunpack.c.l.b16 %v376
        %v1267 = vunpack.c.l.b16 %v377
        %v1268 = vunpack.c.h.b16 %v377
        %v1269 = vunpack.c.l.b16 %v378
        %v1270 = vunpack.c.h.b16 %v378
        %v1271 = vunpack.c.l.b16 %v379
        %v1272 = vunpack.c.h.b16 %v379
        %v1273 = vunpack.c.l.b16 %v380
        %v1274 = vunpack.c.l.b16 %v381
        %v1275 = vunpack.c.h.b16 %v381
        %v1276 = vunpack.c.l.b16 %v382
        %v1277 = vunpack.c.h.b16 %v382
        %v1278 = vunpack.c.l.b16 %v383
        %v1279 = vunpack.c.h.b16 %v383
        %v1280 = vunpack.c.l.b16 %v384
        %v1281 = vunpack.c.l.b16 %v385
        %v1282 = vunpack.c.h.b16 %v385
        %v1283 = vunpack.c.l.b16 %v386
        %v1284 = vunpack.c.h.b16 %v386
        %v1285 = vunpack.c.l.b16 %v387
        %v1286 = vunpack.c.h.b16 %v387
        %v1287 = vunpack.c.l.b16 %v388
        %v1288 = vunpack.c.l.b16 %v389
        %v1289 = vunpack.c.h.b16 %v389
        %v1290 = vunpack.c.l.b16 %v390
        %v1291 = vunpack.c.h.b16 %v390
        %v1292 = vunpack.c.l.b16 %v391
        %v1293 = vunpack.c.h.b16 %v391
        %v1294 = vunpack.c.l.b16 %v392
        %v1295 = vunpack.c.l.b16 %v393
        %v1296 = vunpack.c.h.b16 %v393
        %v1297 = vunpack.c.l.b16 %v394
        %v1298 = vunpack.c.h.b16 %v394
        %v1299 = vunpack.c.l.b16 %v395
        %v1300 = vunpack.c.h.b16 %v395
        %v1301 = vunpack.c.l.b16 %v396
        %v1302 = vunpack.c.l.b16 %v397
        %v1303 = vunpack.c.h.b16 %v397
        %v1304 = vunpack.c.l.b16 %v398
        %v1305 = vunpack.c.h.b16 %v398
        %v1306 = vunpack.c.l.b16 %v399
        %v1307 = vunpack.c.h.b16 %v399
        %v1308 = vunpack.c.l.b16 %v400
        %v1309 = vunpack.c.l.b16 %v401
        %v1310 = vunpack.c.h.b16 %v401
        %v1311 = vunpack.c.l.b16 %v402
        %v1312 = vunpack.c.h.b16 %v402
        %v1313 = vunpack.c.l.b16 %v403
        %v1314 = vunpack.c.h.b16 %v403
        %v1315 = vunpack.c.l.b16 %v404
        %v1316 = vunpack.c.l.b16 %v405
        %v1317 = vunpack.c.h.b16 %v405
        %v1318 = vunpack.c.l.b16 %v406
        %v1319 = vunpack.c.h.b16 %v406
        %v1320 = vunpack.c.l.b16 %v407
        %v1321 = vunpack.c.h.b16 %v407
        %v1322 = vunpack.c.l.b16 %v408
        %v1323 = vunpack.c.l.b16 %v409
        %v1324 = vunpack.c.h.b16 %v409
        %v1325 = vunpack.c.l.b16 %v410
        %v1326 = vunpack.c.h.b16 %v410
        %v1327 = vunpack.c.l.b16 %v411
        %v1328 = vunpack.c.h.b16 %v411
        %v1329 = vunpack.c.l.b16 %v412
        %v1330 = vunpack.c.l.b16 %v413
        %v1331 = vunpack.c.h.b16 %v413
        %v1332 = vunpack.c.l.b16 %v414
        %v1333 = vunpack.c.h.b16 %v414
        %v1334 = vunpack.c.l.b16 %v415
        %v1335 = vunpack.c.h.b16 %v415
        %v1336 = vunpack.c.l.b16 %v416
        %v1337 = vunpack.c.l.b16 %v417
        %v1338 = vunpack.c.h.b16 %v417
        %v1339 = vunpack.c.l.b16 %v418
        %v1340 = vunpack.c.h.b16 %v418
        %v1341 = vunpack.c.l.b16 %v419
        %v1342 = vunpack.c.h.b16 %v419
        %v1343 = vunpack.c.l.b16 %v420
        %v1344 = vunpack.c.l.b16 %v421
        %v1345 = vunpack.c.h.b16 %v421
        %v1346 = vunpack.c.l.b16 %v422
        %v1347 = vunpack.c.h.b16 %v422
        %v1348 = vunpack.c.l.b16 %v423
        %v1349 = vunpack.c.h.b16 %v423
        %v1350 = vunpack.c.l.b16 %v424
        %v1351 = vunpack.c.l.b16 %v425
        %v1352 = vunpack.c.h.b16 %v425
        %v1353 = vunpack.c.l.b16 %v426
        %v1354 = vunpack.c.h.b16 %v426
        %v1355 = vunpack.c.l.b16 %v427
        %v1356 = vunpack.c.h.b16 %v427
        %v1357 = vunpack.c.l.b16 %v428
        %v1358 = vunpack.c.l.b16 %v429
        %v1359 = vunpack.c.h.b16 %v429
        %v1360 = vunpack.c.l.b16 %v430
        %v1361 = vunpack.c.h.b16 %v430
        %v1362 = vunpack.c.l.b16 %v431
        %v1363 = vunpack.c.h.b16 %v431
        %v1364 = vunpack.c.l.b16 %v432
        %v1365 = vunpack.c.l.b16 %v433
        %v1366 = vunpack.c.h.b16 %v433
        %v1367 = vunpack.c.l.b16 %v434
        %v1368 = vunpack.c.h.b16 %v434
        %v1369 = vunpack.c.l.b16 %v435
        %v1370 = vunpack.c.h.b16 %v435
        %v1371 = vunpack.c.l.b16 %v436
        %v1372 = vunpack.c.l.b16 %v437
        %v1373 = vunpack.c.h.b16 %v437
        %v1374 = vunpack.c.l.b16 %v438
        %v1375 = vunpack.c.h.b16 %v438
        %v1376 = vunpack.c.l.b16 %v439
        %v1377 = vunpack.c.h.b16 %v439
        %v1378 = vunpack.c.l.b16 %v440
        %v1379 = vunpack.c.l.b16 %v441
        %v1380 = vunpack.c.h.b16 %v441
        %v1381 = vunpack.c.l.b16 %v442
        %v1382 = vunpack.c.h.b16 %v442
        %v1383 = vunpack.c.l.b16 %v443
        %v1384 = vunpack.c.h.b16 %v443
        %v1385 = vunpack.c.l.b16 %v444
        %v1386 = vunpack.c.l.b16 %v445
        %v1387 = vunpack.c.h.b16 %v445
        %v1388 = vunpack.c.l.b16 %v446
        %v1389 = vunpack.c.h.b16 %v446
        %v1390 = vunpack.c.l.b16 %v447
        %v1391 = vunpack.c.h.b16 %v447
        %v1392 = vunpack.c.l.b16 %v448
        %v1393 = vunpack.c.l.b16 %v449
        %v1394 = vunpack.c.h.b16 %v449
        %v1395 = vunpack.c.l.b16 %v450
        %v1396 = vunpack.c.h.b16 %v450
        %v1397 = vunpack.c.l.b16 %v451
        %v1398 = vunpack.c.h.b16 %v451
        %v1399 = vunpack.c.l.b16 %v452
        %v1400 = vunpack.c.l.b16 %v453
        %v1401 = vunpack.c.h.b16 %v453
        %v1402 = vunpack.c.l.b16 %v454
        %v1403 = vunpack.c.h.b16 %v454
        %v1404 = vunpack.c.l.b16 %v455
        %v1405 = vunpack.c.h.b16 %v455
        %v1406 = vunpack.c.l.b16 %v456
        %v1407 = vunpack.c.l.b16 %v457
        %v1408 = vunpack.c.h.b16 %v457
        %v1409 = vunpack.c.l.b16 %v458
        %v1410 = vunpack.c.h.b16 %v458
        %v1411 = vunpack.c.l.b16 %v459
        %v1412 = vunpack.c.h.b16 %v459
        %v1413 = vunpack.c.l.b16 %v460
        %v1414 = vunpack.c.l.b16 %v461
        %v1415 = vunpack.c.h.b16 %v461
        %v1416 = vunpack.c.l.b16 %v462
        %v1417 = vunpack.c.h.b16 %v462
        %v1418 = vunpack.c.l.b16 %v463
        %v1419 = vunpack.c.h.b16 %v463
        %v1420 = vunpack.c.l.b16 %v464
        %v1421 = vunpack.c.l.b16 %v465
        %v1422 = vunpack.c.h.b16 %v465
        %v1423 = vunpack.c.l.b16 %v466
        %v1424 = vunpack.c.h.b16 %v466
        %v1425 = vunpack.c.l.b16 %v467
        %v1426 = vunpack.c.h.b16 %v467
        %v1427 = vunpack.c.l.b16 %v468
        %v1428 = vunpack.c.l.b16 %v469
        %v1429 = vunpack.c.h.b16 %v469
        %v1430 = vunpack.c.l.b16 %v470
        %v1431 = vunpack.c.h.b16 %v470
        %v1432 = vunpack.c.l.b16 %v471
        %v1433 = vunpack.c.h.b16 %v471
        %v1434 = vunpack.c.l.b16 %v472
        %v1435 = vunpack.c.l.b16 %v473
        %v1436 = vunpack.c.h.b16 %v473
        %v1437 = vunpack.c.l.b16 %v474
        %v1438 = vunpack.c.h.b16 %v474
        %v1439 = vunpack.c.l.b16 %v475
        %v1440 = vunpack.c.h.b16 %v475
        %v1441 = vunpack.c.l.b16 %v476
        %v1442 = vunpack.c.l.b16 %v477
        %v1443 = vunpack.c.h.b16 %v477
        %v1444 = vunpack.c.l.b16 %v478
        %v1445 = vunpack.c.h.b16 %v478
        %v1446 = vunpack.c.l.b16 %v479
        %v1447 = vunpack.c.h.b16 %v479
        %v1448 = vunpack.c.l.b16 %v480
        %v1449 = vunpack.c.l.b16 %v481
        %v1450 = vunpack.c.h.b16 %v481
        %v1451 = vunpack.c.l.b16 %v482
        %v1452 = vunpack.c.h.b16 %v482
        %v1453 = vunpack.c.l.b16 %v483
        %v1454 = vunpack.c.h.b16 %v483
        %v1455 = vunpack.c.l.b16 %v484
        %v1456 = vunpack.c.l.b16 %v485
        %v1457 = vunpack.c.h.b16 %v485
        %v1458 = vunpack.c.l.b16 %v486
        %v1459 = vunpack.c.h.b16 %v486
        %v1460 = vunpack.c.l.b16 %v487
        %v1461 = vunpack.c.h.b16 %v487
        %v1462 = vunpack.c.l.b16 %v488
        %v1463 = vunpack.c.l.b16 %v489
        %v1464 = vunpack.c.h.b16 %v489
        %v1465 = vunpack.c.l.b16 %v490
        %v1466 = vunpack.c.h.b16 %v490
        %v1467 = vunpack.c.l.b16 %v491
        %v1468 = vunpack.c.h.b16 %v491
        %v1469 = vunpack.c.l.b16 %v492
        %v1470 = vunpack.c.l.b16 %v493
        %v1471 = vunpack.c.h.b16 %v493
        %v1472 = vunpack.c.l.b16 %v494
        %v1473 = vunpack.c.h.b16 %v494
        %v1474 = vunpack.c.l.b16 %v495
        %v1475 = vunpack.c.h.b16 %v495
        %v1476 = vunpack.c.l.b16 %v496
        %v1477 = vunpack.c.l.b16 %v497
        %v1478 = vunpack.c.h.b16 %v497
        %v1479 = vunpack.c.l.b16 %v498
        %v1480 = vunpack.c.h.b16 %v498
        %v1481 = vunpack.c.l.b16 %v499
        %v1482 = vunpack.c.h.b16 %v499
        %v1483 = vunpack.c.l.b16 %v500
        %v1484 = vunpack.c.l.b16 %v501
        %v1485 = vunpack.c.h.b16 %v501
        %v1486 = vunpack.c.l.b16 %v502
        %v1487 = vunpack.c.h.b16 %v502
        %v1488 = vunpack.c.l.b16 %v503
        %v1489 = vunpack.c.h.b16 %v503
        %v1490 = vunpack.c.l.b16 %v504
        %v1491 = vunpack.c.l.b16 %v505
        %v1492 = vunpack.c.h.b16 %v505
        %v1493 = vunpack.c.l.b16 %v506
        %v1494 = vunpack.c.h.b16 %v506
        %v1495 = vunpack.c.l.b16 %v507
        %v1496 = vunpack.c.h.b16 %v507
        %v1497 = vunpack.c.l.b16 %v508
        %v1498 = vunpack.c.l.b16 %v509
        %v1499 = vunpack.c.h.b16 %v509
        %v1500 = vunpack.c.l.b16 %v510
        %v1501 = vunpack.c.h.b16 %v510
        %v1502 = vunpack.c.l.b16 %v511
        %v1503 = vunpack.c.h.b16 %v511
        %v1504 = vunpack.c.l.b16 %v512
        %v1505 = vunpack.c.l.b16 %v513
        %v1506 = vunpack.c.h.b16 %v513
        %v1507 = vunpack.c.l.b16 %v514
        %v1508 = vunpack.c.h.b16 %v514
        %v1509 = vunpack.c.l.b16 %v515
        %v1510 = vunpack.c.h.b16 %v515
        %v1511 = vunpack.c.l.b16 %v516
        %v1512 = vunpack.c.l.b16 %v517
        %v1513 = vunpack.c.h.b16 %v517
        %v1514 = vunpack.c.l.b16 %v518
        %v1515 = vunpack.c.h.b16 %v518
        %v1516 = vunpack.c.l.b16 %v519
        %v1517 = vunpack.c.h.b16 %v519
        %v1518 = vunpack.c.l.b16 %v520
        %v1519 = vunpack.c.l.b16 %v521
        %v1520 = vunpack.c.h.b16 %v521
        %v1521 = vunpack.c.l.b16 %v522
        %v1522 = vunpack.c.h.b16 %v522
        %v1523 = vunpack.c.l.b16 %v523
        %v1524 = vunpack.c.h.b16 %v523
        %v1525 = vunpack.c.l.b16 %v524
        %v1526 = vunpack.c.l.b16 %v525
        %v1527 = vunpack.c.h.b16 %v525
        %v1528 = vunpack.c.l.b16 %v526
        %v1529 = vunpack.c.h.b16 %v526
        %v1530 = vunpack.c.l.b16 %v527
        %v1531 = vunpack.c.h.b16 %v527
        %v1532 = vunpack.c.l.b16 %v528
        %v1533 = vunpack.c.l.b16 %v529
        %v1534 = vunpack.c.h.b16 %v529
        %v1535 = vunpack.c.l.b16 %v530
        %v1536 = vunpack.c.h.b16 %v530
        %v1537 = vunpack.c.l.b16 %v531
        %v1538 = vunpack.c.h.b16 %v531
        %v1539 = vunpack.c.l.b16 %v532
        %v1540 = vunpack.c.l.b16 %v533
        %v1541 = vunpack.c.h.b16 %v533
        %v1542 = vunpack.c.l.b16 %v534
        %v1543 = vunpack.c.h.b16 %v534
        %v1544 = vunpack.c.l.b16 %v535
        %v1545 = vunpack.c.h.b16 %v535
        %v1546 = vunpack.c.l.b16 %v536
        %v1547 = vunpack.c.l.b16 %v537
        %v1548 = vunpack.c.h.b16 %v537
        %v1549 = vunpack.c.l.b16 %v538
        %v1550 = vunpack.c.h.b16 %v538
        %v1551 = vunpack.c.l.b16 %v539
        %v1552 = vunpack.c.h.b16 %v539
        %v1553 = vunpack.c.l.b16 %v540
        %v1554 = vunpack.c.l.b16 %v541
        %v1555 = vunpack.c.h.b16 %v541
        %v1556 = vunpack.c.l.b16 %v542
        %v1557 = vunpack.c.h.b16 %v542
        %v1558 = vunpack.c.l.b16 %v543
        %v1559 = vunpack.c.h.b16 %v543
        %v1560 = vunpack.c.l.b16 %v544
        %v1561 = vunpack.c.l.b16 %v545
        %v1562 = vunpack.c.h.b16 %v545
        %v1563 = vunpack.c.l.b16 %v546
        %v1564 = vunpack.c.h.b16 %v546
        %v1565 = vunpack.c.l.b16 %v547
        %v1566 = vunpack.c.h.b16 %v547
        %v1567 = vunpack.c.l.b16 %v548
        %v1568 = vunpack.c.l.b16 %v549
        %v1569 = vunpack.c.h.b16 %v549
        %v1570 = vunpack.c.l.b16 %v550
        %v1571 = vunpack.c.h.b16 %v550
        %v1572 = vunpack.c.l.b16 %v551
        %v1573 = vunpack.c.h.b16 %v551
        %v1574 = vunpack.c.l.b16 %v552
        %v1575 = vunpack.c.l.b16 %v553
        %v1576 = vunpack.c.h.b16 %v553
        %v1577 = vunpack.c.l.b16 %v554
        %v1578 = vunpack.c.h.b16 %v554
        %v1579 = vunpack.c.l.b16 %v555
        %v1580 = vunpack.c.h.b16 %v555
        %v1581 = vunpack.c.l.b16 %v556
        %v1582 = vunpack.c.l.b16 %v557
        %v1583 = vunpack.c.h.b16 %v557
        %v1584 = vunpack.c.l.b16 %v558
        %v1585 = vunpack.c.h.b16 %v558
        %v1586 = vunpack.c.l.b16 %v559
        %v1587 = vunpack.c.h.b16 %v559
        %v1588 = vunpack.c.l.b16 %v560
        %v1589 = vunpack.c.l.b16 %v561
        %v1590 = vunpack.c.h.b16 %v561
        %v1591 = vunpack.c.l.b16 %v562
        %v1592 = vunpack.c.h.b16 %v562
        %v1593 = vunpack.c.l.b16 %v563
        %v1594 = vunpack.c.h.b16 %v563
        %v1595 = vunpack.c.l.b16 %v564
        %v1596 = vunpack.c.l.b16 %v565
        %v1597 = vunpack.c.h.b16 %v565
        %v1598 = vunpack.c.l.b16 %v566
        %v1599 = vunpack.c.h.b16 %v566
        %v1600 = vunpack.c.l.b16 %v567
        %v1601 = vunpack.c.h.b16 %v567
        %v1602 = vunpack.c.l.b16 %v568
        %v1603 = vunpack.c.l.b16 %v569
        %v1604 = vunpack.c.h.b16 %v569
        %v1605 = vunpack.c.l.b16 %v570
        %v1606 = vunpack.c.h.b16 %v570
        %v1607 = vunpack.c.l.b16 %v571
        %v1608 = vunpack.c.h.b16 %v571
        %v1609 = vunpack.c.l.b16 %v572
        %v1610 = vunpack.c.l.b16 %v573
        %v1611 = vunpack.c.h.b16 %v573
        %v1612 = vunpack.c.l.b16 %v574
        %v1613 = vunpack.c.h.b16 %v574
        %v1614 = vunpack.c.l.b16 %v575
        %v1615 = vunpack.c.h.b16 %v575
        %v1616 = vunpack.c.l.b16 %v576
        %v1617 = vunpack.c.l.b16 %v577
        %v1618 = vunpack.c.h.b16 %v577
        %v1619 = vunpack.c.l.b16 %v578
        %v1620 = vunpack.c.h.b16 %v578
        %v1621 = vunpack.c.l.b16 %v579
        %v1622 = vunpack.c.h.b16 %v579
        %v1623 = vunpack.c.l.b16 %v580
        %v1624 = vunpack.c.l.b16 %v581
        %v1625 = vunpack.c.h.b16 %v581
        %v1626 = vunpack.c.l.b16 %v582
        %v1627 = vunpack.c.h.b16 %v582
        %v1628 = vunpack.c.l.b16 %v583
        %v1629 = vunpack.c.h.b16 %v583
        %v1630 = vunpack.c.l.b16 %v584
        %v1631 = vunpack.c.l.b16 %v585
        %v1632 = vunpack.c.h.b16 %v585
        %v1633 = vunpack.c.l.b16 %v586
        %v1634 = vunpack.c.h.b16 %v586
        %v1635 = vunpack.c.l.b16 %v587
        %v1636 = vunpack.c.h.b16 %v587
        %v1637 = vunpack.c.l.b16 %v588
        %v1638 = vunpack.c.l.b16 %v589
        %v1639 = vunpack.c.h.b16 %v589
        %v1640 = vunpack.c.l.b16 %v590
        %v1641 = vunpack.c.h.b16 %v590
        %v1642 = vunpack.c.l.b16 %v591
        %v1643 = vunpack.c.h.b16 %v591
        %v1644 = vunpack.c.l.b16 %v592
        %v1645 = vunpack.c.l.b16 %v593
        %v1646 = vunpack.c.h.b16 %v593
        %v1647 = vunpack.c.l.b16 %v594
        %v1648 = vunpack.c.h.b16 %v594
        %v1649 = vunpack.c.l.b16 %v595
        %v1650 = vunpack.c.h.b16 %v595
        %v1651 = vunpack.c.l.b16 %v596
        %v1652 = vunpack.c.l.b16 %v597
        %v1653 = vunpack.c.h.b16 %v597
        %v1654 = vunpack.c.l.b16 %v598
        %v1655 = vunpack.c.h.b16 %v598
        %v1656 = vunpack.c.l.b16 %v599
        %v1657 = vunpack.c.h.b16 %v599
        %v1658 = vunpack.c.l.b16 %v600
        %v1659 = vunpack.c.l.b16 %v601
        %v1660 = vunpack.c.h.b16 %v601
        %v1661 = vunpack.c.l.b16 %v602
        %v1662 = vunpack.c.h.b16 %v602
        %v1663 = vunpack.c.l.b16 %v603
        %v1664 = vunpack.c.h.b16 %v603
        %v1665 = vunpack.c.l.b16 %v604
        %v1666 = vpack.c.b16 %v1225, %v1218
        %v1667 = vpack.c.b16 %v1226, %v1219
        %v1668 = vpack.c.b16 %v1227, %v1220
        %v1669 = vpack.c.b16 %v1228, %v1221
        %v1670 = vpack.c.b16 %v1229, %v1222
        %v1671 = vpack.c.b16 %v1230, %v1223
        %v1672 = vpack.c.b16 %v1231, %v1224
        %v1673 = vpack.c.b16 %v1239, %v1232
        %v1674 = vpack.c.b16 %v1240, %v1233
        %v1675 = vpack.c.b16 %v1241, %v1234
        %v1676 = vpack.c.b16 %v1242, %v1235
        %v1677 = vpack.c.b16 %v1243, %v1236
        %v1678 = vpack.c.b16 %v1244, %v1237
        %v1679 = vpack.c.b16 %v1245, %v1238
        %v1680 = vpack.c.b16 %v1253, %v1246
        %v1681 = vpack.c.b16 %v1254, %v1247
        %v1682 = vpack.c.b16 %v1255, %v1248
        %v1683 = vpack.c.b16 %v1256, %v1249
        %v1684 = vpack.c.b16 %v1257, %v1250
        %v1685 = vpack.c.b16 %v1258, %v1251
        %v1686 = vpack.c.b16 %v1259, %v1252
        %v1687 = vpack.c.b16 %v1267, %v1260
        %v1688 = vpack.c.b16 %v1268, %v1261
        %v1689 = vpack.c.b16 %v1269, %v1262
        %v1690 = vpack.c.b16 %v1270, %v1263
        %v1691 = vpack.c.b16 %v1271, %v1264
        %v1692 = vpack.c.b16 %v1272, %v1265
        %v1693 = vpack.c.b16 %v1273, %v1266
        %v1694 = vpack.c.b16 %v1281, %v1274
        %v1695 = vpack.c.b16 %v1282, %v1275
        %v1696 = vpack.c.b16 %v1283, %v1276
        %v1697 = vpack.c.b16 %v1284, %v1277
        %v1698 = vpack.c.b16 %v1285, %v1278
        %v1699 = vpack.c.b16 %v1286, %v1279
        %v1700 = vpack.c.b16 %v1287, %v1280
        %v1701 = vpack.c.b16 %v1295, %v1288
        %v1702 = vpack.c.b16 %v1296, %v1289
        %v1703 = vpack.c.b16 %v1297, %v1290
        %v1704 = vpack.c.b16 %v1298, %v1291
        %v1705 = vpack.c.b16 %v1299, %v1292
        %v1706 = vpack.c.b16 %v1300, %v1293
        %v1707 = vpack.c.b16 %v1301, %v1294
        %v1708 = vpack.c.b16 %v1309, %v1302
        %v1709 = vpack.c.b16 %v1310, %v1303
        %v1710 = vpack.c.b16 %v1311, %v1304
        %v1711 = vpack.c.b16 %v1312, %v1305
        %v1712 = vpack.c.b16 %v1313, %v1306
        %v1713 = vpack.c.b16 %v1314, %v1307
        %v1714 = vpack.c.b16 %v1315, %v1308
        %v1715 = vpack.c.b16 %v1323, %v1316
        %v1716 = vpack.c.b16 %v1324, %v1317
        %v1717 = vpack.c.b16 %v1325, %v1318
        %v1718 = vpack.c.b16 %v1326, %v1319
        %v1719 = vpack.c.b16 %v1327, %v1320
        %v1720 = vpack.c.b16 %v1328, %v1321
        %v1721 = vpack.c.b16 %v1329, %v1322
        %v1722 = vpack.c.b16 %v1337, %v1330
        %v1723 = vpack.c.b16 %v1338, %v1331
        %v1724 = vpack.c.b16 %v1339, %v1332
        %v1725 = vpack.c.b16 %v1340, %v1333
        %v1726 = vpack.c.b16 %v1341, %v1334
        %v1727 = vpack.c.b16 %v1342, %v1335
        %v1728 = vpack.c.b16 %v1343, %v1336
        %v1729 = vpack.c.b16 %v1351, %v1344
        %v1730 = vpack.c.b16 %v1352, %v1345
        %v1731 = vpack.c.b16 %v1353, %v1346
        %v1732 = vpack.c.b16 %v1354, %v1347
        %v1733 = vpack.c.b16 %v1355, %v1348
        %v1734 = vpack.c.b16 %v1356, %v1349
        %v1735 = vpack.c.b16 %v1357, %v1350
        %v1736 = vpack.c.b16 %v1365, %v1358
        %v1737 = vpack.c.b16 %v1366, %v1359
        %v1738 = vpack.c.b16 %v1367, %v1360
        %v1739 = vpack.c.b16 %v1368, %v1361
        %v1740 = vpack.c.b16 %v1369, %v1362
        %v1741 = vpack.c.b16 %v1370, %v1363
        %v1742 = vpack.c.b16 %v1371, %v1364
        %v1743 = vpack.c.b16 %v1379, %v1372
        %v1744 = vpack.c.b16 %v1380, %v1373
        %v1745 = vpack.c.b16 %v1381, %v1374
        %v1746 = vpack.c.b16 %v1382, %v1375
        %v1747 = vpack.c.b16 %v1383, %v1376
        %v1748 = vpack.c.b16 %v1384, %v1377
        %v1749 = vpack.c.b16 %v1385, %v1378
        %v1750 = vpack.c.b16 %v1393, %v1386
        %v1751 = vpack.c.b16 %v1394, %v1387
        %v1752 = vpack.c.b16 %v1395, %v1388
        %v1753 = vpack.c.b16 %v1396, %v1389
        %v1754 = vpack.c.b16 %v1397, %v1390
        %v1755 = vpack.c.b16 %v1398, %v1391
        %v1756 = vpack.c.b16 %v1399, %v1392
        %v1757 = vpack.c.b16 %v1407, %v1400
        %v1758 = vpack.c.b16 %v1408, %v1401
        %v1759 = vpack.c.b16 %v1409, %v1402
        %v1760 = vpack.c.b16 %v1410, %v1403
        %v1761 = vpack.c.b16 %v1411, %v1404
        %v1762 = vpack.c.b16 %v1412, %v1405
        %v1763 = vpack.c.b16 %v1413, %v1406
        %v1764 = vpack.c.b16 %v1421, %v1414
        %v1765 = vpack.c.b16 %v1422, %v1415
        %v1766 = vpack.c.b16 %v1423, %v1416
        %v1767 = vpack.c.b16 %v1424, %v1417
        %v1768 = vpack.c.b16 %v1425, %v1418
        %v1769 = vpack.c.b16 %v1426, %v1419
        %v1770 = vpack.c.b16 %v1427, %v1420
        %v1771 = vpack.c.b16 %v1435, %v1428
        %v1772 = vpack.c.b16 %v1436, %v1429
        %v1773 = vpack.c.b16 %v1437, %v1430
        %v1774 = vpack.c.b16 %v1438, %v1431
        %v1775 = vpack.c.b16 %v1439, %v1432
        %v1776 = vpack.c.b16 %v1440, %v1433
        %v1777 = vpack.c.b16 %v1441, %v1434
        %v1778 = vpack.c.b16 %v1449, %v1442
        %v1779 = vpack.c.b16 %v1450, %v1443
        %v1780 = vpack.c.b16 %v1451, %v1444
        %v1781 = vpack.c.b16 %v1452, %v1445
        %v1782 = vpack.c.b16 %v1453, %v1446
        %v1783 = vpack.c.b16 %v1454, %v1447
        %v1784 = vpack.c.b16 %v1455, %v1448
        %v1785 = vpack.c.b16 %v1463, %v1456
        %v1786 = vpack.c.b16 %v1464, %v1457
        %v1787 = vpack.c.b16 %v1465, %v1458
        %v1788 = vpack.c.b16 %v1466, %v1459
        %v1789 = vpack.c.b16 %v1467, %v1460
        %v1790 = vpack.c.b16 %v1468, %v1461
        %v1791 = vpack.c.b16 %v1469, %v1462
        %v1792 = vpack.c.b16 %v1477, %v1470
        %v1793 = vpack.c.b16 %v1478, %v1471
        %v1794 = vpack.c.b16 %v1479, %v1472
        %v1795 = vpack.c.b16 %v1480, %v1473
        %v1796 = vpack.c.b16 %v1481, %v1474
        %v1797 = vpack.c.b16 %v1482, %v1475
        %v1798 = vpack.c.b16 %v1483, %v1476
        %v1799 = vpack.c.b16 %v1491, %v1484
        %v1800 = vpack.c.b16 %v1492, %v1485
        %v1801 = vpack.c.b16 %v1493, %v1486
        %v1802 = vpack.c.b16 %v1494, %v1487
        %v1803 = vpack.c.b16 %v1495, %v1488
        %v1804 = vpack.c.b16 %v1496, %v1489
        %v1805 = vpack.c.b16 %v1497, %v1490
        %v1806 = vpack.c.b16 %v1505, %v1498
        %v1807 = vpack.c.b16 %v1506, %v1499
        %v1808 = vpack.c.b16 %v1507, %v1500
        %v1809 = vpack.c.b16 %v1508, %v1501
        %v1810 = vpack.c.b16 %v1509, %v1502
        %v1811 = vpack.c.b16 %v1510, %v1503
        %v1812 = vpack.c.b16 %v1511, %v1504
        %v1813 = vpack.c.b16 %v1519, %v1512
        %v1814 = vpack.c.b16 %v1520, %v1513
        %v1815 = vpack.c.b16 %v1521, %v1514
        %v1816 = vpack.c.b16 %v1522, %v1515
        %v1817 = vpack.c.b16 %v1523, %v1516
        %v1818 = vpack.c.b16 %v1524, %v1517
        %v1819 = vpack.c.b16 %v1525, %v1518
        %v1820 = vpack.c.b16 %v1533, %v1526
        %v1821 = vpack.c.b16 %v1534, %v1527
        %v1822 = vpack.c.b16 %v1535, %v1528
        %v1823 = vpack.c.b16 %v1536, %v1529
        %v1824 = vpack.c.b16 %v1537, %v1530
        %v1825 = vpack.c.b16 %v1538, %v1531
        %v1826 = vpack.c.b16 %v1539, %v1532
        %v1827 = vpack.c.b16 %v1547, %v1540
        %v1828 = vpack.c.b16 %v1548, %v1541
        %v1829 = vpack.c.b16 %v1549, %v1542
        %v1830 = vpack.c.b16 %v1550, %v1543
        %v1831 = vpack.c.b16 %v1551, %v1544
        %v1832 = vpack.c.b16 %v1552, %v1545
        %v1833 = vpack.c.b16 %v1553, %v1546
        %v1834 = vpack.c.b16 %v1561, %v1554
        %v1835 = vpack.c.b16 %v1562, %v1555
        %v1836 = vpack.c.b16 %v1563, %v1556
        %v1837 = vpack.c.b16 %v1564, %v1557
        %v1838 = vpack.c.b16 %v1565, %v1558
        %v1839 = vpack.c.b16 %v1566, %v1559
        %v1840 = vpack.c.b16 %v1567, %v1560
        %v1841 = vpack.c.b16 %v1575, %v1568
        %v1842 = vpack.c.b16 %v1576, %v1569
        %v1843 = vpack.c.b16 %v1577, %v1570
        %v1844 = vpack.c.b16 %v1578, %v1571
        %v1845 = vpack.c.b16 %v1579, %v1572
        %v1846 = vpack.c.b16 %v1580, %v1573
        %v1847 = vpack.c.b16 %v1581, %v1574
        %v1848 = vpack.c.b16 %v1589, %v1582
        %v1849 = vpack.c.b16 %v1590, %v1583
        %v1850 = vpack.c.b16 %v1591, %v1584
        %v1851 = vpack.c.b16 %v1592, %v1585
        %v1852 = vpack.c.b16 %v1593, %v1586
        %v1853 = vpack.c.b16 %v1594, %v1587
        %v1854 = vpack.c.b16 %v1595, %v1588
        %v1855 = vpack.c.b16 %v1603, %v1596
        %v1856 = vpack.c.b16 %v1604, %v1597
        %v1857 = vpack.c.b16 %v1605, %v1598
        %v1858 = vpack.c.b16 %v1606, %v1599
        %v1859 = vpack.c.b16 %v1607, %v1600
        %v1860 = vpack.c.b16 %v1608, %v1601
        %v1861 = vpack.c.b16 %v1609, %v1602
        %v1862 = vpack.c.b16 %v1617, %v1610
        %v1863 = vpack.c.b16 %v1618, %v1611
        %v1864 = vpack.c.b16 %v1619, %v1612
        %v1865 = vpack.c.b16 %v1620, %v1613
        %v1866 = vpack.c.b16 %v1621, %v1614
        %v1867 = vpack.c.b16 %v1622, %v1615
        %v1868 = vpack.c.b16 %v1623, %v1616
        %v1869 = vpack.c.b16 %v1631, %v1624
        %v1870 = vpack.c.b16 %v1632, %v1625
        %v1871 = vpack.c.b16 %v1633, %v1626
        %v1872 = vpack.c.b16 %v1634, %v1627
        %v1873 = vpack.c.b16 %v1635, %v1628
        %v1874 = vpack.c.b16 %v1636, %v1629
        %v1875 = vpack.c.b16 %v1637, %v1630
        %v1876 = vpack.c.b16 %v1645, %v1638
        %v1877 = vpack.c.b16 %v1646, %v1639
        %v1878 = vpack.c.b16 %v1647, %v1640
        %v1879 = vpack.c.b16 %v1648, %v1641
        %v1880 = vpack.c.b16 %v1649, %v1642
        %v1881 = vpack.c.b16 %v1650, %v1643
        %v1882 = vpack.c.b16 %v1651, %v1644
        %v1883 = vpack.c.b16 %v1659, %v1652
        %v1884 = vpack.c.b16 %v1660, %v1653
        %v1885 = vpack.c.b16 %v1661, %v1654
        %v1886 = vpack.c.b16 %v1662, %v1655
        %v1887 = vpack.c.b16 %v1663, %v1656
        %v1888 = vpack.c.b16 %v1664, %v1657
        %v1889 = vpack.c.b16 %v1665, %v1658
        %2114 = vmatprep.subr.bf16.mxu0 %v1716
        %2115 = vmatpush1.bf16.msra.mxu0 %v1715
        %2116 = vmatprep.subr.bf16.mxu0 %v1709
        %2117 = vmatpush1.bf16.msra.mxu0 %v1708
        %2118 = vmatprep.subr.bf16.mxu0 %v1702
        %2119 = vmatpush1.bf16.msra.mxu0 %v1701
        %2120 = vmatprep.subr.bf16.mxu0 %v1695
        %2121 = vmatpush1.bf16.msra.mxu0 %v1694
        %2122 = vmatprep.subr.bf16.mxu0 %v1688
        %2123 = vmatpush1.bf16.msra.mxu0 %v1687
        %2124 = vmatprep.subr.bf16.mxu0 %v1681
        %2125 = vmatpush1.bf16.msra.mxu0 %v1680
        %2126 = vmatprep.subr.bf16.mxu0 %v1674
        %2127 = vmatpush1.bf16.msra.mxu0 %v1673
        %2128 = vmatprep.subr.bf16.mxu0 %v1667
        %2129 = vmatpush1.bf16.msra.mxu0 %v1666
        %2130 = vmatprep.subr.bf16.mxu0 %v1772
        %2131 = vmatpush2.bf16.msra.mxu0 %v1771
        %2132 = vmatprep.subr.bf16.mxu0 %v1765
        %2133 = vmatpush2.bf16.msra.mxu0 %v1764
        %2134 = vmatprep.subr.bf16.mxu0 %v1758
        %2135 = vmatpush2.bf16.msra.mxu0 %v1757
        %2136 = vmatprep.subr.bf16.mxu0 %v1751
        %2137 = vmatpush2.bf16.msra.mxu0 %v1750
        %2138 = vmatprep.subr.bf16.mxu0 %v1744
        %2139 = vmatpush2.bf16.msra.mxu0 %v1743
        %2140 = vmatprep.subr.bf16.mxu0 %v1737
        %2141 = vmatpush2.bf16.msra.mxu0 %v1736
        %2142 = vmatprep.subr.bf16.mxu0 %v1730
        %2143 = vmatpush2.bf16.msra.mxu0 %v1729
        %2144 = vmatprep.subr.bf16.mxu0 %v1723
        %2145 = vmatpush2.bf16.msra.mxu0 %v1722
        %2146 = vmatprep.mubr.bf16.mxu0 %v835
        %2147 = vmatmul.mubr.bf16.gmra.mxu0 %v834
        %v2148 = vpop.f32.mrf.mxu0
        %v2149 = vadd.f32 %v610, %v2148
        %v2150 = vpop.f32.mrf.mxu0
        %v2151 = vadd.f32 %v614, %v2150
        %v2152 = vpop.f32.mrf.mxu0
        %v2153 = vadd.f32 %v610, %v2152
        %v2154 = vpop.f32.mrf.mxu0
        %v2155 = vadd.f32 %v614, %v2154
        %2156 = vmatprep.mubr.bf16.mxu0 %v839
        %2157 = vmatmul.mubr.bf16.gmra.mxu0 %v838
        %v2158 = vpop.f32.mrf.mxu0
        %v2159 = vadd.f32 %v610, %v2158
        %v2160 = vpop.f32.mrf.mxu0
        %v2161 = vadd.f32 %v614, %v2160
        %v2162 = vpop.f32.mrf.mxu0
        %v2163 = vadd.f32 %v610, %v2162
        %v2164 = vpop.f32.mrf.mxu0
        %v2165 = vadd.f32 %v614, %v2164
        %2166 = vmatprep.mubr.bf16.mxu0 %v843
        %2167 = vmatmul.mubr.bf16.gmra.mxu0 %v842
        %v2168 = vpop.f32.mrf.mxu0
        %v2169 = vadd.f32 %v610, %v2168
        %v2170 = vpop.f32.mrf.mxu0
        %v2171 = vadd.f32 %v614, %v2170
        %v2172 = vpop.f32.mrf.mxu0
        %v2173 = vadd.f32 %v610, %v2172
        %v2174 = vpop.f32.mrf.mxu0
        %v2175 = vadd.f32 %v614, %v2174
        %2176 = vmatprep.mubr.bf16.mxu0 %v847
        %2177 = vmatmul.mubr.bf16.gmra.mxu0 %v846
        %v2178 = vpop.f32.mrf.mxu0
        %v2179 = vadd.f32 %v610, %v2178
        %v2180 = vpop.f32.mrf.mxu0
        %v2181 = vadd.f32 %v614, %v2180
        %v2182 = vpop.f32.mrf.mxu0
        %v2183 = vadd.f32 %v610, %v2182
        %v2184 = vpop.f32.mrf.mxu0
        %v2185 = vadd.f32 %v614, %v2184
        %2186 = vmatprep.mubr.bf16.mxu0 %v851
        %2187 = vmatmul.mubr.bf16.gmra.mxu0 %v850
        %v2188 = vpop.f32.mrf.mxu0
        %v2189 = vadd.f32 %v610, %v2188
        %v2190 = vpop.f32.mrf.mxu0
        %v2191 = vadd.f32 %v614, %v2190
        %v2192 = vpop.f32.mrf.mxu0
        %v2193 = vadd.f32 %v610, %v2192
        %v2194 = vpop.f32.mrf.mxu0
        %v2195 = vadd.f32 %v614, %v2194
        %2196 = vmatprep.mubr.bf16.mxu0 %v855
        %2197 = vmatmul.mubr.bf16.gmra.mxu0 %v854
        %v2198 = vpop.f32.mrf.mxu0
        %v2199 = vadd.f32 %v610, %v2198
        %v2200 = vpop.f32.mrf.mxu0
        %v2201 = vadd.f32 %v614, %v2200
        %v2202 = vpop.f32.mrf.mxu0
        %v2203 = vadd.f32 %v610, %v2202
        %v2204 = vpop.f32.mrf.mxu0
        %v2205 = vadd.f32 %v614, %v2204
        %2206 = vmatprep.mubr.bf16.mxu0 %v859
        %2207 = vmatmul.mubr.bf16.gmra.mxu0 %v858
        %v2208 = vpop.f32.mrf.mxu0
        %v2209 = vadd.f32 %v610, %v2208
        %v2210 = vpop.f32.mrf.mxu0
        %v2211 = vadd.f32 %v614, %v2210
        %v2212 = vpop.f32.mrf.mxu0
        %v2213 = vadd.f32 %v610, %v2212
        %v2214 = vpop.f32.mrf.mxu0
        %v2215 = vadd.f32 %v614, %v2214
        %2216 = vmatprep.mubr.bf16.mxu0 %v863
        %2217 = vmatmul.mubr.bf16.gmra.mxu0 %v862
        %v2218 = vpop.f32.mrf.mxu0
        %v2219 = vadd.f32 %v610, %v2218
        %v2220 = vpop.f32.mrf.mxu0
        %v2221 = vadd.f32 %v614, %v2220
        %v2222 = vpop.f32.mrf.mxu0
        %v2223 = vadd.f32 %v610, %v2222
        %v2224 = vpop.f32.mrf.mxu0
        %v2225 = vadd.f32 %v614, %v2224
        %2226 = vmatprep.mubr.bf16.mxu0 %v867
        %2227 = vmatmul.mubr.bf16.gmra.mxu0 %v866
        %v2228 = vpop.f32.mrf.mxu0
        %v2229 = vadd.f32 %v610, %v2228
        %v2230 = vpop.f32.mrf.mxu0
        %v2231 = vadd.f32 %v614, %v2230
        %v2232 = vpop.f32.mrf.mxu0
        %v2233 = vadd.f32 %v610, %v2232
        %v2234 = vpop.f32.mrf.mxu0
        %v2235 = vadd.f32 %v614, %v2234
        %2236 = vmatprep.mubr.bf16.mxu0 %v871
        %2237 = vmatmul.mubr.bf16.gmra.mxu0 %v870
        %v2238 = vpop.f32.mrf.mxu0
        %v2239 = vadd.f32 %v610, %v2238
        %v2240 = vpop.f32.mrf.mxu0
        %v2241 = vadd.f32 %v614, %v2240
        %v2242 = vpop.f32.mrf.mxu0
        %v2243 = vadd.f32 %v610, %v2242
        %v2244 = vpop.f32.mrf.mxu0
        %v2245 = vadd.f32 %v614, %v2244
        %2246 = vmatprep.mubr.bf16.mxu0 %v875
        %2247 = vmatmul.mubr.bf16.gmra.mxu0 %v874
        %v2248 = vpop.f32.mrf.mxu0
        %v2249 = vadd.f32 %v610, %v2248
        %v2250 = vpop.f32.mrf.mxu0
        %v2251 = vadd.f32 %v614, %v2250
        %v2252 = vpop.f32.mrf.mxu0
        %v2253 = vadd.f32 %v610, %v2252
        %v2254 = vpop.f32.mrf.mxu0
        %v2255 = vadd.f32 %v614, %v2254
        %2256 = vmatprep.mubr.bf16.mxu0 %v879
        %2257 = vmatmul.mubr.bf16.gmra.mxu0 %v878
        %v2258 = vpop.f32.mrf.mxu0
        %v2259 = vadd.f32 %v610, %v2258
        %v2260 = vpop.f32.mrf.mxu0
        %v2261 = vadd.f32 %v614, %v2260
        %v2262 = vpop.f32.mrf.mxu0
        %v2263 = vadd.f32 %v610, %v2262
        %v2264 = vpop.f32.mrf.mxu0
        %v2265 = vadd.f32 %v614, %v2264
        %2266 = vmatprep.mubr.bf16.mxu0 %v883
        %2267 = vmatmul.mubr.bf16.gmra.mxu0 %v882
        %v2268 = vpop.f32.mrf.mxu0
        %v2269 = vadd.f32 %v610, %v2268
        %v2270 = vpop.f32.mrf.mxu0
        %v2271 = vadd.f32 %v614, %v2270
        %v2272 = vpop.f32.mrf.mxu0
        %v2273 = vadd.f32 %v610, %v2272
        %v2274 = vpop.f32.mrf.mxu0
        %v2275 = vadd.f32 %v614, %v2274
        %2276 = vmatprep.mubr.bf16.mxu0 %v887
        %2277 = vmatmul.mubr.bf16.gmra.mxu0 %v886
        %v2278 = vpop.f32.mrf.mxu0
        %v2279 = vadd.f32 %v610, %v2278
        %v2280 = vpop.f32.mrf.mxu0
        %v2281 = vadd.f32 %v614, %v2280
        %v2282 = vpop.f32.mrf.mxu0
        %v2283 = vadd.f32 %v610, %v2282
        %v2284 = vpop.f32.mrf.mxu0
        %v2285 = vadd.f32 %v614, %v2284
        %2286 = vmatprep.mubr.bf16.mxu0 %v891
        %2287 = vmatmul.mubr.bf16.gmra.mxu0 %v890
        %v2288 = vpop.f32.mrf.mxu0
        %v2289 = vadd.f32 %v610, %v2288
        %v2290 = vpop.f32.mrf.mxu0
        %v2291 = vadd.f32 %v614, %v2290
        %v2292 = vpop.f32.mrf.mxu0
        %v2293 = vadd.f32 %v610, %v2292
        %v2294 = vpop.f32.mrf.mxu0
        %v2295 = vadd.f32 %v614, %v2294
        %2296 = vmatprep.mubr.bf16.mxu0 %v895
        %2297 = vmatmul.mubr.bf16.gmra.mxu0 %v894
        %v2298 = vpop.f32.mrf.mxu0
        %v2299 = vadd.f32 %v610, %v2298
        %v2300 = vpop.f32.mrf.mxu0
        %v2301 = vadd.f32 %v614, %v2300
        %v2302 = vpop.f32.mrf.mxu0
        %v2303 = vadd.f32 %v610, %v2302
        %v2304 = vpop.f32.mrf.mxu0
        %v2305 = vadd.f32 %v614, %v2304
        %2306 = vdwg.mxu0
        %2307 = vmatprep.subr.bf16.mxu0 %v1828
        %2308 = vmatpush1.bf16.msra.mxu0 %v1827
        %2309 = vmatprep.subr.bf16.mxu0 %v1821
        %2310 = vmatpush1.bf16.msra.mxu0 %v1820
        %2311 = vmatprep.subr.bf16.mxu0 %v1814
        %2312 = vmatpush1.bf16.msra.mxu0 %v1813
        %2313 = vmatprep.subr.bf16.mxu0 %v1807
        %2314 = vmatpush1.bf16.msra.mxu0 %v1806
        %2315 = vmatprep.subr.bf16.mxu0 %v1800
        %2316 = vmatpush1.bf16.msra.mxu0 %v1799
        %2317 = vmatprep.subr.bf16.mxu0 %v1793
        %2318 = vmatpush1.bf16.msra.mxu0 %v1792
        %2319 = vmatprep.subr.bf16.mxu0 %v1786
        %2320 = vmatpush1.bf16.msra.mxu0 %v1785
        %2321 = vmatprep.subr.bf16.mxu0 %v1779
        %2322 = vmatpush1.bf16.msra.mxu0 %v1778
        %2323 = vmatprep.subr.bf16.mxu0 %v1884
        %2324 = vmatpush2.bf16.msra.mxu0 %v1883
        %2325 = vmatprep.subr.bf16.mxu0 %v1877
        %2326 = vmatpush2.bf16.msra.mxu0 %v1876
        %2327 = vmatprep.subr.bf16.mxu0 %v1870
        %2328 = vmatpush2.bf16.msra.mxu0 %v1869
        %2329 = vmatprep.subr.bf16.mxu0 %v1863
        %2330 = vmatpush2.bf16.msra.mxu0 %v1862
        %2331 = vmatprep.subr.bf16.mxu0 %v1856
        %2332 = vmatpush2.bf16.msra.mxu0 %v1855
        %2333 = vmatprep.subr.bf16.mxu0 %v1849
        %2334 = vmatpush2.bf16.msra.mxu0 %v1848
        %2335 = vmatprep.subr.bf16.mxu0 %v1842
        %2336 = vmatpush2.bf16.msra.mxu0 %v1841
        %2337 = vmatprep.subr.bf16.mxu0 %v1835
        %2338 = vmatpush2.bf16.msra.mxu0 %v1834
        %2339 = vmatprep.mubr.bf16.mxu0 %v837
        %2340 = vmatmul.mubr.bf16.gmra.mxu0 %v836
        %v2341 = vpop.f32.mrf.mxu0
        %v2342 = vadd.f32 %v2149, %v2341
        %v2343 = vpop.f32.mrf.mxu0
        %v2344 = vadd.f32 %v2151, %v2343
        %v2345 = vpop.f32.mrf.mxu0
        %v2346 = vadd.f32 %v2153, %v2345
        %v2347 = vpop.f32.mrf.mxu0
        %v2348 = vadd.f32 %v2155, %v2347
        %2349 = vmatprep.mubr.bf16.mxu0 %v841
        %2350 = vmatmul.mubr.bf16.gmra.mxu0 %v840
        %v2351 = vpop.f32.mrf.mxu0
        %v2352 = vadd.f32 %v2159, %v2351
        %v2353 = vpop.f32.mrf.mxu0
        %v2354 = vadd.f32 %v2161, %v2353
        %v2355 = vpop.f32.mrf.mxu0
        %v2356 = vadd.f32 %v2163, %v2355
        %v2357 = vpop.f32.mrf.mxu0
        %v2358 = vadd.f32 %v2165, %v2357
        %2359 = vmatprep.mubr.bf16.mxu0 %v845
        %2360 = vmatmul.mubr.bf16.gmra.mxu0 %v844
        %v2361 = vpop.f32.mrf.mxu0
        %v2362 = vadd.f32 %v2169, %v2361
        %v2363 = vpop.f32.mrf.mxu0
        %v2364 = vadd.f32 %v2171, %v2363
        %v2365 = vpop.f32.mrf.mxu0
        %v2366 = vadd.f32 %v2173, %v2365
        %v2367 = vpop.f32.mrf.mxu0
        %v2368 = vadd.f32 %v2175, %v2367
        %2369 = vmatprep.mubr.bf16.mxu0 %v849
        %2370 = vmatmul.mubr.bf16.gmra.mxu0 %v848
        %v2371 = vpop.f32.mrf.mxu0
        %v2372 = vadd.f32 %v2179, %v2371
        %v2373 = vpop.f32.mrf.mxu0
        %v2374 = vadd.f32 %v2181, %v2373
        %v2375 = vpop.f32.mrf.mxu0
        %v2376 = vadd.f32 %v2183, %v2375
        %v2377 = vpop.f32.mrf.mxu0
        %v2378 = vadd.f32 %v2185, %v2377
        %2379 = vmatprep.mubr.bf16.mxu0 %v853
        %2380 = vmatmul.mubr.bf16.gmra.mxu0 %v852
        %v2381 = vpop.f32.mrf.mxu0
        %v2382 = vadd.f32 %v2189, %v2381
        %v2383 = vpop.f32.mrf.mxu0
        %v2384 = vadd.f32 %v2191, %v2383
        %v2385 = vpop.f32.mrf.mxu0
        %v2386 = vadd.f32 %v2193, %v2385
        %v2387 = vpop.f32.mrf.mxu0
        %v2388 = vadd.f32 %v2195, %v2387
        %2389 = vmatprep.mubr.bf16.mxu0 %v857
        %2390 = vmatmul.mubr.bf16.gmra.mxu0 %v856
        %v2391 = vpop.f32.mrf.mxu0
        %v2392 = vadd.f32 %v2199, %v2391
        %v2393 = vpop.f32.mrf.mxu0
        %v2394 = vadd.f32 %v2201, %v2393
        %v2395 = vpop.f32.mrf.mxu0
        %v2396 = vadd.f32 %v2203, %v2395
        %v2397 = vpop.f32.mrf.mxu0
        %v2398 = vadd.f32 %v2205, %v2397
        %2399 = vmatprep.mubr.bf16.mxu0 %v861
        %2400 = vmatmul.mubr.bf16.gmra.mxu0 %v860
        %v2401 = vpop.f32.mrf.mxu0
        %v2402 = vadd.f32 %v2209, %v2401
        %v2403 = vpop.f32.mrf.mxu0
        %v2404 = vadd.f32 %v2211, %v2403
        %v2405 = vpop.f32.mrf.mxu0
        %v2406 = vadd.f32 %v2213, %v2405
        %v2407 = vpop.f32.mrf.mxu0
        %v2408 = vadd.f32 %v2215, %v2407
        %2409 = vmatprep.mubr.bf16.mxu0 %v865
        %2410 = vmatmul.mubr.bf16.gmra.mxu0 %v864
        %v2411 = vpop.f32.mrf.mxu0
        %v2412 = vadd.f32 %v2219, %v2411
        %v2413 = vpop.f32.mrf.mxu0
        %v2414 = vadd.f32 %v2221, %v2413
        %v2415 = vpop.f32.mrf.mxu0
        %v2416 = vadd.f32 %v2223, %v2415
        %v2417 = vpop.f32.mrf.mxu0
        %v2418 = vadd.f32 %v2225, %v2417
        %2419 = vmatprep.mubr.bf16.mxu0 %v869
        %2420 = vmatmul.mubr.bf16.gmra.mxu0 %v868
        %v2421 = vpop.f32.mrf.mxu0
        %v2422 = vadd.f32 %v2229, %v2421
        %v2423 = vpop.f32.mrf.mxu0
        %v2424 = vadd.f32 %v2231, %v2423
        %v2425 = vpop.f32.mrf.mxu0
        %v2426 = vadd.f32 %v2233, %v2425
        %v2427 = vpop.f32.mrf.mxu0
        %v2428 = vadd.f32 %v2235, %v2427
        %2429 = vmatprep.mubr.bf16.mxu0 %v873
        %2430 = vmatmul.mubr.bf16.gmra.mxu0 %v872
        %v2431 = vpop.f32.mrf.mxu0
        %v2432 = vadd.f32 %v2239, %v2431
        %v2433 = vpop.f32.mrf.mxu0
        %v2434 = vadd.f32 %v2241, %v2433
        %v2435 = vpop.f32.mrf.mxu0
        %v2436 = vadd.f32 %v2243, %v2435
        %v2437 = vpop.f32.mrf.mxu0
        %v2438 = vadd.f32 %v2245, %v2437
        %2439 = vmatprep.mubr.bf16.mxu0 %v877
        %2440 = vmatmul.mubr.bf16.gmra.mxu0 %v876
        %v2441 = vpop.f32.mrf.mxu0
        %v2442 = vadd.f32 %v2249, %v2441
        %v2443 = vpop.f32.mrf.mxu0
        %v2444 = vadd.f32 %v2251, %v2443
        %v2445 = vpop.f32.mrf.mxu0
        %v2446 = vadd.f32 %v2253, %v2445
        %v2447 = vpop.f32.mrf.mxu0
        %v2448 = vadd.f32 %v2255, %v2447
        %2449 = vmatprep.mubr.bf16.mxu0 %v881
        %2450 = vmatmul.mubr.bf16.gmra.mxu0 %v880
        %v2451 = vpop.f32.mrf.mxu0
        %v2452 = vadd.f32 %v2259, %v2451
        %v2453 = vpop.f32.mrf.mxu0
        %v2454 = vadd.f32 %v2261, %v2453
        %v2455 = vpop.f32.mrf.mxu0
        %v2456 = vadd.f32 %v2263, %v2455
        %v2457 = vpop.f32.mrf.mxu0
        %v2458 = vadd.f32 %v2265, %v2457
        %2459 = vmatprep.mubr.bf16.mxu0 %v885
        %2460 = vmatmul.mubr.bf16.gmra.mxu0 %v884
        %v2461 = vpop.f32.mrf.mxu0
        %v2462 = vadd.f32 %v2269, %v2461
        %v2463 = vpop.f32.mrf.mxu0
        %v2464 = vadd.f32 %v2271, %v2463
        %v2465 = vpop.f32.mrf.mxu0
        %v2466 = vadd.f32 %v2273, %v2465
        %v2467 = vpop.f32.mrf.mxu0
        %v2468 = vadd.f32 %v2275, %v2467
        %2469 = vmatprep.mubr.bf16.mxu0 %v889
        %2470 = vmatmul.mubr.bf16.gmra.mxu0 %v888
        %v2471 = vpop.f32.mrf.mxu0
        %v2472 = vadd.f32 %v2279, %v2471
        %v2473 = vpop.f32.mrf.mxu0
        %v2474 = vadd.f32 %v2281, %v2473
        %v2475 = vpop.f32.mrf.mxu0
        %v2476 = vadd.f32 %v2283, %v2475
        %v2477 = vpop.f32.mrf.mxu0
        %v2478 = vadd.f32 %v2285, %v2477
        %2479 = vmatprep.mubr.bf16.mxu0 %v893
        %2480 = vmatmul.mubr.bf16.gmra.mxu0 %v892
        %v2481 = vpop.f32.mrf.mxu0
        %v2482 = vadd.f32 %v2289, %v2481
        %v2483 = vpop.f32.mrf.mxu0
        %v2484 = vadd.f32 %v2291, %v2483
        %v2485 = vpop.f32.mrf.mxu0
        %v2486 = vadd.f32 %v2293, %v2485
        %v2487 = vpop.f32.mrf.mxu0
        %v2488 = vadd.f32 %v2295, %v2487
        %2489 = vmatprep.mubr.bf16.mxu0 %v897
        %2490 = vmatmul.mubr.bf16.gmra.mxu0 %v896
        %v2491 = vpop.f32.mrf.mxu0
        %v2492 = vadd.f32 %v2299, %v2491
        %v2493 = vpop.f32.mrf.mxu0
        %v2494 = vadd.f32 %v2301, %v2493
        %v2495 = vpop.f32.mrf.mxu0
        %v2496 = vadd.f32 %v2303, %v2495
        %v2497 = vpop.f32.mrf.mxu0
        %v2498 = vadd.f32 %v2305, %v2497
        %2499 = vdwg.mxu0
        %2500 = vmatprep.subr.bf16.mxu0 %v1718
        %2501 = vmatpush1.bf16.msra.mxu0 %v1717
        %2502 = vmatprep.subr.bf16.mxu0 %v1711
        %2503 = vmatpush1.bf16.msra.mxu0 %v1710
        %2504 = vmatprep.subr.bf16.mxu0 %v1704
        %2505 = vmatpush1.bf16.msra.mxu0 %v1703
        %2506 = vmatprep.subr.bf16.mxu0 %v1697
        %2507 = vmatpush1.bf16.msra.mxu0 %v1696
        %2508 = vmatprep.subr.bf16.mxu0 %v1690
        %2509 = vmatpush1.bf16.msra.mxu0 %v1689
        %2510 = vmatprep.subr.bf16.mxu0 %v1683
        %2511 = vmatpush1.bf16.msra.mxu0 %v1682
        %2512 = vmatprep.subr.bf16.mxu0 %v1676
        %2513 = vmatpush1.bf16.msra.mxu0 %v1675
        %2514 = vmatprep.subr.bf16.mxu0 %v1669
        %2515 = vmatpush1.bf16.msra.mxu0 %v1668
        %2516 = vmatprep.subr.bf16.mxu0 %v1774
        %2517 = vmatpush2.bf16.msra.mxu0 %v1773
        %2518 = vmatprep.subr.bf16.mxu0 %v1767
        %2519 = vmatpush2.bf16.msra.mxu0 %v1766
        %2520 = vmatprep.subr.bf16.mxu0 %v1760
        %2521 = vmatpush2.bf16.msra.mxu0 %v1759
        %2522 = vmatprep.subr.bf16.mxu0 %v1753
        %2523 = vmatpush2.bf16.msra.mxu0 %v1752
        %2524 = vmatprep.subr.bf16.mxu0 %v1746
        %2525 = vmatpush2.bf16.msra.mxu0 %v1745
        %2526 = vmatprep.subr.bf16.mxu0 %v1739
        %2527 = vmatpush2.bf16.msra.mxu0 %v1738
        %2528 = vmatprep.subr.bf16.mxu0 %v1732
        %2529 = vmatpush2.bf16.msra.mxu0 %v1731
        %2530 = vmatprep.subr.bf16.mxu0 %v1725
        %2531 = vmatpush2.bf16.msra.mxu0 %v1724
        %2532 = vmatprep.mubr.bf16.mxu0 %v835
        %2533 = vmatmul.mubr.bf16.gmra.mxu0 %v834
        %v2534 = vpop.f32.mrf.mxu0
        %v2535 = vadd.f32 %v618, %v2534
        %v2536 = vpop.f32.mrf.mxu0
        %v2537 = vadd.f32 %v622, %v2536
        %v2538 = vpop.f32.mrf.mxu0
        %v2539 = vadd.f32 %v618, %v2538
        %v2540 = vpop.f32.mrf.mxu0
        %v2541 = vadd.f32 %v622, %v2540
        %2542 = vmatprep.mubr.bf16.mxu0 %v839
        %2543 = vmatmul.mubr.bf16.gmra.mxu0 %v838
        %v2544 = vpop.f32.mrf.mxu0
        %v2545 = vadd.f32 %v618, %v2544
        %v2546 = vpop.f32.mrf.mxu0
        %v2547 = vadd.f32 %v622, %v2546
        %v2548 = vpop.f32.mrf.mxu0
        %v2549 = vadd.f32 %v618, %v2548
        %v2550 = vpop.f32.mrf.mxu0
        %v2551 = vadd.f32 %v622, %v2550
        %2552 = vmatprep.mubr.bf16.mxu0 %v843
        %2553 = vmatmul.mubr.bf16.gmra.mxu0 %v842
        %v2554 = vpop.f32.mrf.mxu0
        %v2555 = vadd.f32 %v618, %v2554
        %v2556 = vpop.f32.mrf.mxu0
        %v2557 = vadd.f32 %v622, %v2556
        %v2558 = vpop.f32.mrf.mxu0
        %v2559 = vadd.f32 %v618, %v2558
        %v2560 = vpop.f32.mrf.mxu0
        %v2561 = vadd.f32 %v622, %v2560
        %2562 = vmatprep.mubr.bf16.mxu0 %v847
        %2563 = vmatmul.mubr.bf16.gmra.mxu0 %v846
        %v2564 = vpop.f32.mrf.mxu0
        %v2565 = vadd.f32 %v618, %v2564
        %v2566 = vpop.f32.mrf.mxu0
        %v2567 = vadd.f32 %v622, %v2566
        %v2568 = vpop.f32.mrf.mxu0
        %v2569 = vadd.f32 %v618, %v2568
        %v2570 = vpop.f32.mrf.mxu0
        %v2571 = vadd.f32 %v622, %v2570
        %2572 = vmatprep.mubr.bf16.mxu0 %v851
        %2573 = vmatmul.mubr.bf16.gmra.mxu0 %v850
        %v2574 = vpop.f32.mrf.mxu0
        %v2575 = vadd.f32 %v618, %v2574
        %v2576 = vpop.f32.mrf.mxu0
        %v2577 = vadd.f32 %v622, %v2576
        %v2578 = vpop.f32.mrf.mxu0
        %v2579 = vadd.f32 %v618, %v2578
        %v2580 = vpop.f32.mrf.mxu0
        %v2581 = vadd.f32 %v622, %v2580
        %2582 = vmatprep.mubr.bf16.mxu0 %v855
        %2583 = vmatmul.mubr.bf16.gmra.mxu0 %v854
        %v2584 = vpop.f32.mrf.mxu0
        %v2585 = vadd.f32 %v618, %v2584
        %v2586 = vpop.f32.mrf.mxu0
        %v2587 = vadd.f32 %v622, %v2586
        %v2588 = vpop.f32.mrf.mxu0
        %v2589 = vadd.f32 %v618, %v2588
        %v2590 = vpop.f32.mrf.mxu0
        %v2591 = vadd.f32 %v622, %v2590
        %2592 = vmatprep.mubr.bf16.mxu0 %v859
        %2593 = vmatmul.mubr.bf16.gmra.mxu0 %v858
        %v2594 = vpop.f32.mrf.mxu0
        %v2595 = vadd.f32 %v618, %v2594
        %v2596 = vpop.f32.mrf.mxu0
        %v2597 = vadd.f32 %v622, %v2596
        %v2598 = vpop.f32.mrf.mxu0
        %v2599 = vadd.f32 %v618, %v2598
        %v2600 = vpop.f32.mrf.mxu0
        %v2601 = vadd.f32 %v622, %v2600
        %2602 = vmatprep.mubr.bf16.mxu0 %v863
        %2603 = vmatmul.mubr.bf16.gmra.mxu0 %v862
        %v2604 = vpop.f32.mrf.mxu0
        %v2605 = vadd.f32 %v618, %v2604
        %v2606 = vpop.f32.mrf.mxu0
        %v2607 = vadd.f32 %v622, %v2606
        %v2608 = vpop.f32.mrf.mxu0
        %v2609 = vadd.f32 %v618, %v2608
        %v2610 = vpop.f32.mrf.mxu0
        %v2611 = vadd.f32 %v622, %v2610
        %2612 = vmatprep.mubr.bf16.mxu0 %v867
        %2613 = vmatmul.mubr.bf16.gmra.mxu0 %v866
        %v2614 = vpop.f32.mrf.mxu0
        %v2615 = vadd.f32 %v618, %v2614
        %v2616 = vpop.f32.mrf.mxu0
        %v2617 = vadd.f32 %v622, %v2616
        %v2618 = vpop.f32.mrf.mxu0
        %v2619 = vadd.f32 %v618, %v2618
        %v2620 = vpop.f32.mrf.mxu0
        %v2621 = vadd.f32 %v622, %v2620
        %2622 = vmatprep.mubr.bf16.mxu0 %v871
        %2623 = vmatmul.mubr.bf16.gmra.mxu0 %v870
        %v2624 = vpop.f32.mrf.mxu0
        %v2625 = vadd.f32 %v618, %v2624
        %v2626 = vpop.f32.mrf.mxu0
        %v2627 = vadd.f32 %v622, %v2626
        %v2628 = vpop.f32.mrf.mxu0
        %v2629 = vadd.f32 %v618, %v2628
        %v2630 = vpop.f32.mrf.mxu0
        %v2631 = vadd.f32 %v622, %v2630
        %2632 = vmatprep.mubr.bf16.mxu0 %v875
        %2633 = vmatmul.mubr.bf16.gmra.mxu0 %v874
        %v2634 = vpop.f32.mrf.mxu0
        %v2635 = vadd.f32 %v618, %v2634
        %v2636 = vpop.f32.mrf.mxu0
        %v2637 = vadd.f32 %v622, %v2636
        %v2638 = vpop.f32.mrf.mxu0
        %v2639 = vadd.f32 %v618, %v2638
        %v2640 = vpop.f32.mrf.mxu0
        %v2641 = vadd.f32 %v622, %v2640
        %2642 = vmatprep.mubr.bf16.mxu0 %v879
        %2643 = vmatmul.mubr.bf16.gmra.mxu0 %v878
        %v2644 = vpop.f32.mrf.mxu0
        %v2645 = vadd.f32 %v618, %v2644
        %v2646 = vpop.f32.mrf.mxu0
        %v2647 = vadd.f32 %v622, %v2646
        %v2648 = vpop.f32.mrf.mxu0
        %v2649 = vadd.f32 %v618, %v2648
        %v2650 = vpop.f32.mrf.mxu0
        %v2651 = vadd.f32 %v622, %v2650
        %2652 = vmatprep.mubr.bf16.mxu0 %v883
        %2653 = vmatmul.mubr.bf16.gmra.mxu0 %v882
        %v2654 = vpop.f32.mrf.mxu0
        %v2655 = vadd.f32 %v618, %v2654
        %v2656 = vpop.f32.mrf.mxu0
        %v2657 = vadd.f32 %v622, %v2656
        %v2658 = vpop.f32.mrf.mxu0
        %v2659 = vadd.f32 %v618, %v2658
        %v2660 = vpop.f32.mrf.mxu0
        %v2661 = vadd.f32 %v622, %v2660
        %2662 = vmatprep.mubr.bf16.mxu0 %v887
        %2663 = vmatmul.mubr.bf16.gmra.mxu0 %v886
        %v2664 = vpop.f32.mrf.mxu0
        %v2665 = vadd.f32 %v618, %v2664
        %v2666 = vpop.f32.mrf.mxu0
        %v2667 = vadd.f32 %v622, %v2666
        %v2668 = vpop.f32.mrf.mxu0
        %v2669 = vadd.f32 %v618, %v2668
        %v2670 = vpop.f32.mrf.mxu0
        %v2671 = vadd.f32 %v622, %v2670
        %2672 = vmatprep.mubr.bf16.mxu0 %v891
        %2673 = vmatmul.mubr.bf16.gmra.mxu0 %v890
        %v2674 = vpop.f32.mrf.mxu0
        %v2675 = vadd.f32 %v618, %v2674
        %v2676 = vpop.f32.mrf.mxu0
        %v2677 = vadd.f32 %v622, %v2676
        %v2678 = vpop.f32.mrf.mxu0
        %v2679 = vadd.f32 %v618, %v2678
        %v2680 = vpop.f32.mrf.mxu0
        %v2681 = vadd.f32 %v622, %v2680
        %2682 = vmatprep.mubr.bf16.mxu0 %v895
        %2683 = vmatmul.mubr.bf16.gmra.mxu0 %v894
        %v2684 = vpop.f32.mrf.mxu0
        %v2685 = vadd.f32 %v618, %v2684
        %v2686 = vpop.f32.mrf.mxu0
        %v2687 = vadd.f32 %v622, %v2686
        %v2688 = vpop.f32.mrf.mxu0
        %v2689 = vadd.f32 %v618, %v2688
        %v2690 = vpop.f32.mrf.mxu0
        %v2691 = vadd.f32 %v622, %v2690
        %2692 = vdwg.mxu0
        %2693 = vmatprep.subr.bf16.mxu0 %v1830
        %2694 = vmatpush1.bf16.msra.mxu0 %v1829
        %2695 = vmatprep.subr.bf16.mxu0 %v1823
        %2696 = vmatpush1.bf16.msra.mxu0 %v1822
        %2697 = vmatprep.subr.bf16.mxu0 %v1816
        %2698 = vmatpush1.bf16.msra.mxu0 %v1815
        %2699 = vmatprep.subr.bf16.mxu0 %v1809
        %2700 = vmatpush1.bf16.msra.mxu0 %v1808
        %2701 = vmatprep.subr.bf16.mxu0 %v1802
        %2702 = vmatpush1.bf16.msra.mxu0 %v1801
        %2703 = vmatprep.subr.bf16.mxu0 %v1795
        %2704 = vmatpush1.bf16.msra.mxu0 %v1794
        %2705 = vmatprep.subr.bf16.mxu0 %v1788
        %2706 = vmatpush1.bf16.msra.mxu0 %v1787
        %2707 = vmatprep.subr.bf16.mxu0 %v1781
        %2708 = vmatpush1.bf16.msra.mxu0 %v1780
        %2709 = vmatprep.subr.bf16.mxu0 %v1886
        %2710 = vmatpush2.bf16.msra.mxu0 %v1885
        %2711 = vmatprep.subr.bf16.mxu0 %v1879
        %2712 = vmatpush2.bf16.msra.mxu0 %v1878
        %2713 = vmatprep.subr.bf16.mxu0 %v1872
        %2714 = vmatpush2.bf16.msra.mxu0 %v1871
        %2715 = vmatprep.subr.bf16.mxu0 %v1865
        %2716 = vmatpush2.bf16.msra.mxu0 %v1864
        %2717 = vmatprep.subr.bf16.mxu0 %v1858
        %2718 = vmatpush2.bf16.msra.mxu0 %v1857
        %2719 = vmatprep.subr.bf16.mxu0 %v1851
        %2720 = vmatpush2.bf16.msra.mxu0 %v1850
        %2721 = vmatprep.subr.bf16.mxu0 %v1844
        %2722 = vmatpush2.bf16.msra.mxu0 %v1843
        %2723 = vmatprep.subr.bf16.mxu0 %v1837
        %2724 = vmatpush2.bf16.msra.mxu0 %v1836
        %2725 = vmatprep.mubr.bf16.mxu0 %v837
        %2726 = vmatmul.mubr.bf16.gmra.mxu0 %v836
        %v2727 = vpop.f32.mrf.mxu0
        %v2728 = vadd.f32 %v2535, %v2727
        %v2729 = vpop.f32.mrf.mxu0
        %v2730 = vadd.f32 %v2537, %v2729
        %v2731 = vpop.f32.mrf.mxu0
        %v2732 = vadd.f32 %v2539, %v2731
        %v2733 = vpop.f32.mrf.mxu0
        %v2734 = vadd.f32 %v2541, %v2733
        %2735 = vmatprep.mubr.bf16.mxu0 %v841
        %2736 = vmatmul.mubr.bf16.gmra.mxu0 %v840
        %v2737 = vpop.f32.mrf.mxu0
        %v2738 = vadd.f32 %v2545, %v2737
        %v2739 = vpop.f32.mrf.mxu0
        %v2740 = vadd.f32 %v2547, %v2739
        %v2741 = vpop.f32.mrf.mxu0
        %v2742 = vadd.f32 %v2549, %v2741
        %v2743 = vpop.f32.mrf.mxu0
        %v2744 = vadd.f32 %v2551, %v2743
        %2745 = vmatprep.mubr.bf16.mxu0 %v845
        %2746 = vmatmul.mubr.bf16.gmra.mxu0 %v844
        %v2747 = vpop.f32.mrf.mxu0
        %v2748 = vadd.f32 %v2555, %v2747
        %v2749 = vpop.f32.mrf.mxu0
        %v2750 = vadd.f32 %v2557, %v2749
        %v2751 = vpop.f32.mrf.mxu0
        %v2752 = vadd.f32 %v2559, %v2751
        %v2753 = vpop.f32.mrf.mxu0
        %v2754 = vadd.f32 %v2561, %v2753
        %2755 = vmatprep.mubr.bf16.mxu0 %v849
        %2756 = vmatmul.mubr.bf16.gmra.mxu0 %v848
        %v2757 = vpop.f32.mrf.mxu0
        %v2758 = vadd.f32 %v2565, %v2757
        %v2759 = vpop.f32.mrf.mxu0
        %v2760 = vadd.f32 %v2567, %v2759
        %v2761 = vpop.f32.mrf.mxu0
        %v2762 = vadd.f32 %v2569, %v2761
        %v2763 = vpop.f32.mrf.mxu0
        %v2764 = vadd.f32 %v2571, %v2763
        %2765 = vmatprep.mubr.bf16.mxu0 %v853
        %2766 = vmatmul.mubr.bf16.gmra.mxu0 %v852
        %v2767 = vpop.f32.mrf.mxu0
        %v2768 = vadd.f32 %v2575, %v2767
        %v2769 = vpop.f32.mrf.mxu0
        %v2770 = vadd.f32 %v2577, %v2769
        %v2771 = vpop.f32.mrf.mxu0
        %v2772 = vadd.f32 %v2579, %v2771
        %v2773 = vpop.f32.mrf.mxu0
        %v2774 = vadd.f32 %v2581, %v2773
        %2775 = vmatprep.mubr.bf16.mxu0 %v857
        %2776 = vmatmul.mubr.bf16.gmra.mxu0 %v856
        %v2777 = vpop.f32.mrf.mxu0
        %v2778 = vadd.f32 %v2585, %v2777
        %v2779 = vpop.f32.mrf.mxu0
        %v2780 = vadd.f32 %v2587, %v2779
        %v2781 = vpop.f32.mrf.mxu0
        %v2782 = vadd.f32 %v2589, %v2781
        %v2783 = vpop.f32.mrf.mxu0
        %v2784 = vadd.f32 %v2591, %v2783
        %2785 = vmatprep.mubr.bf16.mxu0 %v861
        %2786 = vmatmul.mubr.bf16.gmra.mxu0 %v860
        %v2787 = vpop.f32.mrf.mxu0
        %v2788 = vadd.f32 %v2595, %v2787
        %v2789 = vpop.f32.mrf.mxu0
        %v2790 = vadd.f32 %v2597, %v2789
        %v2791 = vpop.f32.mrf.mxu0
        %v2792 = vadd.f32 %v2599, %v2791
        %v2793 = vpop.f32.mrf.mxu0
        %v2794 = vadd.f32 %v2601, %v2793
        %2795 = vmatprep.mubr.bf16.mxu0 %v865
        %2796 = vmatmul.mubr.bf16.gmra.mxu0 %v864
        %v2797 = vpop.f32.mrf.mxu0
        %v2798 = vadd.f32 %v2605, %v2797
        %v2799 = vpop.f32.mrf.mxu0
        %v2800 = vadd.f32 %v2607, %v2799
        %v2801 = vpop.f32.mrf.mxu0
        %v2802 = vadd.f32 %v2609, %v2801
        %v2803 = vpop.f32.mrf.mxu0
        %v2804 = vadd.f32 %v2611, %v2803
        %2805 = vmatprep.mubr.bf16.mxu0 %v869
        %2806 = vmatmul.mubr.bf16.gmra.mxu0 %v868
        %v2807 = vpop.f32.mrf.mxu0
        %v2808 = vadd.f32 %v2615, %v2807
        %v2809 = vpop.f32.mrf.mxu0
        %v2810 = vadd.f32 %v2617, %v2809
        %v2811 = vpop.f32.mrf.mxu0
        %v2812 = vadd.f32 %v2619, %v2811
        %v2813 = vpop.f32.mrf.mxu0
        %v2814 = vadd.f32 %v2621, %v2813
        %2815 = vmatprep.mubr.bf16.mxu0 %v873
        %2816 = vmatmul.mubr.bf16.gmra.mxu0 %v872
        %v2817 = vpop.f32.mrf.mxu0
        %v2818 = vadd.f32 %v2625, %v2817
        %v2819 = vpop.f32.mrf.mxu0
        %v2820 = vadd.f32 %v2627, %v2819
        %v2821 = vpop.f32.mrf.mxu0
        %v2822 = vadd.f32 %v2629, %v2821
        %v2823 = vpop.f32.mrf.mxu0
        %v2824 = vadd.f32 %v2631, %v2823
        %2825 = vmatprep.mubr.bf16.mxu0 %v877
        %2826 = vmatmul.mubr.bf16.gmra.mxu0 %v876
        %v2827 = vpop.f32.mrf.mxu0
        %v2828 = vadd.f32 %v2635, %v2827
        %v2829 = vpop.f32.mrf.mxu0
        %v2830 = vadd.f32 %v2637, %v2829
        %v2831 = vpop.f32.mrf.mxu0
        %v2832 = vadd.f32 %v2639, %v2831
        %v2833 = vpop.f32.mrf.mxu0
        %v2834 = vadd.f32 %v2641, %v2833
        %2835 = vmatprep.mubr.bf16.mxu0 %v881
        %2836 = vmatmul.mubr.bf16.gmra.mxu0 %v880
        %v2837 = vpop.f32.mrf.mxu0
        %v2838 = vadd.f32 %v2645, %v2837
        %v2839 = vpop.f32.mrf.mxu0
        %v2840 = vadd.f32 %v2647, %v2839
        %v2841 = vpop.f32.mrf.mxu0
        %v2842 = vadd.f32 %v2649, %v2841
        %v2843 = vpop.f32.mrf.mxu0
        %v2844 = vadd.f32 %v2651, %v2843
        %2845 = vmatprep.mubr.bf16.mxu0 %v885
        %2846 = vmatmul.mubr.bf16.gmra.mxu0 %v884
        %v2847 = vpop.f32.mrf.mxu0
        %v2848 = vadd.f32 %v2655, %v2847
        %v2849 = vpop.f32.mrf.mxu0
        %v2850 = vadd.f32 %v2657, %v2849
        %v2851 = vpop.f32.mrf.mxu0
        %v2852 = vadd.f32 %v2659, %v2851
        %v2853 = vpop.f32.mrf.mxu0
        %v2854 = vadd.f32 %v2661, %v2853
        %2855 = vmatprep.mubr.bf16.mxu0 %v889
        %2856 = vmatmul.mubr.bf16.gmra.mxu0 %v888
        %v2857 = vpop.f32.mrf.mxu0
        %v2858 = vadd.f32 %v2665, %v2857
        %v2859 = vpop.f32.mrf.mxu0
        %v2860 = vadd.f32 %v2667, %v2859
        %v2861 = vpop.f32.mrf.mxu0
        %v2862 = vadd.f32 %v2669, %v2861
        %v2863 = vpop.f32.mrf.mxu0
        %v2864 = vadd.f32 %v2671, %v2863
        %2865 = vmatprep.mubr.bf16.mxu0 %v893
        %2866 = vmatmul.mubr.bf16.gmra.mxu0 %v892
        %v2867 = vpop.f32.mrf.mxu0
        %v2868 = vadd.f32 %v2675, %v2867
        %v2869 = vpop.f32.mrf.mxu0
        %v2870 = vadd.f32 %v2677, %v2869
        %v2871 = vpop.f32.mrf.mxu0
        %v2872 = vadd.f32 %v2679, %v2871
        %v2873 = vpop.f32.mrf.mxu0
        %v2874 = vadd.f32 %v2681, %v2873
        %2875 = vmatprep.mubr.bf16.mxu0 %v897
        %2876 = vmatmul.mubr.bf16.gmra.mxu0 %v896
        %v2877 = vpop.f32.mrf.mxu0
        %v2878 = vadd.f32 %v2685, %v2877
        %v2879 = vpop.f32.mrf.mxu0
        %v2880 = vadd.f32 %v2687, %v2879
        %v2881 = vpop.f32.mrf.mxu0
        %v2882 = vadd.f32 %v2689, %v2881
        %v2883 = vpop.f32.mrf.mxu0
        %v2884 = vadd.f32 %v2691, %v2883
        %2885 = vdwg.mxu0
        %2886 = vmatprep.subr.bf16.mxu0 %v1720
        %2887 = vmatpush1.bf16.msra.mxu0 %v1719
        %2888 = vmatprep.subr.bf16.mxu0 %v1713
        %2889 = vmatpush1.bf16.msra.mxu0 %v1712
        %2890 = vmatprep.subr.bf16.mxu0 %v1706
        %2891 = vmatpush1.bf16.msra.mxu0 %v1705
        %2892 = vmatprep.subr.bf16.mxu0 %v1699
        %2893 = vmatpush1.bf16.msra.mxu0 %v1698
        %2894 = vmatprep.subr.bf16.mxu0 %v1692
        %2895 = vmatpush1.bf16.msra.mxu0 %v1691
        %2896 = vmatprep.subr.bf16.mxu0 %v1685
        %2897 = vmatpush1.bf16.msra.mxu0 %v1684
        %2898 = vmatprep.subr.bf16.mxu0 %v1678
        %2899 = vmatpush1.bf16.msra.mxu0 %v1677
        %2900 = vmatprep.subr.bf16.mxu0 %v1671
        %2901 = vmatpush1.bf16.msra.mxu0 %v1670
        %2902 = vmatprep.subr.bf16.mxu0 %v1776
        %2903 = vmatpush2.bf16.msra.mxu0 %v1775
        %2904 = vmatprep.subr.bf16.mxu0 %v1769
        %2905 = vmatpush2.bf16.msra.mxu0 %v1768
        %2906 = vmatprep.subr.bf16.mxu0 %v1762
        %2907 = vmatpush2.bf16.msra.mxu0 %v1761
        %2908 = vmatprep.subr.bf16.mxu0 %v1755
        %2909 = vmatpush2.bf16.msra.mxu0 %v1754
        %2910 = vmatprep.subr.bf16.mxu0 %v1748
        %2911 = vmatpush2.bf16.msra.mxu0 %v1747
        %2912 = vmatprep.subr.bf16.mxu0 %v1741
        %2913 = vmatpush2.bf16.msra.mxu0 %v1740
        %2914 = vmatprep.subr.bf16.mxu0 %v1734
        %2915 = vmatpush2.bf16.msra.mxu0 %v1733
        %2916 = vmatprep.subr.bf16.mxu0 %v1727
        %2917 = vmatpush2.bf16.msra.mxu0 %v1726
        %2918 = vmatprep.mubr.bf16.mxu0 %v835
        %2919 = vmatmul.mubr.bf16.gmra.mxu0 %v834
        %v2920 = vpop.f32.mrf.mxu0
        %v2921 = vadd.f32 %v626, %v2920
        %v2922 = vpop.f32.mrf.mxu0
        %v2923 = vadd.f32 %v630, %v2922
        %v2924 = vpop.f32.mrf.mxu0
        %v2925 = vadd.f32 %v626, %v2924
        %v2926 = vpop.f32.mrf.mxu0
        %v2927 = vadd.f32 %v630, %v2926
        %2928 = vmatprep.mubr.bf16.mxu0 %v839
        %2929 = vmatmul.mubr.bf16.gmra.mxu0 %v838
        %v2930 = vpop.f32.mrf.mxu0
        %v2931 = vadd.f32 %v626, %v2930
        %v2932 = vpop.f32.mrf.mxu0
        %v2933 = vadd.f32 %v630, %v2932
        %v2934 = vpop.f32.mrf.mxu0
        %v2935 = vadd.f32 %v626, %v2934
        %v2936 = vpop.f32.mrf.mxu0
        %v2937 = vadd.f32 %v630, %v2936
        %2938 = vmatprep.mubr.bf16.mxu0 %v843
        %2939 = vmatmul.mubr.bf16.gmra.mxu0 %v842
        %v2940 = vpop.f32.mrf.mxu0
        %v2941 = vadd.f32 %v626, %v2940
        %v2942 = vpop.f32.mrf.mxu0
        %v2943 = vadd.f32 %v630, %v2942
        %v2944 = vpop.f32.mrf.mxu0
        %v2945 = vadd.f32 %v626, %v2944
        %v2946 = vpop.f32.mrf.mxu0
        %v2947 = vadd.f32 %v630, %v2946
        %2948 = vmatprep.mubr.bf16.mxu0 %v847
        %2949 = vmatmul.mubr.bf16.gmra.mxu0 %v846
        %v2950 = vpop.f32.mrf.mxu0
        %v2951 = vadd.f32 %v626, %v2950
        %v2952 = vpop.f32.mrf.mxu0
        %v2953 = vadd.f32 %v630, %v2952
        %v2954 = vpop.f32.mrf.mxu0
        %v2955 = vadd.f32 %v626, %v2954
        %v2956 = vpop.f32.mrf.mxu0
        %v2957 = vadd.f32 %v630, %v2956
        %2958 = vmatprep.mubr.bf16.mxu0 %v851
        %2959 = vmatmul.mubr.bf16.gmra.mxu0 %v850
        %v2960 = vpop.f32.mrf.mxu0
        %v2961 = vadd.f32 %v626, %v2960
        %v2962 = vpop.f32.mrf.mxu0
        %v2963 = vadd.f32 %v630, %v2962
        %v2964 = vpop.f32.mrf.mxu0
        %v2965 = vadd.f32 %v626, %v2964
        %v2966 = vpop.f32.mrf.mxu0
        %v2967 = vadd.f32 %v630, %v2966
        %2968 = vmatprep.mubr.bf16.mxu0 %v855
        %2969 = vmatmul.mubr.bf16.gmra.mxu0 %v854
        %v2970 = vpop.f32.mrf.mxu0
        %v2971 = vadd.f32 %v626, %v2970
        %v2972 = vpop.f32.mrf.mxu0
        %v2973 = vadd.f32 %v630, %v2972
        %v2974 = vpop.f32.mrf.mxu0
        %v2975 = vadd.f32 %v626, %v2974
        %v2976 = vpop.f32.mrf.mxu0
        %v2977 = vadd.f32 %v630, %v2976
        %2978 = vmatprep.mubr.bf16.mxu0 %v859
        %2979 = vmatmul.mubr.bf16.gmra.mxu0 %v858
        %v2980 = vpop.f32.mrf.mxu0
        %v2981 = vadd.f32 %v626, %v2980
        %v2982 = vpop.f32.mrf.mxu0
        %v2983 = vadd.f32 %v630, %v2982
        %v2984 = vpop.f32.mrf.mxu0
        %v2985 = vadd.f32 %v626, %v2984
        %v2986 = vpop.f32.mrf.mxu0
        %v2987 = vadd.f32 %v630, %v2986
        %2988 = vmatprep.mubr.bf16.mxu0 %v863
        %2989 = vmatmul.mubr.bf16.gmra.mxu0 %v862
        %v2990 = vpop.f32.mrf.mxu0
        %v2991 = vadd.f32 %v626, %v2990
        %v2992 = vpop.f32.mrf.mxu0
        %v2993 = vadd.f32 %v630, %v2992
        %v2994 = vpop.f32.mrf.mxu0
        %v2995 = vadd.f32 %v626, %v2994
        %v2996 = vpop.f32.mrf.mxu0
        %v2997 = vadd.f32 %v630, %v2996
        %2998 = vmatprep.mubr.bf16.mxu0 %v867
        %2999 = vmatmul.mubr.bf16.gmra.mxu0 %v866
        %v3000 = vpop.f32.mrf.mxu0
        %v3001 = vadd.f32 %v626, %v3000
        %v3002 = vpop.f32.mrf.mxu0
        %v3003 = vadd.f32 %v630, %v3002
        %v3004 = vpop.f32.mrf.mxu0
        %v3005 = vadd.f32 %v626, %v3004
        %v3006 = vpop.f32.mrf.mxu0
        %v3007 = vadd.f32 %v630, %v3006
        %3008 = vmatprep.mubr.bf16.mxu0 %v871
        %3009 = vmatmul.mubr.bf16.gmra.mxu0 %v870
        %v3010 = vpop.f32.mrf.mxu0
        %v3011 = vadd.f32 %v626, %v3010
        %v3012 = vpop.f32.mrf.mxu0
        %v3013 = vadd.f32 %v630, %v3012
        %v3014 = vpop.f32.mrf.mxu0
        %v3015 = vadd.f32 %v626, %v3014
        %v3016 = vpop.f32.mrf.mxu0
        %v3017 = vadd.f32 %v630, %v3016
        %3018 = vmatprep.mubr.bf16.mxu0 %v875
        %3019 = vmatmul.mubr.bf16.gmra.mxu0 %v874
        %v3020 = vpop.f32.mrf.mxu0
        %v3021 = vadd.f32 %v626, %v3020
        %v3022 = vpop.f32.mrf.mxu0
        %v3023 = vadd.f32 %v630, %v3022
        %v3024 = vpop.f32.mrf.mxu0
        %v3025 = vadd.f32 %v626, %v3024
        %v3026 = vpop.f32.mrf.mxu0
        %v3027 = vadd.f32 %v630, %v3026
        %3028 = vmatprep.mubr.bf16.mxu0 %v879
        %3029 = vmatmul.mubr.bf16.gmra.mxu0 %v878
        %v3030 = vpop.f32.mrf.mxu0
        %v3031 = vadd.f32 %v626, %v3030
        %v3032 = vpop.f32.mrf.mxu0
        %v3033 = vadd.f32 %v630, %v3032
        %v3034 = vpop.f32.mrf.mxu0
        %v3035 = vadd.f32 %v626, %v3034
        %v3036 = vpop.f32.mrf.mxu0
        %v3037 = vadd.f32 %v630, %v3036
        %3038 = vmatprep.mubr.bf16.mxu0 %v883
        %3039 = vmatmul.mubr.bf16.gmra.mxu0 %v882
        %v3040 = vpop.f32.mrf.mxu0
        %v3041 = vadd.f32 %v626, %v3040
        %v3042 = vpop.f32.mrf.mxu0
        %v3043 = vadd.f32 %v630, %v3042
        %v3044 = vpop.f32.mrf.mxu0
        %v3045 = vadd.f32 %v626, %v3044
        %v3046 = vpop.f32.mrf.mxu0
        %v3047 = vadd.f32 %v630, %v3046
        %3048 = vmatprep.mubr.bf16.mxu0 %v887
        %3049 = vmatmul.mubr.bf16.gmra.mxu0 %v886
        %v3050 = vpop.f32.mrf.mxu0
        %v3051 = vadd.f32 %v626, %v3050
        %v3052 = vpop.f32.mrf.mxu0
        %v3053 = vadd.f32 %v630, %v3052
        %v3054 = vpop.f32.mrf.mxu0
        %v3055 = vadd.f32 %v626, %v3054
        %v3056 = vpop.f32.mrf.mxu0
        %v3057 = vadd.f32 %v630, %v3056
        %3058 = vmatprep.mubr.bf16.mxu0 %v891
        %3059 = vmatmul.mubr.bf16.gmra.mxu0 %v890
        %v3060 = vpop.f32.mrf.mxu0
        %v3061 = vadd.f32 %v626, %v3060
        %v3062 = vpop.f32.mrf.mxu0
        %v3063 = vadd.f32 %v630, %v3062
        %v3064 = vpop.f32.mrf.mxu0
        %v3065 = vadd.f32 %v626, %v3064
        %v3066 = vpop.f32.mrf.mxu0
        %v3067 = vadd.f32 %v630, %v3066
        %3068 = vmatprep.mubr.bf16.mxu0 %v895
        %3069 = vmatmul.mubr.bf16.gmra.mxu0 %v894
        %v3070 = vpop.f32.mrf.mxu0
        %v3071 = vadd.f32 %v626, %v3070
        %v3072 = vpop.f32.mrf.mxu0
        %v3073 = vadd.f32 %v630, %v3072
        %v3074 = vpop.f32.mrf.mxu0
        %v3075 = vadd.f32 %v626, %v3074
        %v3076 = vpop.f32.mrf.mxu0
        %v3077 = vadd.f32 %v630, %v3076
        %3078 = vdwg.mxu0
        %3079 = vmatprep.subr.bf16.mxu0 %v1832
        %3080 = vmatpush1.bf16.msra.mxu0 %v1831
        %3081 = vmatprep.subr.bf16.mxu0 %v1825
        %3082 = vmatpush1.bf16.msra.mxu0 %v1824
        %3083 = vmatprep.subr.bf16.mxu0 %v1818
        %3084 = vmatpush1.bf16.msra.mxu0 %v1817
        %3085 = vmatprep.subr.bf16.mxu0 %v1811
        %3086 = vmatpush1.bf16.msra.mxu0 %v1810
        %3087 = vmatprep.subr.bf16.mxu0 %v1804
        %3088 = vmatpush1.bf16.msra.mxu0 %v1803
        %3089 = vmatprep.subr.bf16.mxu0 %v1797
        %3090 = vmatpush1.bf16.msra.mxu0 %v1796
        %3091 = vmatprep.subr.bf16.mxu0 %v1790
        %3092 = vmatpush1.bf16.msra.mxu0 %v1789
        %3093 = vmatprep.subr.bf16.mxu0 %v1783
        %3094 = vmatpush1.bf16.msra.mxu0 %v1782
        %3095 = vmatprep.subr.bf16.mxu0 %v1888
        %3096 = vmatpush2.bf16.msra.mxu0 %v1887
        %3097 = vmatprep.subr.bf16.mxu0 %v1881
        %3098 = vmatpush2.bf16.msra.mxu0 %v1880
        %3099 = vmatprep.subr.bf16.mxu0 %v1874
        %3100 = vmatpush2.bf16.msra.mxu0 %v1873
        %3101 = vmatprep.subr.bf16.mxu0 %v1867
        %3102 = vmatpush2.bf16.msra.mxu0 %v1866
        %3103 = vmatprep.subr.bf16.mxu0 %v1860
        %3104 = vmatpush2.bf16.msra.mxu0 %v1859
        %3105 = vmatprep.subr.bf16.mxu0 %v1853
        %3106 = vmatpush2.bf16.msra.mxu0 %v1852
        %3107 = vmatprep.subr.bf16.mxu0 %v1846
        %3108 = vmatpush2.bf16.msra.mxu0 %v1845
        %3109 = vmatprep.subr.bf16.mxu0 %v1839
        %3110 = vmatpush2.bf16.msra.mxu0 %v1838
        %3111 = vmatprep.mubr.bf16.mxu0 %v837
        %3112 = vmatmul.mubr.bf16.gmra.mxu0 %v836
        %v3113 = vpop.f32.mrf.mxu0
        %v3114 = vadd.f32 %v2921, %v3113
        %v3115 = vpop.f32.mrf.mxu0
        %v3116 = vadd.f32 %v2923, %v3115
        %v3117 = vpop.f32.mrf.mxu0
        %v3118 = vadd.f32 %v2925, %v3117
        %v3119 = vpop.f32.mrf.mxu0
        %v3120 = vadd.f32 %v2927, %v3119
        %3121 = vmatprep.mubr.bf16.mxu0 %v841
        %3122 = vmatmul.mubr.bf16.gmra.mxu0 %v840
        %v3123 = vpop.f32.mrf.mxu0
        %v3124 = vadd.f32 %v2931, %v3123
        %v3125 = vpop.f32.mrf.mxu0
        %v3126 = vadd.f32 %v2933, %v3125
        %v3127 = vpop.f32.mrf.mxu0
        %v3128 = vadd.f32 %v2935, %v3127
        %v3129 = vpop.f32.mrf.mxu0
        %v3130 = vadd.f32 %v2937, %v3129
        %3131 = vmatprep.mubr.bf16.mxu0 %v845
        %3132 = vmatmul.mubr.bf16.gmra.mxu0 %v844
        %v3133 = vpop.f32.mrf.mxu0
        %v3134 = vadd.f32 %v2941, %v3133
        %v3135 = vpop.f32.mrf.mxu0
        %v3136 = vadd.f32 %v2943, %v3135
        %v3137 = vpop.f32.mrf.mxu0
        %v3138 = vadd.f32 %v2945, %v3137
        %v3139 = vpop.f32.mrf.mxu0
        %v3140 = vadd.f32 %v2947, %v3139
        %3141 = vmatprep.mubr.bf16.mxu0 %v849
        %3142 = vmatmul.mubr.bf16.gmra.mxu0 %v848
        %v3143 = vpop.f32.mrf.mxu0
        %v3144 = vadd.f32 %v2951, %v3143
        %v3145 = vpop.f32.mrf.mxu0
        %v3146 = vadd.f32 %v2953, %v3145
        %v3147 = vpop.f32.mrf.mxu0
        %v3148 = vadd.f32 %v2955, %v3147
        %v3149 = vpop.f32.mrf.mxu0
        %v3150 = vadd.f32 %v2957, %v3149
        %3151 = vmatprep.mubr.bf16.mxu0 %v853
        %3152 = vmatmul.mubr.bf16.gmra.mxu0 %v852
        %v3153 = vpop.f32.mrf.mxu0
        %v3154 = vadd.f32 %v2961, %v3153
        %v3155 = vpop.f32.mrf.mxu0
        %v3156 = vadd.f32 %v2963, %v3155
        %v3157 = vpop.f32.mrf.mxu0
        %v3158 = vadd.f32 %v2965, %v3157
        %v3159 = vpop.f32.mrf.mxu0
        %v3160 = vadd.f32 %v2967, %v3159
        %3161 = vmatprep.mubr.bf16.mxu0 %v857
        %3162 = vmatmul.mubr.bf16.gmra.mxu0 %v856
        %v3163 = vpop.f32.mrf.mxu0
        %v3164 = vadd.f32 %v2971, %v3163
        %v3165 = vpop.f32.mrf.mxu0
        %v3166 = vadd.f32 %v2973, %v3165
        %v3167 = vpop.f32.mrf.mxu0
        %v3168 = vadd.f32 %v2975, %v3167
        %v3169 = vpop.f32.mrf.mxu0
        %v3170 = vadd.f32 %v2977, %v3169
        %3171 = vmatprep.mubr.bf16.mxu0 %v861
        %3172 = vmatmul.mubr.bf16.gmra.mxu0 %v860
        %v3173 = vpop.f32.mrf.mxu0
        %v3174 = vadd.f32 %v2981, %v3173
        %v3175 = vpop.f32.mrf.mxu0
        %v3176 = vadd.f32 %v2983, %v3175
        %v3177 = vpop.f32.mrf.mxu0
        %v3178 = vadd.f32 %v2985, %v3177
        %v3179 = vpop.f32.mrf.mxu0
        %v3180 = vadd.f32 %v2987, %v3179
        %3181 = vmatprep.mubr.bf16.mxu0 %v865
        %3182 = vmatmul.mubr.bf16.gmra.mxu0 %v864
        %v3183 = vpop.f32.mrf.mxu0
        %v3184 = vadd.f32 %v2991, %v3183
        %v3185 = vpop.f32.mrf.mxu0
        %v3186 = vadd.f32 %v2993, %v3185
        %v3187 = vpop.f32.mrf.mxu0
        %v3188 = vadd.f32 %v2995, %v3187
        %v3189 = vpop.f32.mrf.mxu0
        %v3190 = vadd.f32 %v2997, %v3189
        %3191 = vmatprep.mubr.bf16.mxu0 %v869
        %3192 = vmatmul.mubr.bf16.gmra.mxu0 %v868
        %v3193 = vpop.f32.mrf.mxu0
        %v3194 = vadd.f32 %v3001, %v3193
        %v3195 = vpop.f32.mrf.mxu0
        %v3196 = vadd.f32 %v3003, %v3195
        %v3197 = vpop.f32.mrf.mxu0
        %v3198 = vadd.f32 %v3005, %v3197
        %v3199 = vpop.f32.mrf.mxu0
        %v3200 = vadd.f32 %v3007, %v3199
        %3201 = vmatprep.mubr.bf16.mxu0 %v873
        %3202 = vmatmul.mubr.bf16.gmra.mxu0 %v872
        %v3203 = vpop.f32.mrf.mxu0
        %v3204 = vadd.f32 %v3011, %v3203
        %v3205 = vpop.f32.mrf.mxu0
        %v3206 = vadd.f32 %v3013, %v3205
        %v3207 = vpop.f32.mrf.mxu0
        %v3208 = vadd.f32 %v3015, %v3207
        %v3209 = vpop.f32.mrf.mxu0
        %v3210 = vadd.f32 %v3017, %v3209
        %3211 = vmatprep.mubr.bf16.mxu0 %v877
        %3212 = vmatmul.mubr.bf16.gmra.mxu0 %v876
        %v3213 = vpop.f32.mrf.mxu0
        %v3214 = vadd.f32 %v3021, %v3213
        %v3215 = vpop.f32.mrf.mxu0
        %v3216 = vadd.f32 %v3023, %v3215
        %v3217 = vpop.f32.mrf.mxu0
        %v3218 = vadd.f32 %v3025, %v3217
        %v3219 = vpop.f32.mrf.mxu0
        %v3220 = vadd.f32 %v3027, %v3219
        %3221 = vmatprep.mubr.bf16.mxu0 %v881
        %3222 = vmatmul.mubr.bf16.gmra.mxu0 %v880
        %v3223 = vpop.f32.mrf.mxu0
        %v3224 = vadd.f32 %v3031, %v3223
        %v3225 = vpop.f32.mrf.mxu0
        %v3226 = vadd.f32 %v3033, %v3225
        %v3227 = vpop.f32.mrf.mxu0
        %v3228 = vadd.f32 %v3035, %v3227
        %v3229 = vpop.f32.mrf.mxu0
        %v3230 = vadd.f32 %v3037, %v3229
        %3231 = vmatprep.mubr.bf16.mxu0 %v885
        %3232 = vmatmul.mubr.bf16.gmra.mxu0 %v884
        %v3233 = vpop.f32.mrf.mxu0
        %v3234 = vadd.f32 %v3041, %v3233
        %v3235 = vpop.f32.mrf.mxu0
        %v3236 = vadd.f32 %v3043, %v3235
        %v3237 = vpop.f32.mrf.mxu0
        %v3238 = vadd.f32 %v3045, %v3237
        %v3239 = vpop.f32.mrf.mxu0
        %v3240 = vadd.f32 %v3047, %v3239
        %3241 = vmatprep.mubr.bf16.mxu0 %v889
        %3242 = vmatmul.mubr.bf16.gmra.mxu0 %v888
        %v3243 = vpop.f32.mrf.mxu0
        %v3244 = vadd.f32 %v3051, %v3243
        %v3245 = vpop.f32.mrf.mxu0
        %v3246 = vadd.f32 %v3053, %v3245
        %v3247 = vpop.f32.mrf.mxu0
        %v3248 = vadd.f32 %v3055, %v3247
        %v3249 = vpop.f32.mrf.mxu0
        %v3250 = vadd.f32 %v3057, %v3249
        %3251 = vmatprep.mubr.bf16.mxu0 %v893
        %3252 = vmatmul.mubr.bf16.gmra.mxu0 %v892
        %v3253 = vpop.f32.mrf.mxu0
        %v3254 = vadd.f32 %v3061, %v3253
        %v3255 = vpop.f32.mrf.mxu0
        %v3256 = vadd.f32 %v3063, %v3255
        %v3257 = vpop.f32.mrf.mxu0
        %v3258 = vadd.f32 %v3065, %v3257
        %v3259 = vpop.f32.mrf.mxu0
        %v3260 = vadd.f32 %v3067, %v3259
        %3261 = vmatprep.mubr.bf16.mxu0 %v897
        %3262 = vmatmul.mubr.bf16.gmra.mxu0 %v896
        %v3263 = vpop.f32.mrf.mxu0
        %v3264 = vadd.f32 %v3071, %v3263
        %v3265 = vpop.f32.mrf.mxu0
        %v3266 = vadd.f32 %v3073, %v3265
        %v3267 = vpop.f32.mrf.mxu0
        %v3268 = vadd.f32 %v3075, %v3267
        %v3269 = vpop.f32.mrf.mxu0
        %v3270 = vadd.f32 %v3077, %v3269
        %3271 = vdwg.mxu0
        %3272 = vmatprep.subr.bf16.mxu0 0
        %3273 = vmatpush1.bf16.msra.mxu0 %v1721
        %3274 = vmatprep.subr.bf16.mxu0 0
        %3275 = vmatpush1.bf16.msra.mxu0 %v1714
        %3276 = vmatprep.subr.bf16.mxu0 0
        %3277 = vmatpush1.bf16.msra.mxu0 %v1707
        %3278 = vmatprep.subr.bf16.mxu0 0
        %3279 = vmatpush1.bf16.msra.mxu0 %v1700
        %3280 = vmatprep.subr.bf16.mxu0 0
        %3281 = vmatpush1.bf16.msra.mxu0 %v1693
        %3282 = vmatprep.subr.bf16.mxu0 0
        %3283 = vmatpush1.bf16.msra.mxu0 %v1686
        %3284 = vmatprep.subr.bf16.mxu0 0
        %3285 = vmatpush1.bf16.msra.mxu0 %v1679
        %3286 = vmatprep.subr.bf16.mxu0 0
        %3287 = vmatpush1.bf16.msra.mxu0 %v1672
        %3288 = vmatprep.subr.bf16.mxu0 0
        %3289 = vmatpush2.bf16.msra.mxu0 %v1777
        %3290 = vmatprep.subr.bf16.mxu0 0
        %3291 = vmatpush2.bf16.msra.mxu0 %v1770
        %3292 = vmatprep.subr.bf16.mxu0 0
        %3293 = vmatpush2.bf16.msra.mxu0 %v1763
        %3294 = vmatprep.subr.bf16.mxu0 0
        %3295 = vmatpush2.bf16.msra.mxu0 %v1756
        %3296 = vmatprep.subr.bf16.mxu0 0
        %3297 = vmatpush2.bf16.msra.mxu0 %v1749
        %3298 = vmatprep.subr.bf16.mxu0 0
        %3299 = vmatpush2.bf16.msra.mxu0 %v1742
        %3300 = vmatprep.subr.bf16.mxu0 0
        %3301 = vmatpush2.bf16.msra.mxu0 %v1735
        %3302 = vmatprep.subr.bf16.mxu0 0
        %3303 = vmatpush2.bf16.msra.mxu0 %v1728
        %3304 = vmatprep.mubr.bf16.mxu0 %v835
        %3305 = vmatmul.mubr.bf16.gmra.mxu0 %v834
        %v3306 = vpop.f32.mrf.mxu0
        %v3307 = vadd.f32 %v634, %v3306
        %v3308 = vpop.f32.mrf.mxu0
        %v3309 = vpop.f32.mrf.mxu0
        %v3310 = vadd.f32 %v634, %v3309
        %v3311 = vpop.f32.mrf.mxu0
        %3312 = vmatprep.mubr.bf16.mxu0 %v839
        %3313 = vmatmul.mubr.bf16.gmra.mxu0 %v838
        %v3314 = vpop.f32.mrf.mxu0
        %v3315 = vadd.f32 %v634, %v3314
        %v3316 = vpop.f32.mrf.mxu0
        %v3317 = vpop.f32.mrf.mxu0
        %v3318 = vadd.f32 %v634, %v3317
        %v3319 = vpop.f32.mrf.mxu0
        %3320 = vmatprep.mubr.bf16.mxu0 %v843
        %3321 = vmatmul.mubr.bf16.gmra.mxu0 %v842
        %v3322 = vpop.f32.mrf.mxu0
        %v3323 = vadd.f32 %v634, %v3322
        %v3324 = vpop.f32.mrf.mxu0
        %v3325 = vpop.f32.mrf.mxu0
        %v3326 = vadd.f32 %v634, %v3325
        %v3327 = vpop.f32.mrf.mxu0
        %3328 = vmatprep.mubr.bf16.mxu0 %v847
        %3329 = vmatmul.mubr.bf16.gmra.mxu0 %v846
        %v3330 = vpop.f32.mrf.mxu0
        %v3331 = vadd.f32 %v634, %v3330
        %v3332 = vpop.f32.mrf.mxu0
        %v3333 = vpop.f32.mrf.mxu0
        %v3334 = vadd.f32 %v634, %v3333
        %v3335 = vpop.f32.mrf.mxu0
        %3336 = vmatprep.mubr.bf16.mxu0 %v851
        %3337 = vmatmul.mubr.bf16.gmra.mxu0 %v850
        %v3338 = vpop.f32.mrf.mxu0
        %v3339 = vadd.f32 %v634, %v3338
        %v3340 = vpop.f32.mrf.mxu0
        %v3341 = vpop.f32.mrf.mxu0
        %v3342 = vadd.f32 %v634, %v3341
        %v3343 = vpop.f32.mrf.mxu0
        %3344 = vmatprep.mubr.bf16.mxu0 %v855
        %3345 = vmatmul.mubr.bf16.gmra.mxu0 %v854
        %v3346 = vpop.f32.mrf.mxu0
        %v3347 = vadd.f32 %v634, %v3346
        %v3348 = vpop.f32.mrf.mxu0
        %v3349 = vpop.f32.mrf.mxu0
        %v3350 = vadd.f32 %v634, %v3349
        %v3351 = vpop.f32.mrf.mxu0
        %3352 = vmatprep.mubr.bf16.mxu0 %v859
        %3353 = vmatmul.mubr.bf16.gmra.mxu0 %v858
        %v3354 = vpop.f32.mrf.mxu0
        %v3355 = vadd.f32 %v634, %v3354
        %v3356 = vpop.f32.mrf.mxu0
        %v3357 = vpop.f32.mrf.mxu0
        %v3358 = vadd.f32 %v634, %v3357
        %v3359 = vpop.f32.mrf.mxu0
        %3360 = vmatprep.mubr.bf16.mxu0 %v863
        %3361 = vmatmul.mubr.bf16.gmra.mxu0 %v862
        %v3362 = vpop.f32.mrf.mxu0
        %v3363 = vadd.f32 %v634, %v3362
        %v3364 = vpop.f32.mrf.mxu0
        %v3365 = vpop.f32.mrf.mxu0
        %v3366 = vadd.f32 %v634, %v3365
        %v3367 = vpop.f32.mrf.mxu0
        %3368 = vmatprep.mubr.bf16.mxu0 %v867
        %3369 = vmatmul.mubr.bf16.gmra.mxu0 %v866
        %v3370 = vpop.f32.mrf.mxu0
        %v3371 = vadd.f32 %v634, %v3370
        %v3372 = vpop.f32.mrf.mxu0
        %v3373 = vpop.f32.mrf.mxu0
        %v3374 = vadd.f32 %v634, %v3373
        %v3375 = vpop.f32.mrf.mxu0
        %3376 = vmatprep.mubr.bf16.mxu0 %v871
        %3377 = vmatmul.mubr.bf16.gmra.mxu0 %v870
        %v3378 = vpop.f32.mrf.mxu0
        %v3379 = vadd.f32 %v634, %v3378
        %v3380 = vpop.f32.mrf.mxu0
        %v3381 = vpop.f32.mrf.mxu0
        %v3382 = vadd.f32 %v634, %v3381
        %v3383 = vpop.f32.mrf.mxu0
        %3384 = vmatprep.mubr.bf16.mxu0 %v875
        %3385 = vmatmul.mubr.bf16.gmra.mxu0 %v874
        %v3386 = vpop.f32.mrf.mxu0
        %v3387 = vadd.f32 %v634, %v3386
        %v3388 = vpop.f32.mrf.mxu0
        %v3389 = vpop.f32.mrf.mxu0
        %v3390 = vadd.f32 %v634, %v3389
        %v3391 = vpop.f32.mrf.mxu0
        %3392 = vmatprep.mubr.bf16.mxu0 %v879
        %3393 = vmatmul.mubr.bf16.gmra.mxu0 %v878
        %v3394 = vpop.f32.mrf.mxu0
        %v3395 = vadd.f32 %v634, %v3394
        %v3396 = vpop.f32.mrf.mxu0
        %v3397 = vpop.f32.mrf.mxu0
        %v3398 = vadd.f32 %v634, %v3397
        %v3399 = vpop.f32.mrf.mxu0
        %3400 = vmatprep.mubr.bf16.mxu0 %v883
        %3401 = vmatmul.mubr.bf16.gmra.mxu0 %v882
        %v3402 = vpop.f32.mrf.mxu0
        %v3403 = vadd.f32 %v634, %v3402
        %v3404 = vpop.f32.mrf.mxu0
        %v3405 = vpop.f32.mrf.mxu0
        %v3406 = vadd.f32 %v634, %v3405
        %v3407 = vpop.f32.mrf.mxu0
        %3408 = vmatprep.mubr.bf16.mxu0 %v887
        %3409 = vmatmul.mubr.bf16.gmra.mxu0 %v886
        %v3410 = vpop.f32.mrf.mxu0
        %v3411 = vadd.f32 %v634, %v3410
        %v3412 = vpop.f32.mrf.mxu0
        %v3413 = vpop.f32.mrf.mxu0
        %v3414 = vadd.f32 %v634, %v3413
        %v3415 = vpop.f32.mrf.mxu0
        %3416 = vmatprep.mubr.bf16.mxu0 %v891
        %3417 = vmatmul.mubr.bf16.gmra.mxu0 %v890
        %v3418 = vpop.f32.mrf.mxu0
        %v3419 = vadd.f32 %v634, %v3418
        %v3420 = vpop.f32.mrf.mxu0
        %v3421 = vpop.f32.mrf.mxu0
        %v3422 = vadd.f32 %v634, %v3421
        %v3423 = vpop.f32.mrf.mxu0
        %3424 = vmatprep.mubr.bf16.mxu0 %v895
        %3425 = vmatmul.mubr.bf16.gmra.mxu0 %v894
        %v3426 = vpop.f32.mrf.mxu0
        %v3427 = vadd.f32 %v634, %v3426
        %v3428 = vpop.f32.mrf.mxu0
        %v3429 = vpop.f32.mrf.mxu0
        %v3430 = vadd.f32 %v634, %v3429
        %v3431 = vpop.f32.mrf.mxu0
        %3432 = vdwg.mxu0
        %3433 = vmatprep.subr.bf16.mxu0 0
        %3434 = vmatpush1.bf16.msra.mxu0 %v1833
        %3435 = vmatprep.subr.bf16.mxu0 0
        %3436 = vmatpush1.bf16.msra.mxu0 %v1826
        %3437 = vmatprep.subr.bf16.mxu0 0
        %3438 = vmatpush1.bf16.msra.mxu0 %v1819
        %3439 = vmatprep.subr.bf16.mxu0 0
        %3440 = vmatpush1.bf16.msra.mxu0 %v1812
        %3441 = vmatprep.subr.bf16.mxu0 0
        %3442 = vmatpush1.bf16.msra.mxu0 %v1805
        %3443 = vmatprep.subr.bf16.mxu0 0
        %3444 = vmatpush1.bf16.msra.mxu0 %v1798
        %3445 = vmatprep.subr.bf16.mxu0 0
        %3446 = vmatpush1.bf16.msra.mxu0 %v1791
        %3447 = vmatprep.subr.bf16.mxu0 0
        %3448 = vmatpush1.bf16.msra.mxu0 %v1784
        %3449 = vmatprep.subr.bf16.mxu0 0
        %3450 = vmatpush2.bf16.msra.mxu0 %v1889
        %3451 = vmatprep.subr.bf16.mxu0 0
        %3452 = vmatpush2.bf16.msra.mxu0 %v1882
        %3453 = vmatprep.subr.bf16.mxu0 0
        %3454 = vmatpush2.bf16.msra.mxu0 %v1875
        %3455 = vmatprep.subr.bf16.mxu0 0
        %3456 = vmatpush2.bf16.msra.mxu0 %v1868
        %3457 = vmatprep.subr.bf16.mxu0 0
        %3458 = vmatpush2.bf16.msra.mxu0 %v1861
        %3459 = vmatprep.subr.bf16.mxu0 0
        %3460 = vmatpush2.bf16.msra.mxu0 %v1854
        %3461 = vmatprep.subr.bf16.mxu0 0
        %3462 = vmatpush2.bf16.msra.mxu0 %v1847
        %3463 = vmatprep.subr.bf16.mxu0 0
        %3464 = vmatpush2.bf16.msra.mxu0 %v1840
        %3465 = vmatprep.mubr.bf16.mxu0 %v837
        %3466 = vmatmul.mubr.bf16.gmra.mxu0 %v836
        %v3467 = vpop.f32.mrf.mxu0
        %v3468 = vadd.f32 %v3307, %v3467
        %v3469 = vpop.f32.mrf.mxu0
        %v3470 = vpop.f32.mrf.mxu0
        %v3471 = vadd.f32 %v3310, %v3470
        %v3472 = vpop.f32.mrf.mxu0
        %3473 = vmatprep.mubr.bf16.mxu0 %v841
        %3474 = vmatmul.mubr.bf16.gmra.mxu0 %v840
        %v3475 = vpop.f32.mrf.mxu0
        %v3476 = vadd.f32 %v3315, %v3475
        %v3477 = vpop.f32.mrf.mxu0
        %v3478 = vpop.f32.mrf.mxu0
        %v3479 = vadd.f32 %v3318, %v3478
        %v3480 = vpop.f32.mrf.mxu0
        %3481 = vmatprep.mubr.bf16.mxu0 %v845
        %3482 = vmatmul.mubr.bf16.gmra.mxu0 %v844
        %v3483 = vpop.f32.mrf.mxu0
        %v3484 = vadd.f32 %v3323, %v3483
        %v3485 = vpop.f32.mrf.mxu0
        %v3486 = vpop.f32.mrf.mxu0
        %v3487 = vadd.f32 %v3326, %v3486
        %v3488 = vpop.f32.mrf.mxu0
        %3489 = vmatprep.mubr.bf16.mxu0 %v849
        %3490 = vmatmul.mubr.bf16.gmra.mxu0 %v848
        %v3491 = vpop.f32.mrf.mxu0
        %v3492 = vadd.f32 %v3331, %v3491
        %v3493 = vpop.f32.mrf.mxu0
        %v3494 = vpop.f32.mrf.mxu0
        %v3495 = vadd.f32 %v3334, %v3494
        %v3496 = vpop.f32.mrf.mxu0
        %3497 = vmatprep.mubr.bf16.mxu0 %v853
        %3498 = vmatmul.mubr.bf16.gmra.mxu0 %v852
        %v3499 = vpop.f32.mrf.mxu0
        %v3500 = vadd.f32 %v3339, %v3499
        %v3501 = vpop.f32.mrf.mxu0
        %v3502 = vpop.f32.mrf.mxu0
        %v3503 = vadd.f32 %v3342, %v3502
        %v3504 = vpop.f32.mrf.mxu0
        %3505 = vmatprep.mubr.bf16.mxu0 %v857
        %3506 = vmatmul.mubr.bf16.gmra.mxu0 %v856
        %v3507 = vpop.f32.mrf.mxu0
        %v3508 = vadd.f32 %v3347, %v3507
        %v3509 = vpop.f32.mrf.mxu0
        %v3510 = vpop.f32.mrf.mxu0
        %v3511 = vadd.f32 %v3350, %v3510
        %v3512 = vpop.f32.mrf.mxu0
        %3513 = vmatprep.mubr.bf16.mxu0 %v861
        %3514 = vmatmul.mubr.bf16.gmra.mxu0 %v860
        %v3515 = vpop.f32.mrf.mxu0
        %v3516 = vadd.f32 %v3355, %v3515
        %v3517 = vpop.f32.mrf.mxu0
        %v3518 = vpop.f32.mrf.mxu0
        %v3519 = vadd.f32 %v3358, %v3518
        %v3520 = vpop.f32.mrf.mxu0
        %3521 = vmatprep.mubr.bf16.mxu0 %v865
        %3522 = vmatmul.mubr.bf16.gmra.mxu0 %v864
        %v3523 = vpop.f32.mrf.mxu0
        %v3524 = vadd.f32 %v3363, %v3523
        %v3525 = vpop.f32.mrf.mxu0
        %v3526 = vpop.f32.mrf.mxu0
        %v3527 = vadd.f32 %v3366, %v3526
        %v3528 = vpop.f32.mrf.mxu0
        %3529 = vmatprep.mubr.bf16.mxu0 %v869
        %3530 = vmatmul.mubr.bf16.gmra.mxu0 %v868
        %v3531 = vpop.f32.mrf.mxu0
        %v3532 = vadd.f32 %v3371, %v3531
        %v3533 = vpop.f32.mrf.mxu0
        %v3534 = vpop.f32.mrf.mxu0
        %v3535 = vadd.f32 %v3374, %v3534
        %v3536 = vpop.f32.mrf.mxu0
        %3537 = vmatprep.mubr.bf16.mxu0 %v873
        %3538 = vmatmul.mubr.bf16.gmra.mxu0 %v872
        %v3539 = vpop.f32.mrf.mxu0
        %v3540 = vadd.f32 %v3379, %v3539
        %v3541 = vpop.f32.mrf.mxu0
        %v3542 = vpop.f32.mrf.mxu0
        %v3543 = vadd.f32 %v3382, %v3542
        %v3544 = vpop.f32.mrf.mxu0
        %3545 = vmatprep.mubr.bf16.mxu0 %v877
        %3546 = vmatmul.mubr.bf16.gmra.mxu0 %v876
        %v3547 = vpop.f32.mrf.mxu0
        %v3548 = vadd.f32 %v3387, %v3547
        %v3549 = vpop.f32.mrf.mxu0
        %v3550 = vpop.f32.mrf.mxu0
        %v3551 = vadd.f32 %v3390, %v3550
        %v3552 = vpop.f32.mrf.mxu0
        %3553 = vmatprep.mubr.bf16.mxu0 %v881
        %3554 = vmatmul.mubr.bf16.gmra.mxu0 %v880
        %v3555 = vpop.f32.mrf.mxu0
        %v3556 = vadd.f32 %v3395, %v3555
        %v3557 = vpop.f32.mrf.mxu0
        %v3558 = vpop.f32.mrf.mxu0
        %v3559 = vadd.f32 %v3398, %v3558
        %v3560 = vpop.f32.mrf.mxu0
        %3561 = vmatprep.mubr.bf16.mxu0 %v885
        %3562 = vmatmul.mubr.bf16.gmra.mxu0 %v884
        %v3563 = vpop.f32.mrf.mxu0
        %v3564 = vadd.f32 %v3403, %v3563
        %v3565 = vpop.f32.mrf.mxu0
        %v3566 = vpop.f32.mrf.mxu0
        %v3567 = vadd.f32 %v3406, %v3566
        %v3568 = vpop.f32.mrf.mxu0
        %3569 = vmatprep.mubr.bf16.mxu0 %v889
        %3570 = vmatmul.mubr.bf16.gmra.mxu0 %v888
        %v3571 = vpop.f32.mrf.mxu0
        %v3572 = vadd.f32 %v3411, %v3571
        %v3573 = vpop.f32.mrf.mxu0
        %v3574 = vpop.f32.mrf.mxu0
        %v3575 = vadd.f32 %v3414, %v3574
        %v3576 = vpop.f32.mrf.mxu0
        %3577 = vmatprep.mubr.bf16.mxu0 %v893
        %3578 = vmatmul.mubr.bf16.gmra.mxu0 %v892
        %v3579 = vpop.f32.mrf.mxu0
        %v3580 = vadd.f32 %v3419, %v3579
        %v3581 = vpop.f32.mrf.mxu0
        %v3582 = vpop.f32.mrf.mxu0
        %v3583 = vadd.f32 %v3422, %v3582
        %v3584 = vpop.f32.mrf.mxu0
        %3585 = vmatprep.mubr.bf16.mxu0 %v897
        %3586 = vmatmul.mubr.bf16.gmra.mxu0 %v896
        %v3587 = vpop.f32.mrf.mxu0
        %v3588 = vadd.f32 %v3427, %v3587
        %v3589 = vpop.f32.mrf.mxu0
        %v3590 = vpop.f32.mrf.mxu0
        %v3591 = vadd.f32 %v3430, %v3590
        %v3592 = vpop.f32.mrf.mxu0
        %3593 = vdwg.mxu0
        %v3594 = vpack.c.bf16 %v2346, %v2342
        %v3595 = vpack.c.bf16 %v2348, %v2344
        %v3596 = vpack.c.bf16 %v2732, %v2728
        %v3597 = vpack.c.bf16 %v2734, %v2730
        %v3598 = vpack.c.bf16 %v3118, %v3114
        %v3599 = vpack.c.bf16 %v3120, %v3116
        %v3600 = vpack.c.bf16 %v3471, %v3468
        %v3601 = vpack.c.bf16 %v2356, %v2352
        %v3602 = vpack.c.bf16 %v2358, %v2354
        %v3603 = vpack.c.bf16 %v2742, %v2738
        %v3604 = vpack.c.bf16 %v2744, %v2740
        %v3605 = vpack.c.bf16 %v3128, %v3124
        %v3606 = vpack.c.bf16 %v3130, %v3126
        %v3607 = vpack.c.bf16 %v3479, %v3476
        %v3608 = vpack.c.bf16 %v2366, %v2362
        %v3609 = vpack.c.bf16 %v2368, %v2364
        %v3610 = vpack.c.bf16 %v2752, %v2748
        %v3611 = vpack.c.bf16 %v2754, %v2750
        %v3612 = vpack.c.bf16 %v3138, %v3134
        %v3613 = vpack.c.bf16 %v3140, %v3136
        %v3614 = vpack.c.bf16 %v3487, %v3484
        %v3615 = vpack.c.bf16 %v2376, %v2372
        %v3616 = vpack.c.bf16 %v2378, %v2374
        %v3617 = vpack.c.bf16 %v2762, %v2758
        %v3618 = vpack.c.bf16 %v2764, %v2760
        %v3619 = vpack.c.bf16 %v3148, %v3144
        %v3620 = vpack.c.bf16 %v3150, %v3146
        %v3621 = vpack.c.bf16 %v3495, %v3492
        %v3622 = vpack.c.bf16 %v2386, %v2382
        %v3623 = vpack.c.bf16 %v2388, %v2384
        %v3624 = vpack.c.bf16 %v2772, %v2768
        %v3625 = vpack.c.bf16 %v2774, %v2770
        %v3626 = vpack.c.bf16 %v3158, %v3154
        %v3627 = vpack.c.bf16 %v3160, %v3156
        %v3628 = vpack.c.bf16 %v3503, %v3500
        %v3629 = vpack.c.bf16 %v2396, %v2392
        %v3630 = vpack.c.bf16 %v2398, %v2394
        %v3631 = vpack.c.bf16 %v2782, %v2778
        %v3632 = vpack.c.bf16 %v2784, %v2780
        %v3633 = vpack.c.bf16 %v3168, %v3164
        %v3634 = vpack.c.bf16 %v3170, %v3166
        %v3635 = vpack.c.bf16 %v3511, %v3508
        %v3636 = vpack.c.bf16 %v2406, %v2402
        %v3637 = vpack.c.bf16 %v2408, %v2404
        %v3638 = vpack.c.bf16 %v2792, %v2788
        %v3639 = vpack.c.bf16 %v2794, %v2790
        %v3640 = vpack.c.bf16 %v3178, %v3174
        %v3641 = vpack.c.bf16 %v3180, %v3176
        %v3642 = vpack.c.bf16 %v3519, %v3516
        %v3643 = vpack.c.bf16 %v2416, %v2412
        %v3644 = vpack.c.bf16 %v2418, %v2414
        %v3645 = vpack.c.bf16 %v2802, %v2798
        %v3646 = vpack.c.bf16 %v2804, %v2800
        %v3647 = vpack.c.bf16 %v3188, %v3184
        %v3648 = vpack.c.bf16 %v3190, %v3186
        %v3649 = vpack.c.bf16 %v3527, %v3524
        %v3650 = vpack.c.bf16 %v2426, %v2422
        %v3651 = vpack.c.bf16 %v2428, %v2424
        %v3652 = vpack.c.bf16 %v2812, %v2808
        %v3653 = vpack.c.bf16 %v2814, %v2810
        %v3654 = vpack.c.bf16 %v3198, %v3194
        %v3655 = vpack.c.bf16 %v3200, %v3196
        %v3656 = vpack.c.bf16 %v3535, %v3532
        %v3657 = vpack.c.bf16 %v2436, %v2432
        %v3658 = vpack.c.bf16 %v2438, %v2434
        %v3659 = vpack.c.bf16 %v2822, %v2818
        %v3660 = vpack.c.bf16 %v2824, %v2820
        %v3661 = vpack.c.bf16 %v3208, %v3204
        %v3662 = vpack.c.bf16 %v3210, %v3206
        %v3663 = vpack.c.bf16 %v3543, %v3540
        %v3664 = vpack.c.bf16 %v2446, %v2442
        %v3665 = vpack.c.bf16 %v2448, %v2444
        %v3666 = vpack.c.bf16 %v2832, %v2828
        %v3667 = vpack.c.bf16 %v2834, %v2830
        %v3668 = vpack.c.bf16 %v3218, %v3214
        %v3669 = vpack.c.bf16 %v3220, %v3216
        %v3670 = vpack.c.bf16 %v3551, %v3548
        %v3671 = vpack.c.bf16 %v2456, %v2452
        %v3672 = vpack.c.bf16 %v2458, %v2454
        %v3673 = vpack.c.bf16 %v2842, %v2838
        %v3674 = vpack.c.bf16 %v2844, %v2840
        %v3675 = vpack.c.bf16 %v3228, %v3224
        %v3676 = vpack.c.bf16 %v3230, %v3226
        %v3677 = vpack.c.bf16 %v3559, %v3556
        %v3678 = vpack.c.bf16 %v2466, %v2462
        %v3679 = vpack.c.bf16 %v2468, %v2464
        %v3680 = vpack.c.bf16 %v2852, %v2848
        %v3681 = vpack.c.bf16 %v2854, %v2850
        %v3682 = vpack.c.bf16 %v3238, %v3234
        %v3683 = vpack.c.bf16 %v3240, %v3236
        %v3684 = vpack.c.bf16 %v3567, %v3564
        %v3685 = vpack.c.bf16 %v2476, %v2472
        %v3686 = vpack.c.bf16 %v2478, %v2474
        %v3687 = vpack.c.bf16 %v2862, %v2858
        %v3688 = vpack.c.bf16 %v2864, %v2860
        %v3689 = vpack.c.bf16 %v3248, %v3244
        %v3690 = vpack.c.bf16 %v3250, %v3246
        %v3691 = vpack.c.bf16 %v3575, %v3572
        %v3692 = vpack.c.bf16 %v2486, %v2482
        %v3693 = vpack.c.bf16 %v2488, %v2484
        %v3694 = vpack.c.bf16 %v2872, %v2868
        %v3695 = vpack.c.bf16 %v2874, %v2870
        %v3696 = vpack.c.bf16 %v3258, %v3254
        %v3697 = vpack.c.bf16 %v3260, %v3256
        %v3698 = vpack.c.bf16 %v3583, %v3580
        %v3699 = vpack.c.bf16 %v2496, %v2492
        %v3700 = vpack.c.bf16 %v2498, %v2494
        %v3701 = vpack.c.bf16 %v2882, %v2878
        %v3702 = vpack.c.bf16 %v2884, %v2880
        %v3703 = vpack.c.bf16 %v3268, %v3264
        %v3704 = vpack.c.bf16 %v3270, %v3266
        %v3705 = vpack.c.bf16 %v3591, %v3588
        %v3818 = vunpack.c.l.b16 %v3594
        %v3819 = vunpack.c.l.b16 %v3595
        %v3820 = vunpack.c.l.b16 %v3596
        %v3821 = vunpack.c.l.b16 %v3597
        %v3822 = vunpack.c.l.b16 %v3598
        %v3823 = vunpack.c.l.b16 %v3599
        %v3824 = vunpack.c.l.b16 %v3600
        %v3825 = vunpack.c.h.b16 %v3594
        %v3826 = vunpack.c.h.b16 %v3595
        %v3827 = vunpack.c.h.b16 %v3596
        %v3828 = vunpack.c.h.b16 %v3597
        %v3829 = vunpack.c.h.b16 %v3598
        %v3830 = vunpack.c.h.b16 %v3599
        %v3831 = vunpack.c.h.b16 %v3600
        %v3832 = vunpack.c.l.b16 %v3601
        %v3833 = vunpack.c.l.b16 %v3602
        %v3834 = vunpack.c.l.b16 %v3603
        %v3835 = vunpack.c.l.b16 %v3604
        %v3836 = vunpack.c.l.b16 %v3605
        %v3837 = vunpack.c.l.b16 %v3606
        %v3838 = vunpack.c.l.b16 %v3607
        %v3839 = vunpack.c.h.b16 %v3601
        %v3840 = vunpack.c.h.b16 %v3602
        %v3841 = vunpack.c.h.b16 %v3603
        %v3842 = vunpack.c.h.b16 %v3604
        %v3843 = vunpack.c.h.b16 %v3605
        %v3844 = vunpack.c.h.b16 %v3606
        %v3845 = vunpack.c.h.b16 %v3607
        %v3846 = vunpack.c.l.b16 %v3608
        %v3847 = vunpack.c.l.b16 %v3609
        %v3848 = vunpack.c.l.b16 %v3610
        %v3849 = vunpack.c.l.b16 %v3611
        %v3850 = vunpack.c.l.b16 %v3612
        %v3851 = vunpack.c.l.b16 %v3613
        %v3852 = vunpack.c.l.b16 %v3614
        %v3853 = vunpack.c.h.b16 %v3608
        %v3854 = vunpack.c.h.b16 %v3609
        %v3855 = vunpack.c.h.b16 %v3610
        %v3856 = vunpack.c.h.b16 %v3611
        %v3857 = vunpack.c.h.b16 %v3612
        %v3858 = vunpack.c.h.b16 %v3613
        %v3859 = vunpack.c.h.b16 %v3614
        %v3860 = vunpack.c.l.b16 %v3615
        %v3861 = vunpack.c.l.b16 %v3616
        %v3862 = vunpack.c.l.b16 %v3617
        %v3863 = vunpack.c.l.b16 %v3618
        %v3864 = vunpack.c.l.b16 %v3619
        %v3865 = vunpack.c.l.b16 %v3620
        %v3866 = vunpack.c.l.b16 %v3621
        %v3867 = vunpack.c.h.b16 %v3615
        %v3868 = vunpack.c.h.b16 %v3616
        %v3869 = vunpack.c.h.b16 %v3617
        %v3870 = vunpack.c.h.b16 %v3618
        %v3871 = vunpack.c.h.b16 %v3619
        %v3872 = vunpack.c.h.b16 %v3620
        %v3873 = vunpack.c.h.b16 %v3621
        %v3874 = vunpack.c.l.b16 %v3622
        %v3875 = vunpack.c.l.b16 %v3623
        %v3876 = vunpack.c.l.b16 %v3624
        %v3877 = vunpack.c.l.b16 %v3625
        %v3878 = vunpack.c.l.b16 %v3626
        %v3879 = vunpack.c.l.b16 %v3627
        %v3880 = vunpack.c.l.b16 %v3628
        %v3881 = vunpack.c.h.b16 %v3622
        %v3882 = vunpack.c.h.b16 %v3623
        %v3883 = vunpack.c.h.b16 %v3624
        %v3884 = vunpack.c.h.b16 %v3625
        %v3885 = vunpack.c.h.b16 %v3626
        %v3886 = vunpack.c.h.b16 %v3627
        %v3887 = vunpack.c.h.b16 %v3628
        %v3888 = vunpack.c.l.b16 %v3629
        %v3889 = vunpack.c.l.b16 %v3630
        %v3890 = vunpack.c.l.b16 %v3631
        %v3891 = vunpack.c.l.b16 %v3632
        %v3892 = vunpack.c.l.b16 %v3633
        %v3893 = vunpack.c.l.b16 %v3634
        %v3894 = vunpack.c.l.b16 %v3635
        %v3895 = vunpack.c.h.b16 %v3629
        %v3896 = vunpack.c.h.b16 %v3630
        %v3897 = vunpack.c.h.b16 %v3631
        %v3898 = vunpack.c.h.b16 %v3632
        %v3899 = vunpack.c.h.b16 %v3633
        %v3900 = vunpack.c.h.b16 %v3634
        %v3901 = vunpack.c.h.b16 %v3635
        %v3902 = vunpack.c.l.b16 %v3636
        %v3903 = vunpack.c.l.b16 %v3637
        %v3904 = vunpack.c.l.b16 %v3638
        %v3905 = vunpack.c.l.b16 %v3639
        %v3906 = vunpack.c.l.b16 %v3640
        %v3907 = vunpack.c.l.b16 %v3641
        %v3908 = vunpack.c.l.b16 %v3642
        %v3909 = vunpack.c.h.b16 %v3636
        %v3910 = vunpack.c.h.b16 %v3637
        %v3911 = vunpack.c.h.b16 %v3638
        %v3912 = vunpack.c.h.b16 %v3639
        %v3913 = vunpack.c.h.b16 %v3640
        %v3914 = vunpack.c.h.b16 %v3641
        %v3915 = vunpack.c.h.b16 %v3642
        %v3916 = vunpack.c.l.b16 %v3643
        %v3917 = vunpack.c.l.b16 %v3644
        %v3918 = vunpack.c.l.b16 %v3645
        %v3919 = vunpack.c.l.b16 %v3646
        %v3920 = vunpack.c.l.b16 %v3647
        %v3921 = vunpack.c.l.b16 %v3648
        %v3922 = vunpack.c.l.b16 %v3649
        %v3923 = vunpack.c.h.b16 %v3643
        %v3924 = vunpack.c.h.b16 %v3644
        %v3925 = vunpack.c.h.b16 %v3645
        %v3926 = vunpack.c.h.b16 %v3646
        %v3927 = vunpack.c.h.b16 %v3647
        %v3928 = vunpack.c.h.b16 %v3648
        %v3929 = vunpack.c.h.b16 %v3649
        %v3930 = vunpack.c.l.b16 %v3650
        %v3931 = vunpack.c.l.b16 %v3651
        %v3932 = vunpack.c.l.b16 %v3652
        %v3933 = vunpack.c.l.b16 %v3653
        %v3934 = vunpack.c.l.b16 %v3654
        %v3935 = vunpack.c.l.b16 %v3655
        %v3936 = vunpack.c.l.b16 %v3656
        %v3937 = vunpack.c.h.b16 %v3650
        %v3938 = vunpack.c.h.b16 %v3651
        %v3939 = vunpack.c.h.b16 %v3652
        %v3940 = vunpack.c.h.b16 %v3653
        %v3941 = vunpack.c.h.b16 %v3654
        %v3942 = vunpack.c.h.b16 %v3655
        %v3943 = vunpack.c.h.b16 %v3656
        %v3944 = vunpack.c.l.b16 %v3657
        %v3945 = vunpack.c.l.b16 %v3658
        %v3946 = vunpack.c.l.b16 %v3659
        %v3947 = vunpack.c.l.b16 %v3660
        %v3948 = vunpack.c.l.b16 %v3661
        %v3949 = vunpack.c.l.b16 %v3662
        %v3950 = vunpack.c.l.b16 %v3663
        %v3951 = vunpack.c.h.b16 %v3657
        %v3952 = vunpack.c.h.b16 %v3658
        %v3953 = vunpack.c.h.b16 %v3659
        %v3954 = vunpack.c.h.b16 %v3660
        %v3955 = vunpack.c.h.b16 %v3661
        %v3956 = vunpack.c.h.b16 %v3662
        %v3957 = vunpack.c.h.b16 %v3663
        %v3958 = vunpack.c.l.b16 %v3664
        %v3959 = vunpack.c.l.b16 %v3665
        %v3960 = vunpack.c.l.b16 %v3666
        %v3961 = vunpack.c.l.b16 %v3667
        %v3962 = vunpack.c.l.b16 %v3668
        %v3963 = vunpack.c.l.b16 %v3669
        %v3964 = vunpack.c.l.b16 %v3670
        %v3965 = vunpack.c.h.b16 %v3664
        %v3966 = vunpack.c.h.b16 %v3665
        %v3967 = vunpack.c.h.b16 %v3666
        %v3968 = vunpack.c.h.b16 %v3667
        %v3969 = vunpack.c.h.b16 %v3668
        %v3970 = vunpack.c.h.b16 %v3669
        %v3971 = vunpack.c.h.b16 %v3670
        %v3972 = vunpack.c.l.b16 %v3671
        %v3973 = vunpack.c.l.b16 %v3672
        %v3974 = vunpack.c.l.b16 %v3673
        %v3975 = vunpack.c.l.b16 %v3674
        %v3976 = vunpack.c.l.b16 %v3675
        %v3977 = vunpack.c.l.b16 %v3676
        %v3978 = vunpack.c.l.b16 %v3677
        %v3979 = vunpack.c.h.b16 %v3671
        %v3980 = vunpack.c.h.b16 %v3672
        %v3981 = vunpack.c.h.b16 %v3673
        %v3982 = vunpack.c.h.b16 %v3674
        %v3983 = vunpack.c.h.b16 %v3675
        %v3984 = vunpack.c.h.b16 %v3676
        %v3985 = vunpack.c.h.b16 %v3677
        %v3986 = vunpack.c.l.b16 %v3678
        %v3987 = vunpack.c.l.b16 %v3679
        %v3988 = vunpack.c.l.b16 %v3680
        %v3989 = vunpack.c.l.b16 %v3681
        %v3990 = vunpack.c.l.b16 %v3682
        %v3991 = vunpack.c.l.b16 %v3683
        %v3992 = vunpack.c.l.b16 %v3684
        %v3993 = vunpack.c.h.b16 %v3678
        %v3994 = vunpack.c.h.b16 %v3679
        %v3995 = vunpack.c.h.b16 %v3680
        %v3996 = vunpack.c.h.b16 %v3681
        %v3997 = vunpack.c.h.b16 %v3682
        %v3998 = vunpack.c.h.b16 %v3683
        %v3999 = vunpack.c.h.b16 %v3684
        %v4000 = vunpack.c.l.b16 %v3685
        %v4001 = vunpack.c.l.b16 %v3686
        %v4002 = vunpack.c.l.b16 %v3687
        %v4003 = vunpack.c.l.b16 %v3688
        %v4004 = vunpack.c.l.b16 %v3689
        %v4005 = vunpack.c.l.b16 %v3690
        %v4006 = vunpack.c.l.b16 %v3691
        %v4007 = vunpack.c.h.b16 %v3685
        %v4008 = vunpack.c.h.b16 %v3686
        %v4009 = vunpack.c.h.b16 %v3687
        %v4010 = vunpack.c.h.b16 %v3688
        %v4011 = vunpack.c.h.b16 %v3689
        %v4012 = vunpack.c.h.b16 %v3690
        %v4013 = vunpack.c.h.b16 %v3691
        %v4014 = vunpack.c.l.b16 %v3692
        %v4015 = vunpack.c.l.b16 %v3693
        %v4016 = vunpack.c.l.b16 %v3694
        %v4017 = vunpack.c.l.b16 %v3695
        %v4018 = vunpack.c.l.b16 %v3696
        %v4019 = vunpack.c.l.b16 %v3697
        %v4020 = vunpack.c.l.b16 %v3698
        %v4021 = vunpack.c.h.b16 %v3692
        %v4022 = vunpack.c.h.b16 %v3693
        %v4023 = vunpack.c.h.b16 %v3694
        %v4024 = vunpack.c.h.b16 %v3695
        %v4025 = vunpack.c.h.b16 %v3696
        %v4026 = vunpack.c.h.b16 %v3697
        %v4027 = vunpack.c.h.b16 %v3698
        %v4028 = vunpack.c.l.b16 %v3699
        %v4029 = vunpack.c.l.b16 %v3700
        %v4030 = vunpack.c.l.b16 %v3701
        %v4031 = vunpack.c.l.b16 %v3702
        %v4032 = vunpack.c.l.b16 %v3703
        %v4033 = vunpack.c.l.b16 %v3704
        %v4034 = vunpack.c.l.b16 %v3705
        %v4035 = vunpack.c.h.b16 %v3699
        %v4036 = vunpack.c.h.b16 %v3700
        %v4037 = vunpack.c.h.b16 %v3701
        %v4038 = vunpack.c.h.b16 %v3702
        %v4039 = vunpack.c.h.b16 %v3703
        %v4040 = vunpack.c.h.b16 %v3704
        %v4041 = vunpack.c.h.b16 %v3705
        %v4042 = vpack.c.b16 %v3819, %v3818
        %v4043 = vpack.c.b16 %v3821, %v3820
        %v4044 = vpack.c.b16 %v3823, %v3822
        %v4045 = vpack.c.b16 %v3824, %v3824
        %v4046 = vpack.c.b16 %v3826, %v3825
        %v4047 = vpack.c.b16 %v3828, %v3827
        %v4048 = vpack.c.b16 %v3830, %v3829
        %v4049 = vpack.c.b16 %v3831, %v3831
        %v4050 = vpack.c.b16 %v3833, %v3832
        %v4051 = vpack.c.b16 %v3835, %v3834
        %v4052 = vpack.c.b16 %v3837, %v3836
        %v4053 = vpack.c.b16 %v3838, %v3838
        %v4054 = vpack.c.b16 %v3840, %v3839
        %v4055 = vpack.c.b16 %v3842, %v3841
        %v4056 = vpack.c.b16 %v3844, %v3843
        %v4057 = vpack.c.b16 %v3845, %v3845
        %v4058 = vpack.c.b16 %v3847, %v3846
        %v4059 = vpack.c.b16 %v3849, %v3848
        %v4060 = vpack.c.b16 %v3851, %v3850
        %v4061 = vpack.c.b16 %v3852, %v3852
        %v4062 = vpack.c.b16 %v3854, %v3853
        %v4063 = vpack.c.b16 %v3856, %v3855
        %v4064 = vpack.c.b16 %v3858, %v3857
        %v4065 = vpack.c.b16 %v3859, %v3859
        %v4066 = vpack.c.b16 %v3861, %v3860
        %v4067 = vpack.c.b16 %v3863, %v3862
        %v4068 = vpack.c.b16 %v3865, %v3864
        %v4069 = vpack.c.b16 %v3866, %v3866
        %v4070 = vpack.c.b16 %v3868, %v3867
        %v4071 = vpack.c.b16 %v3870, %v3869
        %v4072 = vpack.c.b16 %v3872, %v3871
        %v4073 = vpack.c.b16 %v3873, %v3873
        %v4074 = vpack.c.b16 %v3875, %v3874
        %v4075 = vpack.c.b16 %v3877, %v3876
        %v4076 = vpack.c.b16 %v3879, %v3878
        %v4077 = vpack.c.b16 %v3880, %v3880
        %v4078 = vpack.c.b16 %v3882, %v3881
        %v4079 = vpack.c.b16 %v3884, %v3883
        %v4080 = vpack.c.b16 %v3886, %v3885
        %v4081 = vpack.c.b16 %v3887, %v3887
        %v4082 = vpack.c.b16 %v3889, %v3888
        %v4083 = vpack.c.b16 %v3891, %v3890
        %v4084 = vpack.c.b16 %v3893, %v3892
        %v4085 = vpack.c.b16 %v3894, %v3894
        %v4086 = vpack.c.b16 %v3896, %v3895
        %v4087 = vpack.c.b16 %v3898, %v3897
        %v4088 = vpack.c.b16 %v3900, %v3899
        %v4089 = vpack.c.b16 %v3901, %v3901
        %v4090 = vpack.c.b16 %v3903, %v3902
        %v4091 = vpack.c.b16 %v3905, %v3904
        %v4092 = vpack.c.b16 %v3907, %v3906
        %v4093 = vpack.c.b16 %v3908, %v3908
        %v4094 = vpack.c.b16 %v3910, %v3909
        %v4095 = vpack.c.b16 %v3912, %v3911
        %v4096 = vpack.c.b16 %v3914, %v3913
        %v4097 = vpack.c.b16 %v3915, %v3915
        %v4098 = vpack.c.b16 %v3917, %v3916
        %v4099 = vpack.c.b16 %v3919, %v3918
        %v4100 = vpack.c.b16 %v3921, %v3920
        %v4101 = vpack.c.b16 %v3922, %v3922
        %v4102 = vpack.c.b16 %v3924, %v3923
        %v4103 = vpack.c.b16 %v3926, %v3925
        %v4104 = vpack.c.b16 %v3928, %v3927
        %v4105 = vpack.c.b16 %v3929, %v3929
        %v4106 = vpack.c.b16 %v3931, %v3930
        %v4107 = vpack.c.b16 %v3933, %v3932
        %v4108 = vpack.c.b16 %v3935, %v3934
        %v4109 = vpack.c.b16 %v3936, %v3936
        %v4110 = vpack.c.b16 %v3938, %v3937
        %v4111 = vpack.c.b16 %v3940, %v3939
        %v4112 = vpack.c.b16 %v3942, %v3941
        %v4113 = vpack.c.b16 %v3943, %v3943
        %v4114 = vpack.c.b16 %v3945, %v3944
        %v4115 = vpack.c.b16 %v3947, %v3946
        %v4116 = vpack.c.b16 %v3949, %v3948
        %v4117 = vpack.c.b16 %v3950, %v3950
        %v4118 = vpack.c.b16 %v3952, %v3951
        %v4119 = vpack.c.b16 %v3954, %v3953
        %v4120 = vpack.c.b16 %v3956, %v3955
        %v4121 = vpack.c.b16 %v3957, %v3957
        %v4122 = vpack.c.b16 %v3959, %v3958
        %v4123 = vpack.c.b16 %v3961, %v3960
        %v4124 = vpack.c.b16 %v3963, %v3962
        %v4125 = vpack.c.b16 %v3964, %v3964
        %v4126 = vpack.c.b16 %v3966, %v3965
        %v4127 = vpack.c.b16 %v3968, %v3967
        %v4128 = vpack.c.b16 %v3970, %v3969
        %v4129 = vpack.c.b16 %v3971, %v3971
        %v4130 = vpack.c.b16 %v3973, %v3972
        %v4131 = vpack.c.b16 %v3975, %v3974
        %v4132 = vpack.c.b16 %v3977, %v3976
        %v4133 = vpack.c.b16 %v3978, %v3978
        %v4134 = vpack.c.b16 %v3980, %v3979
        %v4135 = vpack.c.b16 %v3982, %v3981
        %v4136 = vpack.c.b16 %v3984, %v3983
        %v4137 = vpack.c.b16 %v3985, %v3985
        %v4138 = vpack.c.b16 %v3987, %v3986
        %v4139 = vpack.c.b16 %v3989, %v3988
        %v4140 = vpack.c.b16 %v3991, %v3990
        %v4141 = vpack.c.b16 %v3992, %v3992
        %v4142 = vpack.c.b16 %v3994, %v3993
        %v4143 = vpack.c.b16 %v3996, %v3995
        %v4144 = vpack.c.b16 %v3998, %v3997
        %v4145 = vpack.c.b16 %v3999, %v3999
        %v4146 = vpack.c.b16 %v4001, %v4000
        %v4147 = vpack.c.b16 %v4003, %v4002
        %v4148 = vpack.c.b16 %v4005, %v4004
        %v4149 = vpack.c.b16 %v4006, %v4006
        %v4150 = vpack.c.b16 %v4008, %v4007
        %v4151 = vpack.c.b16 %v4010, %v4009
        %v4152 = vpack.c.b16 %v4012, %v4011
        %v4153 = vpack.c.b16 %v4013, %v4013
        %v4154 = vpack.c.b16 %v4015, %v4014
        %v4155 = vpack.c.b16 %v4017, %v4016
        %v4156 = vpack.c.b16 %v4019, %v4018
        %v4157 = vpack.c.b16 %v4020, %v4020
        %v4158 = vpack.c.b16 %v4022, %v4021
        %v4159 = vpack.c.b16 %v4024, %v4023
        %v4160 = vpack.c.b16 %v4026, %v4025
        %v4161 = vpack.c.b16 %v4027, %v4027
        %v4162 = vpack.c.b16 %v4029, %v4028
        %v4163 = vpack.c.b16 %v4031, %v4030
        %v4164 = vpack.c.b16 %v4033, %v4032
        %v4165 = vpack.c.b16 %v4034, %v4034
        %v4166 = vpack.c.b16 %v4036, %v4035
        %v4167 = vpack.c.b16 %v4038, %v4037
        %v4168 = vpack.c.b16 %v4040, %v4039
        %v4169 = vpack.c.b16 %v4041, %v4041
        %4298 = vst [vmem:[%s278] sm:$0xff] %v4042
        %4299 = vst [vmem:[%s278 + $0x8] sm:$0xff] %v4043
        %4300 = vst [vmem:[%s278 + $0x10] sm:$0xff] %v4044
        %4301 = vst [vmem:[%s278 + $0x18] sm:$0xf] %v4045
        %4302 = vst [vmem:[%s278 + $0x1c] sm:$0xff] %v4046
        %4303 = vst [vmem:[%s278 + $0x24] sm:$0xff] %v4047
        %4304 = vst [vmem:[%s278 + $0x2c] sm:$0xff] %v4048
        %4305 = vst [vmem:[%s278 + $0x34] sm:$0xf] %v4049
        %4306 = vst [vmem:[%s278 + $0x38] sm:$0xff] %v4050
        %4307 = vst [vmem:[%s278 + $0x40] sm:$0xff] %v4051
        %4308 = vst [vmem:[%s278 + $0x48] sm:$0xff] %v4052
        %4309 = vst [vmem:[%s278 + $0x50] sm:$0xf] %v4053
        %4310 = vst [vmem:[%s278 + $0x54] sm:$0xff] %v4054
        %4311 = vst [vmem:[%s278 + $0x5c] sm:$0xff] %v4055
        %4312 = vst [vmem:[%s278 + $0x64] sm:$0xff] %v4056
        %4313 = vst [vmem:[%s278 + $0x6c] sm:$0xf] %v4057
        %4314 = vst [vmem:[%s278 + $0x70] sm:$0xff] %v4058
        %4315 = vst [vmem:[%s278 + $0x78] sm:$0xff] %v4059
        %4316 = vst [vmem:[%s278 + $0x80] sm:$0xff] %v4060
        %4317 = vst [vmem:[%s278 + $0x88] sm:$0xf] %v4061
        %4318 = vst [vmem:[%s278 + $0x8c] sm:$0xff] %v4062
        %4319 = vst [vmem:[%s278 + $0x94] sm:$0xff] %v4063
        %4320 = vst [vmem:[%s278 + $0x9c] sm:$0xff] %v4064
        %4321 = vst [vmem:[%s278 + $0xa4] sm:$0xf] %v4065
        %4322 = vst [vmem:[%s278 + $0xa8] sm:$0xff] %v4066
        %4323 = vst [vmem:[%s278 + $0xb0] sm:$0xff] %v4067
        %4324 = vst [vmem:[%s278 + $0xb8] sm:$0xff] %v4068
        %4325 = vst [vmem:[%s278 + $0xc0] sm:$0xf] %v4069
        %4326 = vst [vmem:[%s278 + $0xc4] sm:$0xff] %v4070
        %4327 = vst [vmem:[%s278 + $0xcc] sm:$0xff] %v4071
        %4328 = vst [vmem:[%s278 + $0xd4] sm:$0xff] %v4072
        %4329 = vst [vmem:[%s278 + $0xdc] sm:$0xf] %v4073
        %4330 = vst [vmem:[%s278 + $0xe0] sm:$0xff] %v4074
        %4331 = vst [vmem:[%s278 + $0xe8] sm:$0xff] %v4075
        %4332 = vst [vmem:[%s278 + $0xf0] sm:$0xff] %v4076
        %4333 = vst [vmem:[%s278 + $0xf8] sm:$0xf] %v4077
        %4334 = vst [vmem:[%s278 + $0xfc] sm:$0xff] %v4078
        %4335 = vst [vmem:[%s278 + $0x104] sm:$0xff] %v4079
        %4336 = vst [vmem:[%s278 + $0x10c] sm:$0xff] %v4080
        %4337 = vst [vmem:[%s278 + $0x114] sm:$0xf] %v4081
        %4338 = vst [vmem:[%s278 + $0x118] sm:$0xff] %v4082
        %4339 = vst [vmem:[%s278 + $0x120] sm:$0xff] %v4083
        %4340 = vst [vmem:[%s278 + $0x128] sm:$0xff] %v4084
        %4341 = vst [vmem:[%s278 + $0x130] sm:$0xf] %v4085
        %4342 = vst [vmem:[%s278 + $0x134] sm:$0xff] %v4086
        %4343 = vst [vmem:[%s278 + $0x13c] sm:$0xff] %v4087
        %4344 = vst [vmem:[%s278 + $0x144] sm:$0xff] %v4088
        %4345 = vst [vmem:[%s278 + $0x14c] sm:$0xf] %v4089
        %4346 = vst [vmem:[%s278 + $0x150] sm:$0xff] %v4090
        %4347 = vst [vmem:[%s278 + $0x158] sm:$0xff] %v4091
        %4348 = vst [vmem:[%s278 + $0x160] sm:$0xff] %v4092
        %4349 = vst [vmem:[%s278 + $0x168] sm:$0xf] %v4093
        %4350 = vst [vmem:[%s278 + $0x16c] sm:$0xff] %v4094
        %4351 = vst [vmem:[%s278 + $0x174] sm:$0xff] %v4095
        %4352 = vst [vmem:[%s278 + $0x17c] sm:$0xff] %v4096
        %4353 = vst [vmem:[%s278 + $0x184] sm:$0xf] %v4097
        %4354 = vst [vmem:[%s278 + $0x188] sm:$0xff] %v4098
        %4355 = vst [vmem:[%s278 + $0x190] sm:$0xff] %v4099
        %4356 = vst [vmem:[%s278 + $0x198] sm:$0xff] %v4100
        %4357 = vst [vmem:[%s278 + $0x1a0] sm:$0xf] %v4101
        %4358 = vst [vmem:[%s278 + $0x1a4] sm:$0xff] %v4102
        %4359 = vst [vmem:[%s278 + $0x1ac] sm:$0xff] %v4103
        %4360 = vst [vmem:[%s278 + $0x1b4] sm:$0xff] %v4104
        %4361 = vst [vmem:[%s278 + $0x1bc] sm:$0xf] %v4105
        %4362 = vst [vmem:[%s278 + $0x1c0] sm:$0xff] %v4106
        %4363 = vst [vmem:[%s278 + $0x1c8] sm:$0xff] %v4107
        %4364 = vst [vmem:[%s278 + $0x1d0] sm:$0xff] %v4108
        %4365 = vst [vmem:[%s278 + $0x1d8] sm:$0xf] %v4109
        %4366 = vst [vmem:[%s278 + $0x1dc] sm:$0xff] %v4110
        %4367 = vst [vmem:[%s278 + $0x1e4] sm:$0xff] %v4111
        %4368 = vst [vmem:[%s278 + $0x1ec] sm:$0xff] %v4112
        %4369 = vst [vmem:[%s278 + $0x1f4] sm:$0xf] %v4113
        %4370 = vst [vmem:[%s278 + $0x1f8] sm:$0xff] %v4114
        %4371 = vst [vmem:[%s278 + $0x200] sm:$0xff] %v4115
        %4372 = vst [vmem:[%s278 + $0x208] sm:$0xff] %v4116
        %4373 = vst [vmem:[%s278 + $0x210] sm:$0xf] %v4117
        %4374 = vst [vmem:[%s278 + $0x214] sm:$0xff] %v4118
        %4375 = vst [vmem:[%s278 + $0x21c] sm:$0xff] %v4119
        %4376 = vst [vmem:[%s278 + $0x224] sm:$0xff] %v4120
        %4377 = vst [vmem:[%s278 + $0x22c] sm:$0xf] %v4121
        %4378 = vst [vmem:[%s278 + $0x230] sm:$0xff] %v4122
        %4379 = vst [vmem:[%s278 + $0x238] sm:$0xff] %v4123
        %4380 = vst [vmem:[%s278 + $0x240] sm:$0xff] %v4124
        %4381 = vst [vmem:[%s278 + $0x248] sm:$0xf] %v4125
        %4382 = vst [vmem:[%s278 + $0x24c] sm:$0xff] %v4126
        %4383 = vst [vmem:[%s278 + $0x254] sm:$0xff] %v4127
        %4384 = vst [vmem:[%s278 + $0x25c] sm:$0xff] %v4128
        %4385 = vst [vmem:[%s278 + $0x264] sm:$0xf] %v4129
        %4386 = vst [vmem:[%s278 + $0x268] sm:$0xff] %v4130
        %4387 = vst [vmem:[%s278 + $0x270] sm:$0xff] %v4131
        %4388 = vst [vmem:[%s278 + $0x278] sm:$0xff] %v4132
        %4389 = vst [vmem:[%s278 + $0x280] sm:$0xf] %v4133
        %4390 = vst [vmem:[%s278 + $0x284] sm:$0xff] %v4134
        %4391 = vst [vmem:[%s278 + $0x28c] sm:$0xff] %v4135
        %4392 = vst [vmem:[%s278 + $0x294] sm:$0xff] %v4136
        %4393 = vst [vmem:[%s278 + $0x29c] sm:$0xf] %v4137
        %4394 = vst [vmem:[%s278 + $0x2a0] sm:$0xff] %v4138
        %4395 = vst [vmem:[%s278 + $0x2a8] sm:$0xff] %v4139
        %4396 = vst [vmem:[%s278 + $0x2b0] sm:$0xff] %v4140
        %4397 = vst [vmem:[%s278 + $0x2b8] sm:$0xf] %v4141
        %4398 = vst [vmem:[%s278 + $0x2bc] sm:$0xff] %v4142
        %4399 = vst [vmem:[%s278 + $0x2c4] sm:$0xff] %v4143
        %4400 = vst [vmem:[%s278 + $0x2cc] sm:$0xff] %v4144
        %4401 = vst [vmem:[%s278 + $0x2d4] sm:$0xf] %v4145
        %4402 = vst [vmem:[%s278 + $0x2d8] sm:$0xff] %v4146
        %4403 = vst [vmem:[%s278 + $0x2e0] sm:$0xff] %v4147
        %4404 = vst [vmem:[%s278 + $0x2e8] sm:$0xff] %v4148
        %4405 = vst [vmem:[%s278 + $0x2f0] sm:$0xf] %v4149
        %4406 = vst [vmem:[%s278 + $0x2f4] sm:$0xff] %v4150
        %4407 = vst [vmem:[%s278 + $0x2fc] sm:$0xff] %v4151
        %4408 = vst [vmem:[%s278 + $0x304] sm:$0xff] %v4152
        %4409 = vst [vmem:[%s278 + $0x30c] sm:$0xf] %v4153
        %4410 = vst [vmem:[%s278 + $0x310] sm:$0xff] %v4154
        %4411 = vst [vmem:[%s278 + $0x318] sm:$0xff] %v4155
        %4412 = vst [vmem:[%s278 + $0x320] sm:$0xff] %v4156
        %4413 = vst [vmem:[%s278 + $0x328] sm:$0xf] %v4157
        %4414 = vst [vmem:[%s278 + $0x32c] sm:$0xff] %v4158
        %4415 = vst [vmem:[%s278 + $0x334] sm:$0xff] %v4159
        %4416 = vst [vmem:[%s278 + $0x33c] sm:$0xff] %v4160
        %4417 = vst [vmem:[%s278 + $0x344] sm:$0xf] %v4161
        %4418 = vst [vmem:[%s278 + $0x348] sm:$0xff] %v4162
        %4419 = vst [vmem:[%s278 + $0x350] sm:$0xff] %v4163
        %4420 = vst [vmem:[%s278 + $0x358] sm:$0xff] %v4164
        %4421 = vst [vmem:[%s278 + $0x360] sm:$0xf] %v4165
        %4422 = vst [vmem:[%s278 + $0x364] sm:$0xff] %v4166
        %4423 = vst [vmem:[%s278 + $0x36c] sm:$0xff] %v4167
        %4424 = vst [vmem:[%s278 + $0x374] sm:$0xff] %v4168
        %4425 = vst [vmem:[%s278 + $0x37c] sm:$0xf] %v4169
        %s4426 = sand.u32 %s123, 1
        %s4427 = scalar_lea.sflag [#allocation4], %s4426
        %s4428 = sand.u32 %s123, 1
        %s4429 = smul.addr %s4428, 896
        %s4430 = scalar_lea.vmem [#allocation8], %s4429
        // Predicated region
        $region45: #{tpu_custom_call.1} parent=31 // pred_check
          %p4431 = pneg %p133
        $region46: #{tpu_custom_call.1} parent=31 // pred_check_branch
          %4433 = sbr.rel (%p4431) target = $region48
        $region47: #{tpu_custom_call.1} parent=31 // pred_region
          %s4434 = smul.u32 32, %s28
          %s4435 = smul.u32 7, %s27
          %s4437 = ssub.s32 14336, 14336
          %4438 = vsyncadd %s4427, %s4437
          %s4439 = smul.addr %s4434, 49
          %s4440 = sadd.s32 %s4435, %s4439
          %s4441 = smul.addr %s4440, 64
          %s4442 = scalar_lea.hbm %s3, %s4441
          %s4443 = sshll.u32 %s4430, 4
          %s4444 = int_to_ptr.vmem [resolvable:$true] %s4443
          %4449 = dma.vmem_to_hbm [thread:$0]  %s4444, 14336, %s4442, %s4427, 448, 3136, 28
        $region48: #{tpu_custom_call.1} parent=31 // pred_fallthru
          _
      $region32: #{tpu_custom_call.1} parent=5 // pred_fallthru
        _
      %p4450 = scmp.le.s32.totalorder 2, %s18
      // Predicated region
      $region49: #{tpu_custom_call.1} parent=5 // pred_check
        %p4451 = pneg %p4450
      $region50: #{tpu_custom_call.1} parent=5 // pred_check_branch
        %4453 = sbr.rel (%p4451) target = $region52
      $region51: #{tpu_custom_call.1} parent=5 // pred_region
        %s4454 = ssub.s32 %s18, 2
        // Predicated region
        $region53: #{tpu_custom_call.1} parent=51 // pred_check
          %p4455 = pneg %p139
        $region54: #{tpu_custom_call.1} parent=51 // pred_check_branch
          %4457 = sbr.rel (%p4455) target = $region56
        $region55: #{tpu_custom_call.1} parent=51 // pred_region
          %s4458 = sand.u32 %s124, 1
          %s4459 = scalar_lea.sflag [#allocation4], %s4458
          %s4460 = sand.u32 %s124, 1
          %s4461 = smul.addr %s4460, 896
          %s4462 = scalar_lea.vmem [#allocation8], %s4461
          %4463 = dma.done %s4459, 14336
        $region56: #{tpu_custom_call.1} parent=51 // pred_fallthru
          _
      $region52: #{tpu_custom_call.1} parent=5 // pred_fallthru
        _
    $region6: #{tpu_custom_call.1} parent=1 // loop_footer
      %s22 = sadd.s32 1, %s18
    $region7: #{tpu_custom_call.1} parent=1 // loop_footer_branch
      %17 = sbr.rel target = $region3
    $region8: #{tpu_custom_call.1} parent=1 // loop_exit
      _
    %4464 = vsyncpa [#allocation3], 1
    %s4465 = scalar_lea.sflag [#allocation3], 1
    %4466 = vsyncpa %s4465, 1
    %4467 = vsyncpa [#allocation6], 1
    %s4468 = scalar_lea.sflag [#allocation6], 1
    %4469 = vsyncpa %s4468, 1
    %4470 = vsyncpa [#allocation4], 1
    %s4471 = scalar_lea.sflag [#allocation4], 1
    %4472 = vsyncpa %s4471, 1

</llo_original>
